<compile_context>
chip_gen: v6e
topology: v6e:2x2x1
jax: 0.10.0
libtpu: 0.0.40
codegen_flags: <defaults>
</compile_context>

<pallas_src>
import functools
import math

import jax
import jax.numpy as jnp
from jax import lax
from jax.experimental import pallas as pl
from jax.experimental.pallas import tpu as pltpu


# ----------------------------- in-kernel helpers ----------------------------

def _ln(x, g, b):
    """LayerNorm over last dim, eps=1e-6 (matches nn.LayerNorm(eps=1e-6)). f32 math."""
    mu = jnp.mean(x, axis=-1, keepdims=True)
    var = jnp.mean(jnp.square(x - mu), axis=-1, keepdims=True)
    return (x - mu) * lax.rsqrt(var + 1e-6) * g + b


def _mm(x, w):
    """x (M, K) f32/bf16 -> bf16, w (K, N) bf16; f32 accumulation on the MXU."""
    return jnp.dot(x.astype(jnp.bfloat16), w, preferred_element_type=jnp.float32)


def _mha(q, k, v, bias, heads, dh):
    """Multi-head attention, batched over the in-block batch dim.

    q: (Bg, Sq, H) f32 (Q scale already folded into the projection weights),
    k/v: (Bg, Sk, H) f32, bias: (Bg, Sq, Sk) additive f32 (0 / -1e9).
    Returns (Bg, Sq, H) f32.

    Heads stay a small static Python loop (Mosaic can't lower the (0,2,1,3) transpose
    a fully head-batched dot_general needs); each head's matmuls are batched over Bg.
    """
    qb = q.astype(jnp.bfloat16)
    kb = k.astype(jnp.bfloat16)
    vb = v.astype(jnp.bfloat16)
    outs = []
    for h in range(heads):
        sl = slice(h * dh, (h + 1) * dh)
        s = lax.dot_general(qb[..., sl], kb[..., sl],
                            (((2,), (2,)), ((0,), (0,))),
                            preferred_element_type=jnp.float32)        # (Bg, Sq, Sk)
        s = s + bias                                                    # additive mask
        s = s - jnp.max(s, axis=-1, keepdims=True)
        p = jnp.exp(s)
        p = p * pl.reciprocal(jnp.sum(p, axis=-1, keepdims=True), approx=True)
        outs.append(lax.dot_general(p.astype(jnp.bfloat16), vb[..., sl],
                                    (((2,), (1,)), ((0,), (0,))),
                                    preferred_element_type=jnp.float32))  # (Bg, Sq, dh)
    return jnp.concatenate(outs, axis=-1)                               # (Bg, Sq, H)


# ------------------------------- encoder kernel ------------------------------

def _encoder_kernel(x0_ref, pbias_ref,
                    ln1g_ref, ln1b_ref, wqkv_ref, wo_ref,
                    ln2g_ref, ln2b_ref, w1_ref, b1_ref, w2_ref, b2_ref,
                    lnfg_ref, lnfb_ref,
                    o_ref, *, heads):
    Bg, S, H = o_ref.shape
    BS = Bg * S
    dh = H // heads
    l = pl.program_id(1)

    @pl.when(l == 0)
    def _():                                     # residual stream -> resident out block
        o_ref[...] = x0_ref[...]

    x2 = o_ref[...].reshape(BS, H)               # (Bg*S, H) f32
    bias = jnp.broadcast_to(pbias_ref[...], (Bg, S, S))   # additive pad bias

    # --- self-attention sublayer (pre-LN) ---
    y2 = _ln(x2, ln1g_ref[...], ln1b_ref[...])
    qkv = _mm(y2, wqkv_ref[...]).reshape(Bg, S, 3 * H)     # fused QKV
    attn = _mha(qkv[..., :H], qkv[..., H:2 * H], qkv[..., 2 * H:], bias, heads, dh)
    x2 = x2 + _mm(attn.reshape(BS, H), wo_ref[...])

    # --- feed-forward sublayer (pre-LN) ---
    y2 = _ln(x2, ln2g_ref[...], ln2b_ref[...])
    hdn = jnp.maximum(_mm(y2, w1_ref[...]) + b1_ref[...], 0.0).astype(jnp.bfloat16)
    x2 = x2 + (jnp.dot(hdn, w2_ref[...], preferred_element_type=jnp.float32) + b2_ref[...])

    last = pl.num_programs(1) - 1

    @pl.when(l == last)
    def _():                                     # final encoder LN on the register value
        o_ref[...] = _ln(x2, lnfg_ref[...], lnfb_ref[...]).reshape(Bg, S, H)

    @pl.when(l != last)
    def _():
        o_ref[...] = x2.reshape(Bg, S, H)


def encoder_forward(x0, i_bias, p, heads, *, batch_groups=None):
    """x0: (B, Si, H) f32 prepared embeddings; i_bias: (B, 1, Si) f32 additive pad bias."""
    B, Si, H = x0.shape
    L = p["ln1_g"].shape[0]
    F_ = p["w1"].shape[-1]
    G = batch_groups if batch_groups is not None else (2 if (B % 2 == 0 and B >= 2) else 1)
    assert B % G == 0
    Bg = B // G
    bmap = lambda g, l: (g, 0, 0)
    lmap = lambda g, l: (l, 0, 0)
    cmap = lambda g, l: (0, 0)
    return pl.pallas_call(
        functools.partial(_encoder_kernel, heads=heads),
        out_shape=jax.ShapeDtypeStruct((B, Si, H), jnp.float32),
        grid=(G, L),
        in_specs=[
            pl.BlockSpec((Bg, Si, H), bmap),          # x0 (resident per batch group)
            pl.BlockSpec((Bg, 1, Si), bmap),          # additive key-pad bias
            pl.BlockSpec((None, 1, H), lmap),         # ln1 gamma
            pl.BlockSpec((None, 1, H), lmap),         # ln1 beta
            pl.BlockSpec((None, H, 3 * H), lmap),     # fused QKV weight (bf16, Q pre-scaled)
            pl.BlockSpec((None, H, H), lmap),         # output proj (bf16)
            pl.BlockSpec((None, 1, H), lmap),         # ln2 gamma
            pl.BlockSpec((None, 1, H), lmap),         # ln2 beta
            pl.BlockSpec((None, H, F_), lmap),        # ffn w1 (bf16)
            pl.BlockSpec((None, 1, F_), lmap),        # ffn b1
            pl.BlockSpec((None, F_, H), lmap),        # ffn w2 (bf16)
            pl.BlockSpec((None, 1, H), lmap),         # ffn b2
            pl.BlockSpec((1, H), cmap),               # final ln gamma
            pl.BlockSpec((1, H), cmap),               # final ln beta
        ],
        out_specs=pl.BlockSpec((Bg, Si, H), bmap),
        compiler_params=pltpu.CompilerParams(
            dimension_semantics=("parallel", "arbitrary"),
            vmem_limit_bytes=48 * 1024 * 1024),
    )(x0, i_bias, p["ln1_g"], p["ln1_b"], p["wqkv"], p["wo"],
      p["ln2_g"], p["ln2_b"], p["w1"], p["b1"], p["w2"], p["b2"],
      p["lnf_g"], p["lnf_b"])


# ------------------------------- decoder kernel ------------------------------

def _decoder_kernel(y0_ref, enc_ref, pbias_ref, causal_ref,
                    ln1g_ref, ln1b_ref, wqkv_ref, wo1_ref,
                    ln2g_ref, ln2b_ref, wq_ref, wkv_ref, wo2_ref,
                    ln3g_ref, ln3b_ref, w1_ref, b1_ref, w2_ref, b2_ref,
                    lnfg_ref, lnfb_ref,
                    o_ref, *, heads):
    Bg, Sp, H = o_ref.shape
    Si = enc_ref.shape[1]
    BS = Bg * Sp
    dh = H // heads
    l = pl.program_id(1)

    @pl.when(l == 0)
    def _():
        o_ref[...] = y0_ref[...]

    x2 = o_ref[...].reshape(BS, H)                              # (Bg*Sp, H) f32

    causal = jnp.broadcast_to(causal_ref[...], (Bg, Sp, Sp))    # additive causal bias
    pad = jnp.broadcast_to(pbias_ref[...], (Bg, Sp, Si))        # additive enc-pad bias

    # --- masked self-attention (pre-LN) ---
    y2 = _ln(x2, ln1g_ref[...], ln1b_ref[...])
    qkv = _mm(y2, wqkv_ref[...]).reshape(Bg, Sp, 3 * H)
    attn = _mha(qkv[..., :H], qkv[..., H:2 * H], qkv[..., 2 * H:], causal, heads, dh)
    x2 = x2 + _mm(attn.reshape(BS, H), wo1_ref[...])

    # --- cross-attention over encoder output (pre-LN) ---
    y2 = _ln(x2, ln2g_ref[...], ln2b_ref[...])
    q = _mm(y2, wq_ref[...]).reshape(Bg, Sp, H)
    kv = _mm(enc_ref[...].reshape(Bg * Si, H), wkv_ref[...]).reshape(Bg, Si, 2 * H)
    attn = _mha(q, kv[..., :H], kv[..., H:], pad, heads, dh)
    x2 = x2 + _mm(attn.reshape(BS, H), wo2_ref[...])

    # --- feed-forward sublayer (pre-LN) ---
    y2 = _ln(x2, ln3g_ref[...], ln3b_ref[...])
    hdn = jnp.maximum(_mm(y2, w1_ref[...]) + b1_ref[...], 0.0).astype(jnp.bfloat16)
    x2 = x2 + (jnp.dot(hdn, w2_ref[...], preferred_element_type=jnp.float32) + b2_ref[...])

    last = pl.num_programs(1) - 1

    @pl.when(l == last)
    def _():                                     # final decoder LN on the register value
        o_ref[...] = _ln(x2, lnfg_ref[...], lnfb_ref[...]).reshape(Bg, Sp, H)

    @pl.when(l != last)
    def _():
        o_ref[...] = x2.reshape(Bg, Sp, H)


def decoder_forward(y0, enc_out, i_bias, causal_bias, p, heads, *, batch_groups=None):
    """y0: (B, Sp, H); enc_out: (B, Si, H); i_bias: (B, 1, Si) f32; causal_bias: (1, Sp, Sp) f32."""
    B, Sp, H = y0.shape
    Si = enc_out.shape[1]
    L = p["ln1_g"].shape[0]
    F_ = p["w1"].shape[-1]
    G = batch_groups if batch_groups is not None else (2 if (B % 2 == 0 and B >= 2) else 1)
    assert B % G == 0
    Bg = B // G
    bmap = lambda g, l: (g, 0, 0)
    lmap = lambda g, l: (l, 0, 0)
    cmap2 = lambda g, l: (0, 0)
    cmap3 = lambda g, l: (0, 0, 0)
    return pl.pallas_call(
        functools.partial(_decoder_kernel, heads=heads),
        out_shape=jax.ShapeDtypeStruct((B, Sp, H), jnp.float32),
        grid=(G, L),
        in_specs=[
            pl.BlockSpec((Bg, Sp, H), bmap),          # y0
            pl.BlockSpec((Bg, Si, H), bmap),          # encoder output (resident per group)
            pl.BlockSpec((Bg, 1, Si), bmap),          # additive enc-key pad bias
            pl.BlockSpec((None, Sp, Sp), cmap3),      # additive causal bias (fetched once)
            pl.BlockSpec((None, 1, H), lmap),         # ln1 gamma
            pl.BlockSpec((None, 1, H), lmap),         # ln1 beta
            pl.BlockSpec((None, H, 3 * H), lmap),     # self-attn fused QKV (bf16, Q pre-scaled)
            pl.BlockSpec((None, H, H), lmap),         # self-attn out proj (bf16)
            pl.BlockSpec((None, 1, H), lmap),         # ln2 gamma
            pl.BlockSpec((None, 1, H), lmap),         # ln2 beta
            pl.BlockSpec((None, H, H), lmap),         # cross-attn Q (bf16, pre-scaled)
            pl.BlockSpec((None, H, 2 * H), lmap),     # cross-attn fused KV (bf16)
            pl.BlockSpec((None, H, H), lmap),         # cross-attn out proj (bf16)
            pl.BlockSpec((None, 1, H), lmap),         # ln3 gamma
            pl.BlockSpec((None, 1, H), lmap),         # ln3 beta
            pl.BlockSpec((None, H, F_), lmap),        # ffn w1 (bf16)
            pl.BlockSpec((None, 1, F_), lmap),        # ffn b1
            pl.BlockSpec((None, F_, H), lmap),        # ffn w2 (bf16)
            pl.BlockSpec((None, 1, H), lmap),         # ffn b2
            pl.BlockSpec((1, H), cmap2),              # final ln gamma
            pl.BlockSpec((1, H), cmap2),              # final ln beta
        ],
        out_specs=pl.BlockSpec((Bg, Sp, H), bmap),
        compiler_params=pltpu.CompilerParams(
            dimension_semantics=("parallel", "arbitrary"),
            vmem_limit_bytes=48 * 1024 * 1024),
    )(y0, enc_out, i_bias, causal_bias,
      p["ln1_g"], p["ln1_b"], p["wqkv"], p["wo1"],
      p["ln2_g"], p["ln2_b"], p["wq"], p["wkv"], p["wo2"],
      p["ln3_g"], p["ln3_b"], p["w1"], p["b1"], p["w2"], p["b2"],
      p["lnf_g"], p["lnf_b"])


# ------------------------------- model glue ---------------------------------

def position_encoding(length, hidden):
    nt = hidden // 2
    log_inc = math.log(10000.0 / 1.0) / max(nt - 1, 1)
    inv = jnp.exp(jnp.arange(nt, dtype=jnp.float32) * -log_inc)
    pos = jnp.arange(length, dtype=jnp.float32)
    st = pos[:, None] * inv[None, :]
    sig = jnp.concatenate([jnp.sin(st), jnp.cos(st)], axis=1)
    sig = jnp.pad(sig, ((0, 0), (0, hidden % 2)))
    return sig.reshape(1, length, hidden)


def generator_forward(params, inputs, programs, *, hidden, heads,
                      src_pad_idx, pro_pad_idx, batch_groups=None):
    emb_scale = hidden ** 0.5
    B, Si = inputs.shape
    _, Sp = programs.shape

    # ----- encode -----
    i_mask = inputs == src_pad_idx                                # (B, Si) True = pad
    emb = jnp.take(params["i_emb"], inputs, axis=0)               # embedding gather (glue)
    x0 = jnp.where(i_mask[..., None], 0.0, emb) * emb_scale + position_encoding(Si, hidden)
    i_bias = jnp.where(i_mask, -1e9, 0.0).astype(jnp.float32)[:, None, :]   # (B, 1, Si)
    # dropout: identity (eval mode)
    enc_out = encoder_forward(x0, i_bias, params["encoder"], heads, batch_groups=batch_groups)

    # ----- decode -----
    p_mask = programs == pro_pad_idx
    pemb = jnp.take(params["p_emb"], programs, axis=0)            # (B, Sp, H)
    pemb = jnp.where(p_mask[..., None], 0.0, pemb)                # masked_fill before shift
    pemb = jnp.pad(pemb[:, :-1], ((0, 0), (1, 0), (0, 0)))        # F.pad(..., (0,0,1,0))
    y0 = pemb * emb_scale + position_encoding(Sp, hidden)

    row = jnp.arange(Sp, dtype=jnp.int32)[:, None]
    col = jnp.arange(Sp, dtype=jnp.int32)[None, :]
    causal_bias = jnp.where(col > row, -1e9, 0.0).astype(jnp.float32)[None]  # (1, Sp, Sp)
    # dropout: identity (eval mode)
    return decoder_forward(y0, enc_out, i_bias, causal_bias, params["decoder"], heads,
                           batch_groups=batch_groups)


# ------------------------------- init ---------------------------------------

def init_generator_params(key, i_vocab, p_vocab, hidden, inner, enc_n, dec_n, heads):
    keys = iter(jax.random.split(key, 64))
    s = hidden ** -0.5
    dh = hidden // heads
    att_scale = dh ** -0.5
    bf = jnp.bfloat16

    def nrm(shape, std):
        return jax.random.normal(next(keys), shape, dtype=jnp.float32) * std

    def ones(shape):
        return jnp.ones(shape, jnp.float32)

    def zeros(shape):
        return jnp.zeros(shape, jnp.float32)

    def qkv_w(n_layers):
        # Fold the per-head attention scale into the Q output columns.
        w = nrm((n_layers, hidden, 3 * hidden), s)
        w = w.at[:, :, :hidden].multiply(att_scale)
        return w.astype(bf)

    encoder = dict(
        ln1_g=ones((enc_n, 1, hidden)), ln1_b=zeros((enc_n, 1, hidden)),
        wqkv=qkv_w(enc_n),
        wo=nrm((enc_n, hidden, hidden), s).astype(bf),
        ln2_g=ones((enc_n, 1, hidden)), ln2_b=zeros((enc_n, 1, hidden)),
        w1=nrm((enc_n, hidden, inner), s).astype(bf), b1=zeros((enc_n, 1, inner)),
        w2=nrm((enc_n, inner, hidden), inner ** -0.5).astype(bf), b2=zeros((enc_n, 1, hidden)),
        lnf_g=ones((1, hidden)), lnf_b=zeros((1, hidden)),
    )
    decoder = dict(
        ln1_g=ones((dec_n, 1, hidden)), ln1_b=zeros((dec_n, 1, hidden)),
        wqkv=qkv_w(dec_n),
        wo1=nrm((dec_n, hidden, hidden), s).astype(bf),
        ln2_g=ones((dec_n, 1, hidden)), ln2_b=zeros((dec_n, 1, hidden)),
        wq=(nrm((dec_n, hidden, hidden), s) * att_scale).astype(bf),   # scale folded in
        wkv=nrm((dec_n, hidden, 2 * hidden), s).astype(bf),
        wo2=nrm((dec_n, hidden, hidden), s).astype(bf),
        ln3_g=ones((dec_n, 1, hidden)), ln3_b=zeros((dec_n, 1, hidden)),
        w1=nrm((dec_n, hidden, inner), s).astype(bf), b1=zeros((dec_n, 1, inner)),
        w2=nrm((dec_n, inner, hidden), inner ** -0.5).astype(bf), b2=zeros((dec_n, 1, hidden)),
        lnf_g=ones((1, hidden)), lnf_b=zeros((1, hidden)),
    )
    return dict(
        i_emb=nrm((i_vocab, hidden), s),
        p_emb=nrm((p_vocab, hidden), s),
        encoder=encoder, decoder=decoder,
    )


# ------------------------------- main ----------------------------------------

if __name__ == "__main__":
    B, Si, Sp = 2, 16, 8          # seq lengths multiples of 8 -> clean batch-fold reshapes
    i_vocab, p_vocab = 50, 40
    hidden, inner, heads = 32, 64, 4
    enc_n, dec_n = 3, 1
    src_pad_idx, pro_pad_idx = 0, 0

    key = jax.random.PRNGKey(0)
    k_params, k_in, k_prog = jax.random.split(key, 3)
    params = init_generator_params(k_params, i_vocab, p_vocab, hidden, inner,
                                   enc_n, dec_n, heads)

    inputs = jax.random.randint(k_in, (B, Si), 1, i_vocab, dtype=jnp.int32)
    inputs = inputs.at[:, -2:].set(src_pad_idx)          # some pad tokens
    programs = jax.random.randint(k_prog, (B, Sp), 1, p_vocab, dtype=jnp.int32)
    programs = programs.at[:, -1:].set(pro_pad_idx)      # some pad tokens

    fwd = jax.jit(functools.partial(generator_forward, hidden=hidden, heads=heads,
                                    src_pad_idx=src_pad_idx, pro_pad_idx=pro_pad_idx))
    out = fwd(params, inputs, programs)
    out = jax.block_until_ready(out)
    assert out.shape == (B, Sp, hidden)
    assert bool(jnp.all(jnp.isfinite(out)))
    print("KERNEL_OK")
</pallas_src>

<mosaic_0001>
module attributes {stable_mosaic.version = 11 : i64} {
  func.func @_encoder_kernel(%arg0: i32, %arg1: i32, %arg2: memref<1x16x32xf32, #tpu.memory_space<vmem>>, %arg3: memref<1x1x16xf32, #tpu.memory_space<vmem>>, %arg4: memref<1x1x32xf32, #tpu.memory_space<vmem>>, %arg5: memref<1x1x32xf32, #tpu.memory_space<vmem>>, %arg6: memref<1x32x96xbf16, #tpu.memory_space<vmem>>, %arg7: memref<1x32x32xbf16, #tpu.memory_space<vmem>>, %arg8: memref<1x1x32xf32, #tpu.memory_space<vmem>>, %arg9: memref<1x1x32xf32, #tpu.memory_space<vmem>>, %arg10: memref<1x32x64xbf16, #tpu.memory_space<vmem>>, %arg11: memref<1x1x64xf32, #tpu.memory_space<vmem>>, %arg12: memref<1x64x32xbf16, #tpu.memory_space<vmem>>, %arg13: memref<1x1x32xf32, #tpu.memory_space<vmem>>, %arg14: memref<1x32xf32, #tpu.memory_space<vmem>>, %arg15: memref<1x32xf32, #tpu.memory_space<vmem>>, %arg16: memref<1x16x32xf32, #tpu.memory_space<vmem>>) attributes {dimension_semantics = [#tpu.dimension_semantics<parallel>, #tpu.dimension_semantics<arbitrary>], iteration_bounds = array<i64: 2, 3>, scalar_prefetch = 0 : i64, scratch_operands = 0 : i64, tpu.core_type = #tpu.core_type<tc>, window_params = [{transform_indices = @transform_0, window_bounds = array<i64: 1, 16, 32>}, {transform_indices = @transform_1, window_bounds = array<i64: 1, 1, 16>}, {transform_indices = @transform_2, window_bounds = array<i64: 1, 1, 32>}, {transform_indices = @transform_3, window_bounds = array<i64: 1, 1, 32>}, {transform_indices = @transform_4, window_bounds = array<i64: 1, 32, 96>}, {transform_indices = @transform_5, window_bounds = array<i64: 1, 32, 32>}, {transform_indices = @transform_6, window_bounds = array<i64: 1, 1, 32>}, {transform_indices = @transform_7, window_bounds = array<i64: 1, 1, 32>}, {transform_indices = @transform_8, window_bounds = array<i64: 1, 32, 64>}, {transform_indices = @transform_9, window_bounds = array<i64: 1, 1, 64>}, {transform_indices = @transform_10, window_bounds = array<i64: 1, 64, 32>}, {transform_indices = @transform_11, window_bounds = array<i64: 1, 1, 32>}, {pipeline_mode = #tpu.pipeline_mode<synchronous>, transform_indices = @transform_12, window_bounds = array<i64: 1, 32>}, {pipeline_mode = #tpu.pipeline_mode<synchronous>, transform_indices = @transform_13, window_bounds = array<i64: 1, 32>}, {transform_indices = @transform_14, window_bounds = array<i64: 1, 16, 32>}]} {
    %c0_i32 = arith.constant 0 : i32
    %0 = arith.cmpi eq, %arg1, %c0_i32 : i32
    %1 = arith.extui %0 : i1 to i32
    %c0_i32_0 = arith.constant 0 : i32
    %2 = arith.cmpi ne, %1, %c0_i32_0 : i32
    scf.if %2 {
      %c0_69 = arith.constant 0 : index
      %c0_70 = arith.constant 0 : index
      %c0_71 = arith.constant 0 : index
      %171 = vector.load %arg2[%c0_69, %c0_70, %c0_71] : memref<1x16x32xf32, #tpu.memory_space<vmem>>, vector<1x16x32xf32>
      %c0_72 = arith.constant 0 : index
      %c0_73 = arith.constant 0 : index
      %c0_74 = arith.constant 0 : index
      %172 = vector.load %arg16[%c0_72, %c0_73, %c0_74] : memref<1x16x32xf32, #tpu.memory_space<vmem>>, vector<1x16x32xf32>
      tpu.vector_store %arg16[%c0_72, %c0_73, %c0_74], %171 {strides = array<i32>} : memref<1x16x32xf32, #tpu.memory_space<vmem>>, vector<1x16x32xf32>,
    } else {
    }
    %c0 = arith.constant 0 : index
    %c0_1 = arith.constant 0 : index
    %c0_2 = arith.constant 0 : index
    %3 = vector.load %arg16[%c0, %c0_1, %c0_2] : memref<1x16x32xf32, #tpu.memory_space<vmem>>, vector<1x16x32xf32>
    %4 = vector.shape_cast %3 : vector<1x16x32xf32> to vector<16x32xf32>
    %c0_3 = arith.constant 0 : index
    %c0_4 = arith.constant 0 : index
    %c0_5 = arith.constant 0 : index
    %5 = vector.load %arg3[%c0_3, %c0_4, %c0_5] : memref<1x1x16xf32, #tpu.memory_space<vmem>>, vector<1x1x16xf32>
    %6 = vector.shape_cast %5 : vector<1x1x16xf32> to vector<1x1x16xf32>
    %7 = vector.broadcast %6 : vector<1x1x16xf32> to vector<1x16x16xf32>
    %c0_6 = arith.constant 0 : index
    %c0_7 = arith.constant 0 : index
    %c0_8 = arith.constant 0 : index
    %8 = vector.load %arg4[%c0_6, %c0_7, %c0_8] : memref<1x1x32xf32, #tpu.memory_space<vmem>>, vector<1x1x32xf32>
    %9 = vector.shape_cast %8 : vector<1x1x32xf32> to vector<1x32xf32>
    %c0_9 = arith.constant 0 : index
    %c0_10 = arith.constant 0 : index
    %c0_11 = arith.constant 0 : index
    %10 = vector.load %arg5[%c0_9, %c0_10, %c0_11] : memref<1x1x32xf32, #tpu.memory_space<vmem>>, vector<1x1x32xf32>
    %11 = vector.shape_cast %10 : vector<1x1x32xf32> to vector<1x32xf32>
    %cst = arith.constant dense<0.000000e+00> : vector<16xf32>
    %12 = vector.multi_reduction <add>, %4, %cst [1] : vector<16x32xf32> to vector<16xf32>
    %13 = vector.shape_cast %12 : vector<16xf32> to vector<16x1xf32>
    %cst_12 = arith.constant 3.200000e+01 : f32
    %14 = vector.broadcast %cst_12 : f32 to vector<16x1xf32>
    %15 = arith.divf %13, %14 : vector<16x1xf32>
    %16 = vector.broadcast %15 : vector<16x1xf32> to vector<16x32xf32>
    %17 = arith.subf %4, %16 : vector<16x32xf32>
    %18 = arith.mulf %17, %17 : vector<16x32xf32>
    %cst_13 = arith.constant dense<0.000000e+00> : vector<16xf32>
    %19 = vector.multi_reduction <add>, %18, %cst_13 [1] : vector<16x32xf32> to vector<16xf32>
    %20 = vector.shape_cast %19 : vector<16xf32> to vector<16x1xf32>
    %cst_14 = arith.constant 3.200000e+01 : f32
    %21 = vector.broadcast %cst_14 : f32 to vector<16x1xf32>
    %22 = arith.divf %20, %21 : vector<16x1xf32>
    %23 = vector.broadcast %15 : vector<16x1xf32> to vector<16x32xf32>
    %24 = arith.subf %4, %23 : vector<16x32xf32>
    %cst_15 = arith.constant 9.99999997E-7 : f32
    %25 = vector.broadcast %cst_15 : f32 to vector<16x1xf32>
    %26 = arith.addf %22, %25 : vector<16x1xf32>
    %27 = math.rsqrt %26 : vector<16x1xf32>
    %28 = vector.broadcast %27 : vector<16x1xf32> to vector<16x32xf32>
    %29 = arith.mulf %24, %28 : vector<16x32xf32>
    %30 = vector.broadcast %9 : vector<1x32xf32> to vector<16x32xf32>
    %31 = arith.mulf %29, %30 : vector<16x32xf32>
    %32 = vector.broadcast %11 : vector<1x32xf32> to vector<16x32xf32>
    %33 = arith.addf %31, %32 : vector<16x32xf32>
    %c0_16 = arith.constant 0 : index
    %c0_17 = arith.constant 0 : index
    %c0_18 = arith.constant 0 : index
    %34 = vector.load %arg6[%c0_16, %c0_17, %c0_18] : memref<1x32x96xbf16, #tpu.memory_space<vmem>>, vector<1x32x96xbf16>
    %35 = vector.shape_cast %34 : vector<1x32x96xbf16> to vector<32x96xbf16>
    %36 = arith.truncf %33 : vector<16x32xf32> to vector<16x32xbf16>
    %cst_19 = arith.constant dense<0.000000e+00> : vector<16x96xf32>
    %37 = tpu.matmul %36, %35, %cst_19 {dimension_numbers = #tpu.dot_dimension_numbers<[1], [0], [0], [1], [0, 0, 1, 1], [], []>} : vector<16x32xbf16>, vector<32x96xbf16>, vector<16x96xf32> -> vector<16x96xf32>
    %38 = vector.shape_cast %37 : vector<16x96xf32> to vector<1x16x96xf32>
    %39 = vector.extract_strided_slice %38 {offsets = [0, 0, 0], sizes = [1, 16, 32], strides = [1, 1, 1]} : vector<1x16x96xf32> to vector<1x16x32xf32>
    %40 = vector.extract_strided_slice %38 {offsets = [0, 0, 32], sizes = [1, 16, 32], strides = [1, 1, 1]} : vector<1x16x96xf32> to vector<1x16x32xf32>
    %41 = vector.extract_strided_slice %38 {offsets = [0, 0, 64], sizes = [1, 16, 32], strides = [1, 1, 1]} : vector<1x16x96xf32> to vector<1x16x32xf32>
    %42 = arith.truncf %39 : vector<1x16x32xf32> to vector<1x16x32xbf16>
    %43 = arith.truncf %40 : vector<1x16x32xf32> to vector<1x16x32xbf16>
    %44 = arith.truncf %41 : vector<1x16x32xf32> to vector<1x16x32xbf16>
    %45 = vector.extract_strided_slice %42 {offsets = [0, 0, 0], sizes = [1, 16, 8], strides = [1, 1, 1]} : vector<1x16x32xbf16> to vector<1x16x8xbf16>
    %46 = vector.extract_strided_slice %43 {offsets = [0, 0, 0], sizes = [1, 16, 8], strides = [1, 1, 1]} : vector<1x16x32xbf16> to vector<1x16x8xbf16>
    %cst_20 = arith.constant dense<0.000000e+00> : vector<1x16x16xf32>
    %47 = tpu.matmul %45, %46, %cst_20 {dimension_numbers = #tpu.dot_dimension_numbers<[2], [2], [1], [1], [0, 0, 0, 1, 1, 1], [0], [0]>} : vector<1x16x8xbf16>, vector<1x16x8xbf16>, vector<1x16x16xf32> -> vector<1x16x16xf32>
    %48 = arith.addf %47, %7 : vector<1x16x16xf32>
    %cst_21 = arith.constant dense<0xFF800000> : vector<1x16xf32>
    %49 = vector.multi_reduction <maximumf>, %48, %cst_21 [2] : vector<1x16x16xf32> to vector<1x16xf32>
    %50 = vector.shape_cast %49 : vector<1x16xf32> to vector<1x16x1xf32>
    %51 = vector.broadcast %50 : vector<1x16x1xf32> to vector<1x16x16xf32>
    %52 = arith.subf %48, %51 : vector<1x16x16xf32>
    %53 = math.exp %52 : vector<1x16x16xf32>
    %cst_22 = arith.constant dense<0.000000e+00> : vector<1x16xf32>
    %54 = vector.multi_reduction <add>, %53, %cst_22 [2] : vector<1x16x16xf32> to vector<1x16xf32>
    %55 = vector.shape_cast %54 : vector<1x16xf32> to vector<1x16x1xf32>
    %56 = tpu.reciprocal %55 {approx = true} : vector<1x16x1xf32> -> vector<1x16x1xf32>
    %57 = vector.broadcast %56 : vector<1x16x1xf32> to vector<1x16x16xf32>
    %58 = arith.mulf %53, %57 : vector<1x16x16xf32>
    %59 = arith.truncf %58 : vector<1x16x16xf32> to vector<1x16x16xbf16>
    %60 = vector.extract_strided_slice %44 {offsets = [0, 0, 0], sizes = [1, 16, 8], strides = [1, 1, 1]} : vector<1x16x32xbf16> to vector<1x16x8xbf16>
    %cst_23 = arith.constant dense<0.000000e+00> : vector<1x16x8xf32>
    %61 = tpu.matmul %59, %60, %cst_23 {dimension_numbers = #tpu.dot_dimension_numbers<[2], [1], [1], [2], [0, 0, 0, 1, 1, 2], [0], [0]>} : vector<1x16x16xbf16>, vector<1x16x8xbf16>, vector<1x16x8xf32> -> vector<1x16x8xf32>
    %62 = vector.extract_strided_slice %42 {offsets = [0, 0, 8], sizes = [1, 16, 8], strides = [1, 1, 1]} : vector<1x16x32xbf16> to vector<1x16x8xbf16>
    %63 = vector.extract_strided_slice %43 {offsets = [0, 0, 8], sizes = [1, 16, 8], strides = [1, 1, 1]} : vector<1x16x32xbf16> to vector<1x16x8xbf16>
    %cst_24 = arith.constant dense<0.000000e+00> : vector<1x16x16xf32>
    %64 = tpu.matmul %62, %63, %cst_24 {dimension_numbers = #tpu.dot_dimension_numbers<[2], [2], [1], [1], [0, 0, 0, 1, 1, 1], [0], [0]>} : vector<1x16x8xbf16>, vector<1x16x8xbf16>, vector<1x16x16xf32> -> vector<1x16x16xf32>
    %65 = arith.addf %64, %7 : vector<1x16x16xf32>
    %cst_25 = arith.constant dense<0xFF800000> : vector<1x16xf32>
    %66 = vector.multi_reduction <maximumf>, %65, %cst_25 [2] : vector<1x16x16xf32> to vector<1x16xf32>
    %67 = vector.shape_cast %66 : vector<1x16xf32> to vector<1x16x1xf32>
    %68 = vector.broadcast %67 : vector<1x16x1xf32> to vector<1x16x16xf32>
    %69 = arith.subf %65, %68 : vector<1x16x16xf32>
    %70 = math.exp %69 : vector<1x16x16xf32>
    %cst_26 = arith.constant dense<0.000000e+00> : vector<1x16xf32>
    %71 = vector.multi_reduction <add>, %70, %cst_26 [2] : vector<1x16x16xf32> to vector<1x16xf32>
    %72 = vector.shape_cast %71 : vector<1x16xf32> to vector<1x16x1xf32>
    %73 = tpu.reciprocal %72 {approx = true} : vector<1x16x1xf32> -> vector<1x16x1xf32>
    %74 = vector.broadcast %73 : vector<1x16x1xf32> to vector<1x16x16xf32>
    %75 = arith.mulf %70, %74 : vector<1x16x16xf32>
    %76 = arith.truncf %75 : vector<1x16x16xf32> to vector<1x16x16xbf16>
    %77 = vector.extract_strided_slice %44 {offsets = [0, 0, 8], sizes = [1, 16, 8], strides = [1, 1, 1]} : vector<1x16x32xbf16> to vector<1x16x8xbf16>
    %cst_27 = arith.constant dense<0.000000e+00> : vector<1x16x8xf32>
    %78 = tpu.matmul %76, %77, %cst_27 {dimension_numbers = #tpu.dot_dimension_numbers<[2], [1], [1], [2], [0, 0, 0, 1, 1, 2], [0], [0]>} : vector<1x16x16xbf16>, vector<1x16x8xbf16>, vector<1x16x8xf32> -> vector<1x16x8xf32>
    %79 = vector.extract_strided_slice %42 {offsets = [0, 0, 16], sizes = [1, 16, 8], strides = [1, 1, 1]} : vector<1x16x32xbf16> to vector<1x16x8xbf16>
    %80 = vector.extract_strided_slice %43 {offsets = [0, 0, 16], sizes = [1, 16, 8], strides = [1, 1, 1]} : vector<1x16x32xbf16> to vector<1x16x8xbf16>
    %cst_28 = arith.constant dense<0.000000e+00> : vector<1x16x16xf32>
    %81 = tpu.matmul %79, %80, %cst_28 {dimension_numbers = #tpu.dot_dimension_numbers<[2], [2], [1], [1], [0, 0, 0, 1, 1, 1], [0], [0]>} : vector<1x16x8xbf16>, vector<1x16x8xbf16>, vector<1x16x16xf32> -> vector<1x16x16xf32>
    %82 = arith.addf %81, %7 : vector<1x16x16xf32>
    %cst_29 = arith.constant dense<0xFF800000> : vector<1x16xf32>
    %83 = vector.multi_reduction <maximumf>, %82, %cst_29 [2] : vector<1x16x16xf32> to vector<1x16xf32>
    %84 = vector.shape_cast %83 : vector<1x16xf32> to vector<1x16x1xf32>
    %85 = vector.broadcast %84 : vector<1x16x1xf32> to vector<1x16x16xf32>
    %86 = arith.subf %82, %85 : vector<1x16x16xf32>
    %87 = math.exp %86 : vector<1x16x16xf32>
    %cst_30 = arith.constant dense<0.000000e+00> : vector<1x16xf32>
    %88 = vector.multi_reduction <add>, %87, %cst_30 [2] : vector<1x16x16xf32> to vector<1x16xf32>
    %89 = vector.shape_cast %88 : vector<1x16xf32> to vector<1x16x1xf32>
    %90 = tpu.reciprocal %89 {approx = true} : vector<1x16x1xf32> -> vector<1x16x1xf32>
    %91 = vector.broadcast %90 : vector<1x16x1xf32> to vector<1x16x16xf32>
    %92 = arith.mulf %87, %91 : vector<1x16x16xf32>
    %93 = arith.truncf %92 : vector<1x16x16xf32> to vector<1x16x16xbf16>
    %94 = vector.extract_strided_slice %44 {offsets = [0, 0, 16], sizes = [1, 16, 8], strides = [1, 1, 1]} : vector<1x16x32xbf16> to vector<1x16x8xbf16>
    %cst_31 = arith.constant dense<0.000000e+00> : vector<1x16x8xf32>
    %95 = tpu.matmul %93, %94, %cst_31 {dimension_numbers = #tpu.dot_dimension_numbers<[2], [1], [1], [2], [0, 0, 0, 1, 1, 2], [0], [0]>} : vector<1x16x16xbf16>, vector<1x16x8xbf16>, vector<1x16x8xf32> -> vector<1x16x8xf32>
    %96 = vector.extract_strided_slice %42 {offsets = [0, 0, 24], sizes = [1, 16, 8], strides = [1, 1, 1]} : vector<1x16x32xbf16> to vector<1x16x8xbf16>
    %97 = vector.extract_strided_slice %43 {offsets = [0, 0, 24], sizes = [1, 16, 8], strides = [1, 1, 1]} : vector<1x16x32xbf16> to vector<1x16x8xbf16>
    %cst_32 = arith.constant dense<0.000000e+00> : vector<1x16x16xf32>
    %98 = tpu.matmul %96, %97, %cst_32 {dimension_numbers = #tpu.dot_dimension_numbers<[2], [2], [1], [1], [0, 0, 0, 1, 1, 1], [0], [0]>} : vector<1x16x8xbf16>, vector<1x16x8xbf16>, vector<1x16x16xf32> -> vector<1x16x16xf32>
    %99 = arith.addf %98, %7 : vector<1x16x16xf32>
    %cst_33 = arith.constant dense<0xFF800000> : vector<1x16xf32>
    %100 = vector.multi_reduction <maximumf>, %99, %cst_33 [2] : vector<1x16x16xf32> to vector<1x16xf32>
    %101 = vector.shape_cast %100 : vector<1x16xf32> to vector<1x16x1xf32>
    %102 = vector.broadcast %101 : vector<1x16x1xf32> to vector<1x16x16xf32>
    %103 = arith.subf %99, %102 : vector<1x16x16xf32>
    %104 = math.exp %103 : vector<1x16x16xf32>
    %cst_34 = arith.constant dense<0.000000e+00> : vector<1x16xf32>
    %105 = vector.multi_reduction <add>, %104, %cst_34 [2] : vector<1x16x16xf32> to vector<1x16xf32>
    %106 = vector.shape_cast %105 : vector<1x16xf32> to vector<1x16x1xf32>
    %107 = tpu.reciprocal %106 {approx = true} : vector<1x16x1xf32> -> vector<1x16x1xf32>
    %108 = vector.broadcast %107 : vector<1x16x1xf32> to vector<1x16x16xf32>
    %109 = arith.mulf %104, %108 : vector<1x16x16xf32>
    %110 = arith.truncf %109 : vector<1x16x16xf32> to vector<1x16x16xbf16>
    %111 = vector.extract_strided_slice %44 {offsets = [0, 0, 24], sizes = [1, 16, 8], strides = [1, 1, 1]} : vector<1x16x32xbf16> to vector<1x16x8xbf16>
    %cst_35 = arith.constant dense<0.000000e+00> : vector<1x16x8xf32>
    %112 = tpu.matmul %110, %111, %cst_35 {dimension_numbers = #tpu.dot_dimension_numbers<[2], [1], [1], [2], [0, 0, 0, 1, 1, 2], [0], [0]>} : vector<1x16x16xbf16>, vector<1x16x8xbf16>, vector<1x16x8xf32> -> vector<1x16x8xf32>
    %113 = tpu.concatenate %61, %78, %95, %112 in 2 : vector<1x16x8xf32>, vector<1x16x8xf32>, vector<1x16x8xf32>, vector<1x16x8xf32> -> vector<1x16x32xf32>
    %114 = vector.shape_cast %113 : vector<1x16x32xf32> to vector<16x32xf32>
    %c0_36 = arith.constant 0 : index
    %c0_37 = arith.constant 0 : index
    %c0_38 = arith.constant 0 : index
    %115 = vector.load %arg7[%c0_36, %c0_37, %c0_38] : memref<1x32x32xbf16, #tpu.memory_space<vmem>>, vector<1x32x32xbf16>
    %116 = vector.shape_cast %115 : vector<1x32x32xbf16> to vector<32x32xbf16>
    %117 = arith.truncf %114 : vector<16x32xf32> to vector<16x32xbf16>
    %cst_39 = arith.constant dense<0.000000e+00> : vector<16x32xf32>
    %118 = tpu.matmul %117, %116, %cst_39 {dimension_numbers = #tpu.dot_dimension_numbers<[1], [0], [0], [1], [0, 0, 1, 1], [], []>} : vector<16x32xbf16>, vector<32x32xbf16>, vector<16x32xf32> -> vector<16x32xf32>
    %119 = arith.addf %4, %118 : vector<16x32xf32>
    %c0_40 = arith.constant 0 : index
    %c0_41 = arith.constant 0 : index
    %c0_42 = arith.constant 0 : index
    %120 = vector.load %arg8[%c0_40, %c0_41, %c0_42] : memref<1x1x32xf32, #tpu.memory_space<vmem>>, vector<1x1x32xf32>
    %121 = vector.shape_cast %120 : vector<1x1x32xf32> to vector<1x32xf32>
    %c0_43 = arith.constant 0 : index
    %c0_44 = arith.constant 0 : index
    %c0_45 = arith.constant 0 : index
    %122 = vector.load %arg9[%c0_43, %c0_44, %c0_45] : memref<1x1x32xf32, #tpu.memory_space<vmem>>, vector<1x1x32xf32>
    %123 = vector.shape_cast %122 : vector<1x1x32xf32> to vector<1x32xf32>
    %cst_46 = arith.constant dense<0.000000e+00> : vector<16xf32>
    %124 = vector.multi_reduction <add>, %119, %cst_46 [1] : vector<16x32xf32> to vector<16xf32>
    %125 = vector.shape_cast %124 : vector<16xf32> to vector<16x1xf32>
    %cst_47 = arith.constant 3.200000e+01 : f32
    %126 = vector.broadcast %cst_47 : f32 to vector<16x1xf32>
    %127 = arith.divf %125, %126 : vector<16x1xf32>
    %128 = vector.broadcast %127 : vector<16x1xf32> to vector<16x32xf32>
    %129 = arith.subf %119, %128 : vector<16x32xf32>
    %130 = arith.mulf %129, %129 : vector<16x32xf32>
    %cst_48 = arith.constant dense<0.000000e+00> : vector<16xf32>
    %131 = vector.multi_reduction <add>, %130, %cst_48 [1] : vector<16x32xf32> to vector<16xf32>
    %132 = vector.shape_cast %131 : vector<16xf32> to vector<16x1xf32>
    %cst_49 = arith.constant 3.200000e+01 : f32
    %133 = vector.broadcast %cst_49 : f32 to vector<16x1xf32>
    %134 = arith.divf %132, %133 : vector<16x1xf32>
    %135 = vector.broadcast %127 : vector<16x1xf32> to vector<16x32xf32>
    %136 = arith.subf %119, %135 : vector<16x32xf32>
    %cst_50 = arith.constant 9.99999997E-7 : f32
    %137 = vector.broadcast %cst_50 : f32 to vector<16x1xf32>
    %138 = arith.addf %134, %137 : vector<16x1xf32>
    %139 = math.rsqrt %138 : vector<16x1xf32>
    %140 = vector.broadcast %139 : vector<16x1xf32> to vector<16x32xf32>
    %141 = arith.mulf %136, %140 : vector<16x32xf32>
    %142 = vector.broadcast %121 : vector<1x32xf32> to vector<16x32xf32>
    %143 = arith.mulf %141, %142 : vector<16x32xf32>
    %144 = vector.broadcast %123 : vector<1x32xf32> to vector<16x32xf32>
    %145 = arith.addf %143, %144 : vector<16x32xf32>
    %c0_51 = arith.constant 0 : index
    %c0_52 = arith.constant 0 : index
    %c0_53 = arith.constant 0 : index
    %146 = vector.load %arg10[%c0_51, %c0_52, %c0_53] : memref<1x32x64xbf16, #tpu.memory_space<vmem>>, vector<1x32x64xbf16>
    %147 = vector.shape_cast %146 : vector<1x32x64xbf16> to vector<32x64xbf16>
    %148 = arith.truncf %145 : vector<16x32xf32> to vector<16x32xbf16>
    %cst_54 = arith.constant dense<0.000000e+00> : vector<16x64xf32>
    %149 = tpu.matmul %148, %147, %cst_54 {dimension_numbers = #tpu.dot_dimension_numbers<[1], [0], [0], [1], [0, 0, 1, 1], [], []>} : vector<16x32xbf16>, vector<32x64xbf16>, vector<16x64xf32> -> vector<16x64xf32>
    %c0_55 = arith.constant 0 : index
    %c0_56 = arith.constant 0 : index
    %c0_57 = arith.constant 0 : index
    %150 = vector.load %arg11[%c0_55, %c0_56, %c0_57] : memref<1x1x64xf32, #tpu.memory_space<vmem>>, vector<1x1x64xf32>
    %151 = vector.shape_cast %150 : vector<1x1x64xf32> to vector<1x64xf32>
    %152 = vector.broadcast %151 : vector<1x64xf32> to vector<16x64xf32>
    %153 = arith.addf %149, %152 : vector<16x64xf32>
    %cst_58 = arith.constant 0.000000e+00 : f32
    %154 = vector.broadcast %cst_58 : f32 to vector<16x64xf32>
    %155 = arith.maximumf %153, %154 : vector<16x64xf32>
    %156 = arith.truncf %155 : vector<16x64xf32> to vector<16x64xbf16>
    %c0_59 = arith.constant 0 : index
    %c0_60 = arith.constant 0 : index
    %c0_61 = arith.constant 0 : index
    %157 = vector.load %arg12[%c0_59, %c0_60, %c0_61] : memref<1x64x32xbf16, #tpu.memory_space<vmem>>, vector<1x64x32xbf16>
    %158 = vector.shape_cast %157 : vector<1x64x32xbf16> to vector<64x32xbf16>
    %cst_62 = arith.constant dense<0.000000e+00> : vector<16x32xf32>
    %159 = tpu.matmul %156, %158, %cst_62 {dimension_numbers = #tpu.dot_dimension_numbers<[1], [0], [0], [1], [0, 0, 1, 1], [], []>} : vector<16x64xbf16>, vector<64x32xbf16>, vector<16x32xf32> -> vector<16x32xf32>
    %c0_63 = arith.constant 0 : index
    %c0_64 = arith.constant 0 : index
    %c0_65 = arith.constant 0 : index
    %160 = vector.load %arg13[%c0_63, %c0_64, %c0_65] : memref<1x1x32xf32, #tpu.memory_space<vmem>>, vector<1x1x32xf32>
    %161 = vector.shape_cast %160 : vector<1x1x32xf32> to vector<1x32xf32>
    %162 = vector.broadcast %161 : vector<1x32xf32> to vector<16x32xf32>
    %163 = arith.addf %159, %162 : vector<16x32xf32>
    %164 = arith.addf %119, %163 : vector<16x32xf32>
    %c2_i32 = arith.constant 2 : i32
    %165 = arith.cmpi eq, %arg1, %c2_i32 : i32
    %166 = arith.extui %165 : i1 to i32
    %c0_i32_66 = arith.constant 0 : i32
    %167 = arith.cmpi ne, %166, %c0_i32_66 : i32
    scf.if %167 {
      %c0_69 = arith.constant 0 : index
      %c0_70 = arith.constant 0 : index
      %171 = vector.load %arg14[%c0_69, %c0_70] : memref<1x32xf32, #tpu.memory_space<vmem>>, vector<1x32xf32>
      %c0_71 = arith.constant 0 : index
      %c0_72 = arith.constant 0 : index
      %172 = vector.load %arg15[%c0_71, %c0_72] : memref<1x32xf32, #tpu.memory_space<vmem>>, vector<1x32xf32>
      %cst_73 = arith.constant dense<0.000000e+00> : vector<16xf32>
      %173 = vector.multi_reduction <add>, %164, %cst_73 [1] : vector<16x32xf32> to vector<16xf32>
      %174 = vector.shape_cast %173 : vector<16xf32> to vector<16x1xf32>
      %cst_74 = arith.constant 3.200000e+01 : f32
      %175 = vector.broadcast %cst_74 : f32 to vector<16x1xf32>
      %176 = arith.divf %174, %175 : vector<16x1xf32>
      %177 = vector.broadcast %176 : vector<16x1xf32> to vector<16x32xf32>
      %178 = arith.subf %164, %177 : vector<16x32xf32>
      %179 = arith.mulf %178, %178 : vector<16x32xf32>
      %cst_75 = arith.constant dense<0.000000e+00> : vector<16xf32>
      %180 = vector.multi_reduction <add>, %179, %cst_75 [1] : vector<16x32xf32> to vector<16xf32>
      %181 = vector.shape_cast %180 : vector<16xf32> to vector<16x1xf32>
      %cst_76 = arith.constant 3.200000e+01 : f32
      %182 = vector.broadcast %cst_76 : f32 to vector<16x1xf32>
      %183 = arith.divf %181, %182 : vector<16x1xf32>
      %184 = vector.broadcast %176 : vector<16x1xf32> to vector<16x32xf32>
      %185 = arith.subf %164, %184 : vector<16x32xf32>
      %cst_77 = arith.constant 9.99999997E-7 : f32
      %186 = vector.broadcast %cst_77 : f32 to vector<16x1xf32>
      %187 = arith.addf %183, %186 : vector<16x1xf32>
      %188 = math.rsqrt %187 : vector<16x1xf32>
      %189 = vector.broadcast %188 : vector<16x1xf32> to vector<16x32xf32>
      %190 = arith.mulf %185, %189 : vector<16x32xf32>
      %191 = vector.broadcast %171 : vector<1x32xf32> to vector<16x32xf32>
      %192 = arith.mulf %190, %191 : vector<16x32xf32>
      %193 = vector.broadcast %172 : vector<1x32xf32> to vector<16x32xf32>
      %194 = arith.addf %192, %193 : vector<16x32xf32>
      %195 = vector.shape_cast %194 : vector<16x32xf32> to vector<1x16x32xf32>
      %c0_78 = arith.constant 0 : index
      %c0_79 = arith.constant 0 : index
      %c0_80 = arith.constant 0 : index
      %196 = vector.load %arg16[%c0_78, %c0_79, %c0_80] : memref<1x16x32xf32, #tpu.memory_space<vmem>>, vector<1x16x32xf32>
      tpu.vector_store %arg16[%c0_78, %c0_79, %c0_80], %195 {strides = array<i32>} : memref<1x16x32xf32, #tpu.memory_space<vmem>>, vector<1x16x32xf32>,
    } else {
    }
    %c2_i32_67 = arith.constant 2 : i32
    %168 = arith.cmpi ne, %arg1, %c2_i32_67 : i32
    %169 = arith.extui %168 : i1 to i32
    %c0_i32_68 = arith.constant 0 : i32
    %170 = arith.cmpi ne, %169, %c0_i32_68 : i32
    scf.if %170 {
      %171 = vector.shape_cast %164 : vector<16x32xf32> to vector<1x16x32xf32>
      %c0_69 = arith.constant 0 : index
      %c0_70 = arith.constant 0 : index
      %c0_71 = arith.constant 0 : index
      %172 = vector.load %arg16[%c0_69, %c0_70, %c0_71] : memref<1x16x32xf32, #tpu.memory_space<vmem>>, vector<1x16x32xf32>
      tpu.vector_store %arg16[%c0_69, %c0_70, %c0_71], %171 {strides = array<i32>} : memref<1x16x32xf32, #tpu.memory_space<vmem>>, vector<1x16x32xf32>,
    } else {
    }
    return
  }
  func.func @transform_0(%arg0: i32, %arg1: i32) -> (i32, i32, i32) {
    %c0_i32 = arith.constant 0 : i32
    %c0_i32_0 = arith.constant 0 : i32
    %c0_i32_1 = arith.constant 0 : i32
    return %arg0, %c0_i32, %c0_i32_0 : i32, i32, i32
  }
  func.func @transform_1(%arg0: i32, %arg1: i32) -> (i32, i32, i32) {
    %c0_i32 = arith.constant 0 : i32
    %c0_i32_0 = arith.constant 0 : i32
    %c0_i32_1 = arith.constant 0 : i32
    return %arg0, %c0_i32, %c0_i32_0 : i32, i32, i32
  }
  func.func @transform_2(%arg0: i32, %arg1: i32) -> (i32, i32, i32) {
    %c0_i32 = arith.constant 0 : i32
    %c0_i32_0 = arith.constant 0 : i32
    %c0_i32_1 = arith.constant 0 : i32
    return %arg1, %c0_i32, %c0_i32_0 : i32, i32, i32
  }
  func.func @transform_3(%arg0: i32, %arg1: i32) -> (i32, i32, i32) {
    %c0_i32 = arith.constant 0 : i32
    %c0_i32_0 = arith.constant 0 : i32
    %c0_i32_1 = arith.constant 0 : i32
    return %arg1, %c0_i32, %c0_i32_0 : i32, i32, i32
  }
  func.func @transform_4(%arg0: i32, %arg1: i32) -> (i32, i32, i32) {
    %c0_i32 = arith.constant 0 : i32
    %c0_i32_0 = arith.constant 0 : i32
    %c0_i32_1 = arith.constant 0 : i32
    return %arg1, %c0_i32, %c0_i32_0 : i32, i32, i32
  }
  func.func @transform_5(%arg0: i32, %arg1: i32) -> (i32, i32, i32) {
    %c0_i32 = arith.constant 0 : i32
    %c0_i32_0 = arith.constant 0 : i32
    %c0_i32_1 = arith.constant 0 : i32
    return %arg1, %c0_i32, %c0_i32_0 : i32, i32, i32
  }
  func.func @transform_6(%arg0: i32, %arg1: i32) -> (i32, i32, i32) {
    %c0_i32 = arith.constant 0 : i32
    %c0_i32_0 = arith.constant 0 : i32
    %c0_i32_1 = arith.constant 0 : i32
    return %arg1, %c0_i32, %c0_i32_0 : i32, i32, i32
  }
  func.func @transform_7(%arg0: i32, %arg1: i32) -> (i32, i32, i32) {
    %c0_i32 = arith.constant 0 : i32
    %c0_i32_0 = arith.constant 0 : i32
    %c0_i32_1 = arith.constant 0 : i32
    return %arg1, %c0_i32, %c0_i32_0 : i32, i32, i32
  }
  func.func @transform_8(%arg0: i32, %arg1: i32) -> (i32, i32, i32) {
    %c0_i32 = arith.constant 0 : i32
    %c0_i32_0 = arith.constant 0 : i32
    %c0_i32_1 = arith.constant 0 : i32
    return %arg1, %c0_i32, %c0_i32_0 : i32, i32, i32
  }
  func.func @transform_9(%arg0: i32, %arg1: i32) -> (i32, i32, i32) {
    %c0_i32 = arith.constant 0 : i32
    %c0_i32_0 = arith.constant 0 : i32
    %c0_i32_1 = arith.constant 0 : i32
    return %arg1, %c0_i32, %c0_i32_0 : i32, i32, i32
  }
  func.func @transform_10(%arg0: i32, %arg1: i32) -> (i32, i32, i32) {
    %c0_i32 = arith.constant 0 : i32
    %c0_i32_0 = arith.constant 0 : i32
    %c0_i32_1 = arith.constant 0 : i32
    return %arg1, %c0_i32, %c0_i32_0 : i32, i32, i32
  }
  func.func @transform_11(%arg0: i32, %arg1: i32) -> (i32, i32, i32) {
    %c0_i32 = arith.constant 0 : i32
    %c0_i32_0 = arith.constant 0 : i32
    %c0_i32_1 = arith.constant 0 : i32
    return %arg1, %c0_i32, %c0_i32_0 : i32, i32, i32
  }
  func.func @transform_12(%arg0: i32, %arg1: i32) -> (i32, i32) {
    %c0_i32 = arith.constant 0 : i32
    %c0_i32_0 = arith.constant 0 : i32
    %c0_i32_1 = arith.constant 0 : i32
    return %c0_i32, %c0_i32_0 : i32, i32
  }
  func.func @transform_13(%arg0: i32, %arg1: i32) -> (i32, i32) {
    %c0_i32 = arith.constant 0 : i32
    %c0_i32_0 = arith.constant 0 : i32
    %c0_i32_1 = arith.constant 0 : i32
    return %c0_i32, %c0_i32_0 : i32, i32
  }
  func.func @transform_14(%arg0: i32, %arg1: i32) -> (i32, i32, i32) {
    %c0_i32 = arith.constant 0 : i32
    %c0_i32_0 = arith.constant 0 : i32
    %c0_i32_1 = arith.constant 0 : i32
    return %arg0, %c0_i32, %c0_i32_0 : i32, i32, i32
  }
}

module attributes {stable_mosaic.version = 11 : i64} {
  func.func @_decoder_kernel(%arg0: i32, %arg1: i32, %arg2: memref<1x8x32xf32, #tpu.memory_space<vmem>>, %arg3: memref<1x16x32xf32, #tpu.memory_space<vmem>>, %arg4: memref<1x1x16xf32, #tpu.memory_space<vmem>>, %arg5: memref<1x8x8xf32, #tpu.memory_space<vmem>>, %arg6: memref<1x1x32xf32, #tpu.memory_space<vmem>>, %arg7: memref<1x1x32xf32, #tpu.memory_space<vmem>>, %arg8: memref<1x32x96xbf16, #tpu.memory_space<vmem>>, %arg9: memref<1x32x32xbf16, #tpu.memory_space<vmem>>, %arg10: memref<1x1x32xf32, #tpu.memory_space<vmem>>, %arg11: memref<1x1x32xf32, #tpu.memory_space<vmem>>, %arg12: memref<1x32x32xbf16, #tpu.memory_space<vmem>>, %arg13: memref<1x32x64xbf16, #tpu.memory_space<vmem>>, %arg14: memref<1x32x32xbf16, #tpu.memory_space<vmem>>, %arg15: memref<1x1x32xf32, #tpu.memory_space<vmem>>, %arg16: memref<1x1x32xf32, #tpu.memory_space<vmem>>, %arg17: memref<1x32x64xbf16, #tpu.memory_space<vmem>>, %arg18: memref<1x1x64xf32, #tpu.memory_space<vmem>>, %arg19: memref<1x64x32xbf16, #tpu.memory_space<vmem>>, %arg20: memref<1x1x32xf32, #tpu.memory_space<vmem>>, %arg21: memref<1x32xf32, #tpu.memory_space<vmem>>, %arg22: memref<1x32xf32, #tpu.memory_space<vmem>>, %arg23: memref<1x8x32xf32, #tpu.memory_space<vmem>>) attributes {dimension_semantics = [#tpu.dimension_semantics<parallel>, #tpu.dimension_semantics<arbitrary>], iteration_bounds = array<i64: 2, 1>, scalar_prefetch = 0 : i64, scratch_operands = 0 : i64, tpu.core_type = #tpu.core_type<tc>, window_params = [{transform_indices = @transform_0, window_bounds = array<i64: 1, 8, 32>}, {transform_indices = @transform_1, window_bounds = array<i64: 1, 16, 32>}, {transform_indices = @transform_2, window_bounds = array<i64: 1, 1, 16>}, {pipeline_mode = #tpu.pipeline_mode<synchronous>, transform_indices = @transform_3, window_bounds = array<i64: 1, 8, 8>}, {transform_indices = @transform_4, window_bounds = array<i64: 1, 1, 32>}, {transform_indices = @transform_5, window_bounds = array<i64: 1, 1, 32>}, {transform_indices = @transform_6, window_bounds = array<i64: 1, 32, 96>}, {transform_indices = @transform_7, window_bounds = array<i64: 1, 32, 32>}, {transform_indices = @transform_8, window_bounds = array<i64: 1, 1, 32>}, {transform_indices = @transform_9, window_bounds = array<i64: 1, 1, 32>}, {transform_indices = @transform_10, window_bounds = array<i64: 1, 32, 32>}, {transform_indices = @transform_11, window_bounds = array<i64: 1, 32, 64>}, {transform_indices = @transform_12, window_bounds = array<i64: 1, 32, 32>}, {transform_indices = @transform_13, window_bounds = array<i64: 1, 1, 32>}, {transform_indices = @transform_14, window_bounds = array<i64: 1, 1, 32>}, {transform_indices = @transform_15, window_bounds = array<i64: 1, 32, 64>}, {transform_indices = @transform_16, window_bounds = array<i64: 1, 1, 64>}, {transform_indices = @transform_17, window_bounds = array<i64: 1, 64, 32>}, {transform_indices = @transform_18, window_bounds = array<i64: 1, 1, 32>}, {pipeline_mode = #tpu.pipeline_mode<synchronous>, transform_indices = @transform_19, window_bounds = array<i64: 1, 32>}, {pipeline_mode = #tpu.pipeline_mode<synchronous>, transform_indices = @transform_20, window_bounds = array<i64: 1, 32>}, {transform_indices = @transform_21, window_bounds = array<i64: 1, 8, 32>}]} {
    %c0_i32 = arith.constant 0 : i32
    %0 = arith.cmpi eq, %arg1, %c0_i32 : i32
    %1 = arith.extui %0 : i1 to i32
    %c0_i32_0 = arith.constant 0 : i32
    %2 = arith.cmpi ne, %1, %c0_i32_0 : i32
    scf.if %2 {
      %c0_115 = arith.constant 0 : index
      %c0_116 = arith.constant 0 : index
      %c0_117 = arith.constant 0 : index
      %292 = vector.load %arg2[%c0_115, %c0_116, %c0_117] : memref<1x8x32xf32, #tpu.memory_space<vmem>>, vector<1x8x32xf32>
      %c0_118 = arith.constant 0 : index
      %c0_119 = arith.constant 0 : index
      %c0_120 = arith.constant 0 : index
      %293 = vector.load %arg23[%c0_118, %c0_119, %c0_120] : memref<1x8x32xf32, #tpu.memory_space<vmem>>, vector<1x8x32xf32>
      tpu.vector_store %arg23[%c0_118, %c0_119, %c0_120], %292 {strides = array<i32>} : memref<1x8x32xf32, #tpu.memory_space<vmem>>, vector<1x8x32xf32>,
    } else {
    }
    %c0 = arith.constant 0 : index
    %c0_1 = arith.constant 0 : index
    %c0_2 = arith.constant 0 : index
    %3 = vector.load %arg23[%c0, %c0_1, %c0_2] : memref<1x8x32xf32, #tpu.memory_space<vmem>>, vector<1x8x32xf32>
    %4 = vector.shape_cast %3 : vector<1x8x32xf32> to vector<8x32xf32>
    %c0_3 = arith.constant 0 : index
    %c0_4 = arith.constant 0 : index
    %c0_5 = arith.constant 0 : index
    %5 = vector.load %arg5[%c0_3, %c0_4, %c0_5] : memref<1x8x8xf32, #tpu.memory_space<vmem>>, vector<1x8x8xf32>
    %6 = vector.shape_cast %5 : vector<1x8x8xf32> to vector<8x8xf32>
    %7 = vector.shape_cast %6 : vector<8x8xf32> to vector<1x8x8xf32>
    %c0_6 = arith.constant 0 : index
    %c0_7 = arith.constant 0 : index
    %c0_8 = arith.constant 0 : index
    %8 = vector.load %arg4[%c0_6, %c0_7, %c0_8] : memref<1x1x16xf32, #tpu.memory_space<vmem>>, vector<1x1x16xf32>
    %9 = vector.shape_cast %8 : vector<1x1x16xf32> to vector<1x1x16xf32>
    %10 = vector.broadcast %9 : vector<1x1x16xf32> to vector<1x8x16xf32>
    %c0_9 = arith.constant 0 : index
    %c0_10 = arith.constant 0 : index
    %c0_11 = arith.constant 0 : index
    %11 = vector.load %arg6[%c0_9, %c0_10, %c0_11] : memref<1x1x32xf32, #tpu.memory_space<vmem>>, vector<1x1x32xf32>
    %12 = vector.shape_cast %11 : vector<1x1x32xf32> to vector<1x32xf32>
    %c0_12 = arith.constant 0 : index
    %c0_13 = arith.constant 0 : index
    %c0_14 = arith.constant 0 : index
    %13 = vector.load %arg7[%c0_12, %c0_13, %c0_14] : memref<1x1x32xf32, #tpu.memory_space<vmem>>, vector<1x1x32xf32>
    %14 = vector.shape_cast %13 : vector<1x1x32xf32> to vector<1x32xf32>
    %cst = arith.constant dense<0.000000e+00> : vector<8xf32>
    %15 = vector.multi_reduction <add>, %4, %cst [1] : vector<8x32xf32> to vector<8xf32>
    %16 = vector.shape_cast %15 : vector<8xf32> to vector<8x1xf32>
    %cst_15 = arith.constant 3.200000e+01 : f32
    %17 = vector.broadcast %cst_15 : f32 to vector<8x1xf32>
    %18 = arith.divf %16, %17 : vector<8x1xf32>
    %19 = vector.broadcast %18 : vector<8x1xf32> to vector<8x32xf32>
    %20 = arith.subf %4, %19 : vector<8x32xf32>
    %21 = arith.mulf %20, %20 : vector<8x32xf32>
    %cst_16 = arith.constant dense<0.000000e+00> : vector<8xf32>
    %22 = vector.multi_reduction <add>, %21, %cst_16 [1] : vector<8x32xf32> to vector<8xf32>
    %23 = vector.shape_cast %22 : vector<8xf32> to vector<8x1xf32>
    %cst_17 = arith.constant 3.200000e+01 : f32
    %24 = vector.broadcast %cst_17 : f32 to vector<8x1xf32>
    %25 = arith.divf %23, %24 : vector<8x1xf32>
    %26 = vector.broadcast %18 : vector<8x1xf32> to vector<8x32xf32>
    %27 = arith.subf %4, %26 : vector<8x32xf32>
    %cst_18 = arith.constant 9.99999997E-7 : f32
    %28 = vector.broadcast %cst_18 : f32 to vector<8x1xf32>
    %29 = arith.addf %25, %28 : vector<8x1xf32>
    %30 = math.rsqrt %29 : vector<8x1xf32>
    %31 = vector.broadcast %30 : vector<8x1xf32> to vector<8x32xf32>
    %32 = arith.mulf %27, %31 : vector<8x32xf32>
    %33 = vector.broadcast %12 : vector<1x32xf32> to vector<8x32xf32>
    %34 = arith.mulf %32, %33 : vector<8x32xf32>
    %35 = vector.broadcast %14 : vector<1x32xf32> to vector<8x32xf32>
    %36 = arith.addf %34, %35 : vector<8x32xf32>
    %c0_19 = arith.constant 0 : index
    %c0_20 = arith.constant 0 : index
    %c0_21 = arith.constant 0 : index
    %37 = vector.load %arg8[%c0_19, %c0_20, %c0_21] : memref<1x32x96xbf16, #tpu.memory_space<vmem>>, vector<1x32x96xbf16>
    %38 = vector.shape_cast %37 : vector<1x32x96xbf16> to vector<32x96xbf16>
    %39 = arith.truncf %36 : vector<8x32xf32> to vector<8x32xbf16>
    %cst_22 = arith.constant dense<0.000000e+00> : vector<8x96xf32>
    %40 = tpu.matmul %39, %38, %cst_22 {dimension_numbers = #tpu.dot_dimension_numbers<[1], [0], [0], [1], [0, 0, 1, 1], [], []>} : vector<8x32xbf16>, vector<32x96xbf16>, vector<8x96xf32> -> vector<8x96xf32>
    %41 = vector.shape_cast %40 : vector<8x96xf32> to vector<1x8x96xf32>
    %42 = vector.extract_strided_slice %41 {offsets = [0, 0, 0], sizes = [1, 8, 32], strides = [1, 1, 1]} : vector<1x8x96xf32> to vector<1x8x32xf32>
    %43 = vector.extract_strided_slice %41 {offsets = [0, 0, 32], sizes = [1, 8, 32], strides = [1, 1, 1]} : vector<1x8x96xf32> to vector<1x8x32xf32>
    %44 = vector.extract_strided_slice %41 {offsets = [0, 0, 64], sizes = [1, 8, 32], strides = [1, 1, 1]} : vector<1x8x96xf32> to vector<1x8x32xf32>
    %45 = arith.truncf %42 : vector<1x8x32xf32> to vector<1x8x32xbf16>
    %46 = arith.truncf %43 : vector<1x8x32xf32> to vector<1x8x32xbf16>
    %47 = arith.truncf %44 : vector<1x8x32xf32> to vector<1x8x32xbf16>
    %48 = vector.extract_strided_slice %45 {offsets = [0, 0, 0], sizes = [1, 8, 8], strides = [1, 1, 1]} : vector<1x8x32xbf16> to vector<1x8x8xbf16>
    %49 = vector.extract_strided_slice %46 {offsets = [0, 0, 0], sizes = [1, 8, 8], strides = [1, 1, 1]} : vector<1x8x32xbf16> to vector<1x8x8xbf16>
    %cst_23 = arith.constant dense<0.000000e+00> : vector<1x8x8xf32>
    %50 = tpu.matmul %48, %49, %cst_23 {dimension_numbers = #tpu.dot_dimension_numbers<[2], [2], [1], [1], [0, 0, 0, 1, 1, 1], [0], [0]>} : vector<1x8x8xbf16>, vector<1x8x8xbf16>, vector<1x8x8xf32> -> vector<1x8x8xf32>
    %51 = arith.addf %50, %7 : vector<1x8x8xf32>
    %cst_24 = arith.constant dense<0xFF800000> : vector<1x8xf32>
    %52 = vector.multi_reduction <maximumf>, %51, %cst_24 [2] : vector<1x8x8xf32> to vector<1x8xf32>
    %53 = vector.shape_cast %52 : vector<1x8xf32> to vector<1x8x1xf32>
    %54 = vector.broadcast %53 : vector<1x8x1xf32> to vector<1x8x8xf32>
    %55 = arith.subf %51, %54 : vector<1x8x8xf32>
    %56 = math.exp %55 : vector<1x8x8xf32>
    %cst_25 = arith.constant dense<0.000000e+00> : vector<1x8xf32>
    %57 = vector.multi_reduction <add>, %56, %cst_25 [2] : vector<1x8x8xf32> to vector<1x8xf32>
    %58 = vector.shape_cast %57 : vector<1x8xf32> to vector<1x8x1xf32>
    %59 = tpu.reciprocal %58 {approx = true} : vector<1x8x1xf32> -> vector<1x8x1xf32>
    %60 = vector.broadcast %59 : vector<1x8x1xf32> to vector<1x8x8xf32>
    %61 = arith.mulf %56, %60 : vector<1x8x8xf32>
    %62 = arith.truncf %61 : vector<1x8x8xf32> to vector<1x8x8xbf16>
    %63 = vector.extract_strided_slice %47 {offsets = [0, 0, 0], sizes = [1, 8, 8], strides = [1, 1, 1]} : vector<1x8x32xbf16> to vector<1x8x8xbf16>
    %cst_26 = arith.constant dense<0.000000e+00> : vector<1x8x8xf32>
    %64 = tpu.matmul %62, %63, %cst_26 {dimension_numbers = #tpu.dot_dimension_numbers<[2], [1], [1], [2], [0, 0, 0, 1, 1, 2], [0], [0]>} : vector<1x8x8xbf16>, vector<1x8x8xbf16>, vector<1x8x8xf32> -> vector<1x8x8xf32>
    %65 = vector.extract_strided_slice %45 {offsets = [0, 0, 8], sizes = [1, 8, 8], strides = [1, 1, 1]} : vector<1x8x32xbf16> to vector<1x8x8xbf16>
    %66 = vector.extract_strided_slice %46 {offsets = [0, 0, 8], sizes = [1, 8, 8], strides = [1, 1, 1]} : vector<1x8x32xbf16> to vector<1x8x8xbf16>
    %cst_27 = arith.constant dense<0.000000e+00> : vector<1x8x8xf32>
    %67 = tpu.matmul %65, %66, %cst_27 {dimension_numbers = #tpu.dot_dimension_numbers<[2], [2], [1], [1], [0, 0, 0, 1, 1, 1], [0], [0]>} : vector<1x8x8xbf16>, vector<1x8x8xbf16>, vector<1x8x8xf32> -> vector<1x8x8xf32>
    %68 = arith.addf %67, %7 : vector<1x8x8xf32>
    %cst_28 = arith.constant dense<0xFF800000> : vector<1x8xf32>
    %69 = vector.multi_reduction <maximumf>, %68, %cst_28 [2] : vector<1x8x8xf32> to vector<1x8xf32>
    %70 = vector.shape_cast %69 : vector<1x8xf32> to vector<1x8x1xf32>
    %71 = vector.broadcast %70 : vector<1x8x1xf32> to vector<1x8x8xf32>
    %72 = arith.subf %68, %71 : vector<1x8x8xf32>
    %73 = math.exp %72 : vector<1x8x8xf32>
    %cst_29 = arith.constant dense<0.000000e+00> : vector<1x8xf32>
    %74 = vector.multi_reduction <add>, %73, %cst_29 [2] : vector<1x8x8xf32> to vector<1x8xf32>
    %75 = vector.shape_cast %74 : vector<1x8xf32> to vector<1x8x1xf32>
    %76 = tpu.reciprocal %75 {approx = true} : vector<1x8x1xf32> -> vector<1x8x1xf32>
    %77 = vector.broadcast %76 : vector<1x8x1xf32> to vector<1x8x8xf32>
    %78 = arith.mulf %73, %77 : vector<1x8x8xf32>
    %79 = arith.truncf %78 : vector<1x8x8xf32> to vector<1x8x8xbf16>
    %80 = vector.extract_strided_slice %47 {offsets = [0, 0, 8], sizes = [1, 8, 8], strides = [1, 1, 1]} : vector<1x8x32xbf16> to vector<1x8x8xbf16>
    %cst_30 = arith.constant dense<0.000000e+00> : vector<1x8x8xf32>
    %81 = tpu.matmul %79, %80, %cst_30 {dimension_numbers = #tpu.dot_dimension_numbers<[2], [1], [1], [2], [0, 0, 0, 1, 1, 2], [0], [0]>} : vector<1x8x8xbf16>, vector<1x8x8xbf16>, vector<1x8x8xf32> -> vector<1x8x8xf32>
    %82 = vector.extract_strided_slice %45 {offsets = [0, 0, 16], sizes = [1, 8, 8], strides = [1, 1, 1]} : vector<1x8x32xbf16> to vector<1x8x8xbf16>
    %83 = vector.extract_strided_slice %46 {offsets = [0, 0, 16], sizes = [1, 8, 8], strides = [1, 1, 1]} : vector<1x8x32xbf16> to vector<1x8x8xbf16>
    %cst_31 = arith.constant dense<0.000000e+00> : vector<1x8x8xf32>
    %84 = tpu.matmul %82, %83, %cst_31 {dimension_numbers = #tpu.dot_dimension_numbers<[2], [2], [1], [1], [0, 0, 0, 1, 1, 1], [0], [0]>} : vector<1x8x8xbf16>, vector<1x8x8xbf16>, vector<1x8x8xf32> -> vector<1x8x8xf32>
    %85 = arith.addf %84, %7 : vector<1x8x8xf32>
    %cst_32 = arith.constant dense<0xFF800000> : vector<1x8xf32>
    %86 = vector.multi_reduction <maximumf>, %85, %cst_32 [2] : vector<1x8x8xf32> to vector<1x8xf32>
    %87 = vector.shape_cast %86 : vector<1x8xf32> to vector<1x8x1xf32>
    %88 = vector.broadcast %87 : vector<1x8x1xf32> to vector<1x8x8xf32>
    %89 = arith.subf %85, %88 : vector<1x8x8xf32>
    %90 = math.exp %89 : vector<1x8x8xf32>
    %cst_33 = arith.constant dense<0.000000e+00> : vector<1x8xf32>
    %91 = vector.multi_reduction <add>, %90, %cst_33 [2] : vector<1x8x8xf32> to vector<1x8xf32>
    %92 = vector.shape_cast %91 : vector<1x8xf32> to vector<1x8x1xf32>
    %93 = tpu.reciprocal %92 {approx = true} : vector<1x8x1xf32> -> vector<1x8x1xf32>
    %94 = vector.broadcast %93 : vector<1x8x1xf32> to vector<1x8x8xf32>
    %95 = arith.mulf %90, %94 : vector<1x8x8xf32>
    %96 = arith.truncf %95 : vector<1x8x8xf32> to vector<1x8x8xbf16>
    %97 = vector.extract_strided_slice %47 {offsets = [0, 0, 16], sizes = [1, 8, 8], strides = [1, 1, 1]} : vector<1x8x32xbf16> to vector<1x8x8xbf16>
    %cst_34 = arith.constant dense<0.000000e+00> : vector<1x8x8xf32>
    %98 = tpu.matmul %96, %97, %cst_34 {dimension_numbers = #tpu.dot_dimension_numbers<[2], [1], [1], [2], [0, 0, 0, 1, 1, 2], [0], [0]>} : vector<1x8x8xbf16>, vector<1x8x8xbf16>, vector<1x8x8xf32> -> vector<1x8x8xf32>
    %99 = vector.extract_strided_slice %45 {offsets = [0, 0, 24], sizes = [1, 8, 8], strides = [1, 1, 1]} : vector<1x8x32xbf16> to vector<1x8x8xbf16>
    %100 = vector.extract_strided_slice %46 {offsets = [0, 0, 24], sizes = [1, 8, 8], strides = [1, 1, 1]} : vector<1x8x32xbf16> to vector<1x8x8xbf16>
    %cst_35 = arith.constant dense<0.000000e+00> : vector<1x8x8xf32>
    %101 = tpu.matmul %99, %100, %cst_35 {dimension_numbers = #tpu.dot_dimension_numbers<[2], [2], [1], [1], [0, 0, 0, 1, 1, 1], [0], [0]>} : vector<1x8x8xbf16>, vector<1x8x8xbf16>, vector<1x8x8xf32> -> vector<1x8x8xf32>
    %102 = arith.addf %101, %7 : vector<1x8x8xf32>
    %cst_36 = arith.constant dense<0xFF800000> : vector<1x8xf32>
    %103 = vector.multi_reduction <maximumf>, %102, %cst_36 [2] : vector<1x8x8xf32> to vector<1x8xf32>
    %104 = vector.shape_cast %103 : vector<1x8xf32> to vector<1x8x1xf32>
    %105 = vector.broadcast %104 : vector<1x8x1xf32> to vector<1x8x8xf32>
    %106 = arith.subf %102, %105 : vector<1x8x8xf32>
    %107 = math.exp %106 : vector<1x8x8xf32>
    %cst_37 = arith.constant dense<0.000000e+00> : vector<1x8xf32>
    %108 = vector.multi_reduction <add>, %107, %cst_37 [2] : vector<1x8x8xf32> to vector<1x8xf32>
    %109 = vector.shape_cast %108 : vector<1x8xf32> to vector<1x8x1xf32>
    %110 = tpu.reciprocal %109 {approx = true} : vector<1x8x1xf32> -> vector<1x8x1xf32>
    %111 = vector.broadcast %110 : vector<1x8x1xf32> to vector<1x8x8xf32>
    %112 = arith.mulf %107, %111 : vector<1x8x8xf32>
    %113 = arith.truncf %112 : vector<1x8x8xf32> to vector<1x8x8xbf16>
    %114 = vector.extract_strided_slice %47 {offsets = [0, 0, 24], sizes = [1, 8, 8], strides = [1, 1, 1]} : vector<1x8x32xbf16> to vector<1x8x8xbf16>
    %cst_38 = arith.constant dense<0.000000e+00> : vector<1x8x8xf32>
    %115 = tpu.matmul %113, %114, %cst_38 {dimension_numbers = #tpu.dot_dimension_numbers<[2], [1], [1], [2], [0, 0, 0, 1, 1, 2], [0], [0]>} : vector<1x8x8xbf16>, vector<1x8x8xbf16>, vector<1x8x8xf32> -> vector<1x8x8xf32>
    %116 = tpu.concatenate %64, %81, %98, %115 in 2 : vector<1x8x8xf32>, vector<1x8x8xf32>, vector<1x8x8xf32>, vector<1x8x8xf32> -> vector<1x8x32xf32>
    %117 = vector.shape_cast %116 : vector<1x8x32xf32> to vector<8x32xf32>
    %c0_39 = arith.constant 0 : index
    %c0_40 = arith.constant 0 : index
    %c0_41 = arith.constant 0 : index
    %118 = vector.load %arg9[%c0_39, %c0_40, %c0_41] : memref<1x32x32xbf16, #tpu.memory_space<vmem>>, vector<1x32x32xbf16>
    %119 = vector.shape_cast %118 : vector<1x32x32xbf16> to vector<32x32xbf16>
    %120 = arith.truncf %117 : vector<8x32xf32> to vector<8x32xbf16>
    %cst_42 = arith.constant dense<0.000000e+00> : vector<8x32xf32>
    %121 = tpu.matmul %120, %119, %cst_42 {dimension_numbers = #tpu.dot_dimension_numbers<[1], [0], [0], [1], [0, 0, 1, 1], [], []>} : vector<8x32xbf16>, vector<32x32xbf16>, vector<8x32xf32> -> vector<8x32xf32>
    %122 = arith.addf %4, %121 : vector<8x32xf32>
    %c0_43 = arith.constant 0 : index
    %c0_44 = arith.constant 0 : index
    %c0_45 = arith.constant 0 : index
    %123 = vector.load %arg10[%c0_43, %c0_44, %c0_45] : memref<1x1x32xf32, #tpu.memory_space<vmem>>, vector<1x1x32xf32>
    %124 = vector.shape_cast %123 : vector<1x1x32xf32> to vector<1x32xf32>
    %c0_46 = arith.constant 0 : index
    %c0_47 = arith.constant 0 : index
    %c0_48 = arith.constant 0 : index
    %125 = vector.load %arg11[%c0_46, %c0_47, %c0_48] : memref<1x1x32xf32, #tpu.memory_space<vmem>>, vector<1x1x32xf32>
    %126 = vector.shape_cast %125 : vector<1x1x32xf32> to vector<1x32xf32>
    %cst_49 = arith.constant dense<0.000000e+00> : vector<8xf32>
    %127 = vector.multi_reduction <add>, %122, %cst_49 [1] : vector<8x32xf32> to vector<8xf32>
    %128 = vector.shape_cast %127 : vector<8xf32> to vector<8x1xf32>
    %cst_50 = arith.constant 3.200000e+01 : f32
    %129 = vector.broadcast %cst_50 : f32 to vector<8x1xf32>
    %130 = arith.divf %128, %129 : vector<8x1xf32>
    %131 = vector.broadcast %130 : vector<8x1xf32> to vector<8x32xf32>
    %132 = arith.subf %122, %131 : vector<8x32xf32>
    %133 = arith.mulf %132, %132 : vector<8x32xf32>
    %cst_51 = arith.constant dense<0.000000e+00> : vector<8xf32>
    %134 = vector.multi_reduction <add>, %133, %cst_51 [1] : vector<8x32xf32> to vector<8xf32>
    %135 = vector.shape_cast %134 : vector<8xf32> to vector<8x1xf32>
    %cst_52 = arith.constant 3.200000e+01 : f32
    %136 = vector.broadcast %cst_52 : f32 to vector<8x1xf32>
    %137 = arith.divf %135, %136 : vector<8x1xf32>
    %138 = vector.broadcast %130 : vector<8x1xf32> to vector<8x32xf32>
    %139 = arith.subf %122, %138 : vector<8x32xf32>
    %cst_53 = arith.constant 9.99999997E-7 : f32
    %140 = vector.broadcast %cst_53 : f32 to vector<8x1xf32>
    %141 = arith.addf %137, %140 : vector<8x1xf32>
    %142 = math.rsqrt %141 : vector<8x1xf32>
    %143 = vector.broadcast %142 : vector<8x1xf32> to vector<8x32xf32>
    %144 = arith.mulf %139, %143 : vector<8x32xf32>
    %145 = vector.broadcast %124 : vector<1x32xf32> to vector<8x32xf32>
    %146 = arith.mulf %144, %145 : vector<8x32xf32>
    %147 = vector.broadcast %126 : vector<1x32xf32> to vector<8x32xf32>
    %148 = arith.addf %146, %147 : vector<8x32xf32>
    %c0_54 = arith.constant 0 : index
    %c0_55 = arith.constant 0 : index
    %c0_56 = arith.constant 0 : index
    %149 = vector.load %arg12[%c0_54, %c0_55, %c0_56] : memref<1x32x32xbf16, #tpu.memory_space<vmem>>, vector<1x32x32xbf16>
    %150 = vector.shape_cast %149 : vector<1x32x32xbf16> to vector<32x32xbf16>
    %151 = arith.truncf %148 : vector<8x32xf32> to vector<8x32xbf16>
    %cst_57 = arith.constant dense<0.000000e+00> : vector<8x32xf32>
    %152 = tpu.matmul %151, %150, %cst_57 {dimension_numbers = #tpu.dot_dimension_numbers<[1], [0], [0], [1], [0, 0, 1, 1], [], []>} : vector<8x32xbf16>, vector<32x32xbf16>, vector<8x32xf32> -> vector<8x32xf32>
    %153 = vector.shape_cast %152 : vector<8x32xf32> to vector<1x8x32xf32>
    %c0_58 = arith.constant 0 : index
    %c0_59 = arith.constant 0 : index
    %c0_60 = arith.constant 0 : index
    %154 = vector.load %arg3[%c0_58, %c0_59, %c0_60] : memref<1x16x32xf32, #tpu.memory_space<vmem>>, vector<1x16x32xf32>
    %155 = vector.shape_cast %154 : vector<1x16x32xf32> to vector<16x32xf32>
    %c0_61 = arith.constant 0 : index
    %c0_62 = arith.constant 0 : index
    %c0_63 = arith.constant 0 : index
    %156 = vector.load %arg13[%c0_61, %c0_62, %c0_63] : memref<1x32x64xbf16, #tpu.memory_space<vmem>>, vector<1x32x64xbf16>
    %157 = vector.shape_cast %156 : vector<1x32x64xbf16> to vector<32x64xbf16>
    %158 = arith.truncf %155 : vector<16x32xf32> to vector<16x32xbf16>
    %cst_64 = arith.constant dense<0.000000e+00> : vector<16x64xf32>
    %159 = tpu.matmul %158, %157, %cst_64 {dimension_numbers = #tpu.dot_dimension_numbers<[1], [0], [0], [1], [0, 0, 1, 1], [], []>} : vector<16x32xbf16>, vector<32x64xbf16>, vector<16x64xf32> -> vector<16x64xf32>
    %160 = vector.shape_cast %159 : vector<16x64xf32> to vector<1x16x64xf32>
    %161 = vector.extract_strided_slice %160 {offsets = [0, 0, 0], sizes = [1, 16, 32], strides = [1, 1, 1]} : vector<1x16x64xf32> to vector<1x16x32xf32>
    %162 = vector.extract_strided_slice %160 {offsets = [0, 0, 32], sizes = [1, 16, 32], strides = [1, 1, 1]} : vector<1x16x64xf32> to vector<1x16x32xf32>
    %163 = arith.truncf %153 : vector<1x8x32xf32> to vector<1x8x32xbf16>
    %164 = arith.truncf %161 : vector<1x16x32xf32> to vector<1x16x32xbf16>
    %165 = arith.truncf %162 : vector<1x16x32xf32> to vector<1x16x32xbf16>
    %166 = vector.extract_strided_slice %163 {offsets = [0, 0, 0], sizes = [1, 8, 8], strides = [1, 1, 1]} : vector<1x8x32xbf16> to vector<1x8x8xbf16>
    %167 = vector.extract_strided_slice %164 {offsets = [0, 0, 0], sizes = [1, 16, 8], strides = [1, 1, 1]} : vector<1x16x32xbf16> to vector<1x16x8xbf16>
    %cst_65 = arith.constant dense<0.000000e+00> : vector<1x8x16xf32>
    %168 = tpu.matmul %166, %167, %cst_65 {dimension_numbers = #tpu.dot_dimension_numbers<[2], [2], [1], [1], [0, 0, 0, 1, 1, 1], [0], [0]>} : vector<1x8x8xbf16>, vector<1x16x8xbf16>, vector<1x8x16xf32> -> vector<1x8x16xf32>
    %169 = arith.addf %168, %10 : vector<1x8x16xf32>
    %cst_66 = arith.constant dense<0xFF800000> : vector<1x8xf32>
    %170 = vector.multi_reduction <maximumf>, %169, %cst_66 [2] : vector<1x8x16xf32> to vector<1x8xf32>
    %171 = vector.shape_cast %170 : vector<1x8xf32> to vector<1x8x1xf32>
    %172 = vector.broadcast %171 : vector<1x8x1xf32> to vector<1x8x16xf32>
    %173 = arith.subf %169, %172 : vector<1x8x16xf32>
    %174 = math.exp %173 : vector<1x8x16xf32>
    %cst_67 = arith.constant dense<0.000000e+00> : vector<1x8xf32>
    %175 = vector.multi_reduction <add>, %174, %cst_67 [2] : vector<1x8x16xf32> to vector<1x8xf32>
    %176 = vector.shape_cast %175 : vector<1x8xf32> to vector<1x8x1xf32>
    %177 = tpu.reciprocal %176 {approx = true} : vector<1x8x1xf32> -> vector<1x8x1xf32>
    %178 = vector.broadcast %177 : vector<1x8x1xf32> to vector<1x8x16xf32>
    %179 = arith.mulf %174, %178 : vector<1x8x16xf32>
    %180 = arith.truncf %179 : vector<1x8x16xf32> to vector<1x8x16xbf16>
    %181 = vector.extract_strided_slice %165 {offsets = [0, 0, 0], sizes = [1, 16, 8], strides = [1, 1, 1]} : vector<1x16x32xbf16> to vector<1x16x8xbf16>
    %cst_68 = arith.constant dense<0.000000e+00> : vector<1x8x8xf32>
    %182 = tpu.matmul %180, %181, %cst_68 {dimension_numbers = #tpu.dot_dimension_numbers<[2], [1], [1], [2], [0, 0, 0, 1, 1, 2], [0], [0]>} : vector<1x8x16xbf16>, vector<1x16x8xbf16>, vector<1x8x8xf32> -> vector<1x8x8xf32>
    %183 = vector.extract_strided_slice %163 {offsets = [0, 0, 8], sizes = [1, 8, 8], strides = [1, 1, 1]} : vector<1x8x32xbf16> to vector<1x8x8xbf16>
    %184 = vector.extract_strided_slice %164 {offsets = [0, 0, 8], sizes = [1, 16, 8], strides = [1, 1, 1]} : vector<1x16x32xbf16> to vector<1x16x8xbf16>
    %cst_69 = arith.constant dense<0.000000e+00> : vector<1x8x16xf32>
    %185 = tpu.matmul %183, %184, %cst_69 {dimension_numbers = #tpu.dot_dimension_numbers<[2], [2], [1], [1], [0, 0, 0, 1, 1, 1], [0], [0]>} : vector<1x8x8xbf16>, vector<1x16x8xbf16>, vector<1x8x16xf32> -> vector<1x8x16xf32>
    %186 = arith.addf %185, %10 : vector<1x8x16xf32>
    %cst_70 = arith.constant dense<0xFF800000> : vector<1x8xf32>
    %187 = vector.multi_reduction <maximumf>, %186, %cst_70 [2] : vector<1x8x16xf32> to vector<1x8xf32>
    %188 = vector.shape_cast %187 : vector<1x8xf32> to vector<1x8x1xf32>
    %189 = vector.broadcast %188 : vector<1x8x1xf32> to vector<1x8x16xf32>
    %190 = arith.subf %186, %189 : vector<1x8x16xf32>
    %191 = math.exp %190 : vector<1x8x16xf32>
    %cst_71 = arith.constant dense<0.000000e+00> : vector<1x8xf32>
    %192 = vector.multi_reduction <add>, %191, %cst_71 [2] : vector<1x8x16xf32> to vector<1x8xf32>
    %193 = vector.shape_cast %192 : vector<1x8xf32> to vector<1x8x1xf32>
    %194 = tpu.reciprocal %193 {approx = true} : vector<1x8x1xf32> -> vector<1x8x1xf32>
    %195 = vector.broadcast %194 : vector<1x8x1xf32> to vector<1x8x16xf32>
    %196 = arith.mulf %191, %195 : vector<1x8x16xf32>
    %197 = arith.truncf %196 : vector<1x8x16xf32> to vector<1x8x16xbf16>
    %198 = vector.extract_strided_slice %165 {offsets = [0, 0, 8], sizes = [1, 16, 8], strides = [1, 1, 1]} : vector<1x16x32xbf16> to vector<1x16x8xbf16>
    %cst_72 = arith.constant dense<0.000000e+00> : vector<1x8x8xf32>
    %199 = tpu.matmul %197, %198, %cst_72 {dimension_numbers = #tpu.dot_dimension_numbers<[2], [1], [1], [2], [0, 0, 0, 1, 1, 2], [0], [0]>} : vector<1x8x16xbf16>, vector<1x16x8xbf16>, vector<1x8x8xf32> -> vector<1x8x8xf32>
    %200 = vector.extract_strided_slice %163 {offsets = [0, 0, 16], sizes = [1, 8, 8], strides = [1, 1, 1]} : vector<1x8x32xbf16> to vector<1x8x8xbf16>
    %201 = vector.extract_strided_slice %164 {offsets = [0, 0, 16], sizes = [1, 16, 8], strides = [1, 1, 1]} : vector<1x16x32xbf16> to vector<1x16x8xbf16>
    %cst_73 = arith.constant dense<0.000000e+00> : vector<1x8x16xf32>
    %202 = tpu.matmul %200, %201, %cst_73 {dimension_numbers = #tpu.dot_dimension_numbers<[2], [2], [1], [1], [0, 0, 0, 1, 1, 1], [0], [0]>} : vector<1x8x8xbf16>, vector<1x16x8xbf16>, vector<1x8x16xf32> -> vector<1x8x16xf32>
    %203 = arith.addf %202, %10 : vector<1x8x16xf32>
    %cst_74 = arith.constant dense<0xFF800000> : vector<1x8xf32>
    %204 = vector.multi_reduction <maximumf>, %203, %cst_74 [2] : vector<1x8x16xf32> to vector<1x8xf32>
    %205 = vector.shape_cast %204 : vector<1x8xf32> to vector<1x8x1xf32>
    %206 = vector.broadcast %205 : vector<1x8x1xf32> to vector<1x8x16xf32>
    %207 = arith.subf %203, %206 : vector<1x8x16xf32>
    %208 = math.exp %207 : vector<1x8x16xf32>
    %cst_75 = arith.constant dense<0.000000e+00> : vector<1x8xf32>
    %209 = vector.multi_reduction <add>, %208, %cst_75 [2] : vector<1x8x16xf32> to vector<1x8xf32>
    %210 = vector.shape_cast %209 : vector<1x8xf32> to vector<1x8x1xf32>
    %211 = tpu.reciprocal %210 {approx = true} : vector<1x8x1xf32> -> vector<1x8x1xf32>
    %212 = vector.broadcast %211 : vector<1x8x1xf32> to vector<1x8x16xf32>
    %213 = arith.mulf %208, %212 : vector<1x8x16xf32>
    %214 = arith.truncf %213 : vector<1x8x16xf32> to vector<1x8x16xbf16>
    %215 = vector.extract_strided_slice %165 {offsets = [0, 0, 16], sizes = [1, 16, 8], strides = [1, 1, 1]} : vector<1x16x32xbf16> to vector<1x16x8xbf16>
    %cst_76 = arith.constant dense<0.000000e+00> : vector<1x8x8xf32>
    %216 = tpu.matmul %214, %215, %cst_76 {dimension_numbers = #tpu.dot_dimension_numbers<[2], [1], [1], [2], [0, 0, 0, 1, 1, 2], [0], [0]>} : vector<1x8x16xbf16>, vector<1x16x8xbf16>, vector<1x8x8xf32> -> vector<1x8x8xf32>
    %217 = vector.extract_strided_slice %163 {offsets = [0, 0, 24], sizes = [1, 8, 8], strides = [1, 1, 1]} : vector<1x8x32xbf16> to vector<1x8x8xbf16>
    %218 = vector.extract_strided_slice %164 {offsets = [0, 0, 24], sizes = [1, 16, 8], strides = [1, 1, 1]} : vector<1x16x32xbf16> to vector<1x16x8xbf16>
    %cst_77 = arith.constant dense<0.000000e+00> : vector<1x8x16xf32>
    %219 = tpu.matmul %217, %218, %cst_77 {dimension_numbers = #tpu.dot_dimension_numbers<[2], [2], [1], [1], [0, 0, 0, 1, 1, 1], [0], [0]>} : vector<1x8x8xbf16>, vector<1x16x8xbf16>, vector<1x8x16xf32> -> vector<1x8x16xf32>
    %220 = arith.addf %219, %10 : vector<1x8x16xf32>
    %cst_78 = arith.constant dense<0xFF800000> : vector<1x8xf32>
    %221 = vector.multi_reduction <maximumf>, %220, %cst_78 [2] : vector<1x8x16xf32> to vector<1x8xf32>
    %222 = vector.shape_cast %221 : vector<1x8xf32> to vector<1x8x1xf32>
    %223 = vector.broadcast %222 : vector<1x8x1xf32> to vector<1x8x16xf32>
    %224 = arith.subf %220, %223 : vector<1x8x16xf32>
    %225 = math.exp %224 : vector<1x8x16xf32>
    %cst_79 = arith.constant dense<0.000000e+00> : vector<1x8xf32>
    %226 = vector.multi_reduction <add>, %225, %cst_79 [2] : vector<1x8x16xf32> to vector<1x8xf32>
    %227 = vector.shape_cast %226 : vector<1x8xf32> to vector<1x8x1xf32>
    %228 = tpu.reciprocal %227 {approx = true} : vector<1x8x1xf32> -> vector<1x8x1xf32>
    %229 = vector.broadcast %228 : vector<1x8x1xf32> to vector<1x8x16xf32>
    %230 = arith.mulf %225, %229 : vector<1x8x16xf32>
    %231 = arith.truncf %230 : vector<1x8x16xf32> to vector<1x8x16xbf16>
    %232 = vector.extract_strided_slice %165 {offsets = [0, 0, 24], sizes = [1, 16, 8], strides = [1, 1, 1]} : vector<1x16x32xbf16> to vector<1x16x8xbf16>
    %cst_80 = arith.constant dense<0.000000e+00> : vector<1x8x8xf32>
    %233 = tpu.matmul %231, %232, %cst_80 {dimension_numbers = #tpu.dot_dimension_numbers<[2], [1], [1], [2], [0, 0, 0, 1, 1, 2], [0], [0]>} : vector<1x8x16xbf16>, vector<1x16x8xbf16>, vector<1x8x8xf32> -> vector<1x8x8xf32>
    %234 = tpu.concatenate %182, %199, %216, %233 in 2 : vector<1x8x8xf32>, vector<1x8x8xf32>, vector<1x8x8xf32>, vector<1x8x8xf32> -> vector<1x8x32xf32>
    %235 = vector.shape_cast %234 : vector<1x8x32xf32> to vector<8x32xf32>
    %c0_81 = arith.constant 0 : index
    %c0_82 = arith.constant 0 : index
    %c0_83 = arith.constant 0 : index
    %236 = vector.load %arg14[%c0_81, %c0_82, %c0_83] : memref<1x32x32xbf16, #tpu.memory_space<vmem>>, vector<1x32x32xbf16>
    %237 = vector.shape_cast %236 : vector<1x32x32xbf16> to vector<32x32xbf16>
    %238 = arith.truncf %235 : vector<8x32xf32> to vector<8x32xbf16>
    %cst_84 = arith.constant dense<0.000000e+00> : vector<8x32xf32>
    %239 = tpu.matmul %238, %237, %cst_84 {dimension_numbers = #tpu.dot_dimension_numbers<[1], [0], [0], [1], [0, 0, 1, 1], [], []>} : vector<8x32xbf16>, vector<32x32xbf16>, vector<8x32xf32> -> vector<8x32xf32>
    %240 = arith.addf %122, %239 : vector<8x32xf32>
    %c0_85 = arith.constant 0 : index
    %c0_86 = arith.constant 0 : index
    %c0_87 = arith.constant 0 : index
    %241 = vector.load %arg15[%c0_85, %c0_86, %c0_87] : memref<1x1x32xf32, #tpu.memory_space<vmem>>, vector<1x1x32xf32>
    %242 = vector.shape_cast %241 : vector<1x1x32xf32> to vector<1x32xf32>
    %c0_88 = arith.constant 0 : index
    %c0_89 = arith.constant 0 : index
    %c0_90 = arith.constant 0 : index
    %243 = vector.load %arg16[%c0_88, %c0_89, %c0_90] : memref<1x1x32xf32, #tpu.memory_space<vmem>>, vector<1x1x32xf32>
    %244 = vector.shape_cast %243 : vector<1x1x32xf32> to vector<1x32xf32>
    %cst_91 = arith.constant dense<0.000000e+00> : vector<8xf32>
    %245 = vector.multi_reduction <add>, %240, %cst_91 [1] : vector<8x32xf32> to vector<8xf32>
    %246 = vector.shape_cast %245 : vector<8xf32> to vector<8x1xf32>
    %cst_92 = arith.constant 3.200000e+01 : f32
    %247 = vector.broadcast %cst_92 : f32 to vector<8x1xf32>
    %248 = arith.divf %246, %247 : vector<8x1xf32>
    %249 = vector.broadcast %248 : vector<8x1xf32> to vector<8x32xf32>
    %250 = arith.subf %240, %249 : vector<8x32xf32>
    %251 = arith.mulf %250, %250 : vector<8x32xf32>
    %cst_93 = arith.constant dense<0.000000e+00> : vector<8xf32>
    %252 = vector.multi_reduction <add>, %251, %cst_93 [1] : vector<8x32xf32> to vector<8xf32>
    %253 = vector.shape_cast %252 : vector<8xf32> to vector<8x1xf32>
    %cst_94 = arith.constant 3.200000e+01 : f32
    %254 = vector.broadcast %cst_94 : f32 to vector<8x1xf32>
    %255 = arith.divf %253, %254 : vector<8x1xf32>
    %256 = vector.broadcast %248 : vector<8x1xf32> to vector<8x32xf32>
    %257 = arith.subf %240, %256 : vector<8x32xf32>
    %cst_95 = arith.constant 9.99999997E-7 : f32
    %258 = vector.broadcast %cst_95 : f32 to vector<8x1xf32>
    %259 = arith.addf %255, %258 : vector<8x1xf32>
    %260 = math.rsqrt %259 : vector<8x1xf32>
    %261 = vector.broadcast %260 : vector<8x1xf32> to vector<8x32xf32>
    %262 = arith.mulf %257, %261 : vector<8x32xf32>
    %263 = vector.broadcast %242 : vector<1x32xf32> to vector<8x32xf32>
    %264 = arith.mulf %262, %263 : vector<8x32xf32>
    %265 = vector.broadcast %244 : vector<1x32xf32> to vector<8x32xf32>
    %266 = arith.addf %264, %265 : vector<8x32xf32>
    %c0_96 = arith.constant 0 : index
    %c0_97 = arith.constant 0 : index
    %c0_98 = arith.constant 0 : index
    %267 = vector.load %arg17[%c0_96, %c0_97, %c0_98] : memref<1x32x64xbf16, #tpu.memory_space<vmem>>, vector<1x32x64xbf16>
    %268 = vector.shape_cast %267 : vector<1x32x64xbf16> to vector<32x64xbf16>
    %269 = arith.truncf %266 : vector<8x32xf32> to vector<8x32xbf16>
    %cst_99 = arith.constant dense<0.000000e+00> : vector<8x64xf32>
    %270 = tpu.matmul %269, %268, %cst_99 {dimension_numbers = #tpu.dot_dimension_numbers<[1], [0], [0], [1], [0, 0, 1, 1], [], []>} : vector<8x32xbf16>, vector<32x64xbf16>, vector<8x64xf32> -> vector<8x64xf32>
    %c0_100 = arith.constant 0 : index
    %c0_101 = arith.constant 0 : index
    %c0_102 = arith.constant 0 : index
    %271 = vector.load %arg18[%c0_100, %c0_101, %c0_102] : memref<1x1x64xf32, #tpu.memory_space<vmem>>, vector<1x1x64xf32>
    %272 = vector.shape_cast %271 : vector<1x1x64xf32> to vector<1x64xf32>
    %273 = vector.broadcast %272 : vector<1x64xf32> to vector<8x64xf32>
    %274 = arith.addf %270, %273 : vector<8x64xf32>
    %cst_103 = arith.constant 0.000000e+00 : f32
    %275 = vector.broadcast %cst_103 : f32 to vector<8x64xf32>
    %276 = arith.maximumf %274, %275 : vector<8x64xf32>
    %277 = arith.truncf %276 : vector<8x64xf32> to vector<8x64xbf16>
    %c0_104 = arith.constant 0 : index
    %c0_105 = arith.constant 0 : index
    %c0_106 = arith.constant 0 : index
    %278 = vector.load %arg19[%c0_104, %c0_105, %c0_106] : memref<1x64x32xbf16, #tpu.memory_space<vmem>>, vector<1x64x32xbf16>
    %279 = vector.shape_cast %278 : vector<1x64x32xbf16> to vector<64x32xbf16>
    %cst_107 = arith.constant dense<0.000000e+00> : vector<8x32xf32>
    %280 = tpu.matmul %277, %279, %cst_107 {dimension_numbers = #tpu.dot_dimension_numbers<[1], [0], [0], [1], [0, 0, 1, 1], [], []>} : vector<8x64xbf16>, vector<64x32xbf16>, vector<8x32xf32> -> vector<8x32xf32>
    %c0_108 = arith.constant 0 : index
    %c0_109 = arith.constant 0 : index
    %c0_110 = arith.constant 0 : index
    %281 = vector.load %arg20[%c0_108, %c0_109, %c0_110] : memref<1x1x32xf32, #tpu.memory_space<vmem>>, vector<1x1x32xf32>
    %282 = vector.shape_cast %281 : vector<1x1x32xf32> to vector<1x32xf32>
    %283 = vector.broadcast %282 : vector<1x32xf32> to vector<8x32xf32>
    %284 = arith.addf %280, %283 : vector<8x32xf32>
    %285 = arith.addf %240, %284 : vector<8x32xf32>
    %c0_i32_111 = arith.constant 0 : i32
    %286 = arith.cmpi eq, %arg1, %c0_i32_111 : i32
    %287 = arith.extui %286 : i1 to i32
    %c0_i32_112 = arith.constant 0 : i32
    %288 = arith.cmpi ne, %287, %c0_i32_112 : i32
    scf.if %288 {
      %c0_115 = arith.constant 0 : index
      %c0_116 = arith.constant 0 : index
      %292 = vector.load %arg21[%c0_115, %c0_116] : memref<1x32xf32, #tpu.memory_space<vmem>>, vector<1x32xf32>
      %c0_117 = arith.constant 0 : index
      %c0_118 = arith.constant 0 : index
      %293 = vector.load %arg22[%c0_117, %c0_118] : memref<1x32xf32, #tpu.memory_space<vmem>>, vector<1x32xf32>
      %cst_119 = arith.constant dense<0.000000e+00> : vector<8xf32>
      %294 = vector.multi_reduction <add>, %285, %cst_119 [1] : vector<8x32xf32> to vector<8xf32>
      %295 = vector.shape_cast %294 : vector<8xf32> to vector<8x1xf32>
      %cst_120 = arith.constant 3.200000e+01 : f32
      %296 = vector.broadcast %cst_120 : f32 to vector<8x1xf32>
      %297 = arith.divf %295, %296 : vector<8x1xf32>
      %298 = vector.broadcast %297 : vector<8x1xf32> to vector<8x32xf32>
      %299 = arith.subf %285, %298 : vector<8x32xf32>
      %300 = arith.mulf %299, %299 : vector<8x32xf32>
      %cst_121 = arith.constant dense<0.000000e+00> : vector<8xf32>
      %301 = vector.multi_reduction <add>, %300, %cst_121 [1] : vector<8x32xf32> to vector<8xf32>
      %302 = vector.shape_cast %301 : vector<8xf32> to vector<8x1xf32>
      %cst_122 = arith.constant 3.200000e+01 : f32
      %303 = vector.broadcast %cst_122 : f32 to vector<8x1xf32>
      %304 = arith.divf %302, %303 : vector<8x1xf32>
      %305 = vector.broadcast %297 : vector<8x1xf32> to vector<8x32xf32>
      %306 = arith.subf %285, %305 : vector<8x32xf32>
      %cst_123 = arith.constant 9.99999997E-7 : f32
      %307 = vector.broadcast %cst_123 : f32 to vector<8x1xf32>
      %308 = arith.addf %304, %307 : vector<8x1xf32>
      %309 = math.rsqrt %308 : vector<8x1xf32>
      %310 = vector.broadcast %309 : vector<8x1xf32> to vector<8x32xf32>
      %311 = arith.mulf %306, %310 : vector<8x32xf32>
      %312 = vector.broadcast %292 : vector<1x32xf32> to vector<8x32xf32>
      %313 = arith.mulf %311, %312 : vector<8x32xf32>
      %314 = vector.broadcast %293 : vector<1x32xf32> to vector<8x32xf32>
      %315 = arith.addf %313, %314 : vector<8x32xf32>
      %316 = vector.shape_cast %315 : vector<8x32xf32> to vector<1x8x32xf32>
      %c0_124 = arith.constant 0 : index
      %c0_125 = arith.constant 0 : index
      %c0_126 = arith.constant 0 : index
      %317 = vector.load %arg23[%c0_124, %c0_125, %c0_126] : memref<1x8x32xf32, #tpu.memory_space<vmem>>, vector<1x8x32xf32>
      tpu.vector_store %arg23[%c0_124, %c0_125, %c0_126], %316 {strides = array<i32>} : memref<1x8x32xf32, #tpu.memory_space<vmem>>, vector<1x8x32xf32>,
    } else {
    }
    %c0_i32_113 = arith.constant 0 : i32
    %289 = arith.cmpi ne, %arg1, %c0_i32_113 : i32
    %290 = arith.extui %289 : i1 to i32
    %c0_i32_114 = arith.constant 0 : i32
    %291 = arith.cmpi ne, %290, %c0_i32_114 : i32
    scf.if %291 {
      %292 = vector.shape_cast %285 : vector<8x32xf32> to vector<1x8x32xf32>
      %c0_115 = arith.constant 0 : index
      %c0_116 = arith.constant 0 : index
      %c0_117 = arith.constant 0 : index
      %293 = vector.load %arg23[%c0_115, %c0_116, %c0_117] : memref<1x8x32xf32, #tpu.memory_space<vmem>>, vector<1x8x32xf32>
      tpu.vector_store %arg23[%c0_115, %c0_116, %c0_117], %292 {strides = array<i32>} : memref<1x8x32xf32, #tpu.memory_space<vmem>>, vector<1x8x32xf32>,
    } else {
    }
    return
  }
  func.func @transform_0(%arg0: i32, %arg1: i32) -> (i32, i32, i32) {
    %c0_i32 = arith.constant 0 : i32
    %c0_i32_0 = arith.constant 0 : i32
    %c0_i32_1 = arith.constant 0 : i32
    return %arg0, %c0_i32, %c0_i32_0 : i32, i32, i32
  }
  func.func @transform_1(%arg0: i32, %arg1: i32) -> (i32, i32, i32) {
    %c0_i32 = arith.constant 0 : i32
    %c0_i32_0 = arith.constant 0 : i32
    %c0_i32_1 = arith.constant 0 : i32
    return %arg0, %c0_i32, %c0_i32_0 : i32, i32, i32
  }
  func.func @transform_2(%arg0: i32, %arg1: i32) -> (i32, i32, i32) {
    %c0_i32 = arith.constant 0 : i32
    %c0_i32_0 = arith.constant 0 : i32
    %c0_i32_1 = arith.constant 0 : i32
    return %arg0, %c0_i32, %c0_i32_0 : i32, i32, i32
  }
  func.func @transform_3(%arg0: i32, %arg1: i32) -> (i32, i32, i32) {
    %c0_i32 = arith.constant 0 : i32
    %c0_i32_0 = arith.constant 0 : i32
    %c0_i32_1 = arith.constant 0 : i32
    %c0_i32_2 = arith.constant 0 : i32
    return %c0_i32, %c0_i32_0, %c0_i32_1 : i32, i32, i32
  }
  func.func @transform_4(%arg0: i32, %arg1: i32) -> (i32, i32, i32) {
    %c0_i32 = arith.constant 0 : i32
    %c0_i32_0 = arith.constant 0 : i32
    %c0_i32_1 = arith.constant 0 : i32
    return %arg1, %c0_i32, %c0_i32_0 : i32, i32, i32
  }
  func.func @transform_5(%arg0: i32, %arg1: i32) -> (i32, i32, i32) {
    %c0_i32 = arith.constant 0 : i32
    %c0_i32_0 = arith.constant 0 : i32
    %c0_i32_1 = arith.constant 0 : i32
    return %arg1, %c0_i32, %c0_i32_0 : i32, i32, i32
  }
  func.func @transform_6(%arg0: i32, %arg1: i32) -> (i32, i32, i32) {
    %c0_i32 = arith.constant 0 : i32
    %c0_i32_0 = arith.constant 0 : i32
    %c0_i32_1 = arith.constant 0 : i32
    return %arg1, %c0_i32, %c0_i32_0 : i32, i32, i32
  }
  func.func @transform_7(%arg0: i32, %arg1: i32) -> (i32, i32, i32) {
    %c0_i32 = arith.constant 0 : i32
    %c0_i32_0 = arith.constant 0 : i32
    %c0_i32_1 = arith.constant 0 : i32
    return %arg1, %c0_i32, %c0_i32_0 : i32, i32, i32
  }
  func.func @transform_8(%arg0: i32, %arg1: i32) -> (i32, i32, i32) {
    %c0_i32 = arith.constant 0 : i32
    %c0_i32_0 = arith.constant 0 : i32
    %c0_i32_1 = arith.constant 0 : i32
    return %arg1, %c0_i32, %c0_i32_0 : i32, i32, i32
  }
  func.func @transform_9(%arg0: i32, %arg1: i32) -> (i32, i32, i32) {
    %c0_i32 = arith.constant 0 : i32
    %c0_i32_0 = arith.constant 0 : i32
    %c0_i32_1 = arith.constant 0 : i32
    return %arg1, %c0_i32, %c0_i32_0 : i32, i32, i32
  }
  func.func @transform_10(%arg0: i32, %arg1: i32) -> (i32, i32, i32) {
    %c0_i32 = arith.constant 0 : i32
    %c0_i32_0 = arith.constant 0 : i32
    %c0_i32_1 = arith.constant 0 : i32
    return %arg1, %c0_i32, %c0_i32_0 : i32, i32, i32
  }
  func.func @transform_11(%arg0: i32, %arg1: i32) -> (i32, i32, i32) {
    %c0_i32 = arith.constant 0 : i32
    %c0_i32_0 = arith.constant 0 : i32
    %c0_i32_1 = arith.constant 0 : i32
    return %arg1, %c0_i32, %c0_i32_0 : i32, i32, i32
  }
  func.func @transform_12(%arg0: i32, %arg1: i32) -> (i32, i32, i32) {
    %c0_i32 = arith.constant 0 : i32
    %c0_i32_0 = arith.constant 0 : i32
    %c0_i32_1 = arith.constant 0 : i32
    return %arg1, %c0_i32, %c0_i32_0 : i32, i32, i32
  }
  func.func @transform_13(%arg0: i32, %arg1: i32) -> (i32, i32, i32) {
    %c0_i32 = arith.constant 0 : i32
    %c0_i32_0 = arith.constant 0 : i32
    %c0_i32_1 = arith.constant 0 : i32
    return %arg1, %c0_i32, %c0_i32_0 : i32, i32, i32
  }
  func.func @transform_14(%arg0: i32, %arg1: i32) -> (i32, i32, i32) {
    %c0_i32 = arith.constant 0 : i32
    %c0_i32_0 = arith.constant 0 : i32
    %c0_i32_1 = arith.constant 0 : i32
    return %arg1, %c0_i32, %c0_i32_0 : i32, i32, i32
  }
  func.func @transform_15(%arg0: i32, %arg1: i32) -> (i32, i32, i32) {
    %c0_i32 = arith.constant 0 : i32
    %c0_i32_0 = arith.constant 0 : i32
    %c0_i32_1 = arith.constant 0 : i32
    return %arg1, %c0_i32, %c0_i32_0 : i32, i32, i32
  }
  func.func @transform_16(%arg0: i32, %arg1: i32) -> (i32, i32, i32) {
    %c0_i32 = arith.constant 0 : i32
    %c0_i32_0 = arith.constant 0 : i32
    %c0_i32_1 = arith.constant 0 : i32
    return %arg1, %c0_i32, %c0_i32_0 : i32, i32, i32
  }
  func.func @transform_17(%arg0: i32, %arg1: i32) -> (i32, i32, i32) {
    %c0_i32 = arith.constant 0 : i32
    %c0_i32_0 = arith.constant 0 : i32
    %c0_i32_1 = arith.constant 0 : i32
    return %arg1, %c0_i32, %c0_i32_0 : i32, i32, i32
  }
  func.func @transform_18(%arg0: i32, %arg1: i32) -> (i32, i32, i32) {
    %c0_i32 = arith.constant 0 : i32
    %c0_i32_0 = arith.constant 0 : i32
    %c0_i32_1 = arith.constant 0 : i32
    return %arg1, %c0_i32, %c0_i32_0 : i32, i32, i32
  }
  func.func @transform_19(%arg0: i32, %arg1: i32) -> (i32, i32) {
    %c0_i32 = arith.constant 0 : i32
    %c0_i32_0 = arith.constant 0 : i32
    %c0_i32_1 = arith.constant 0 : i32
    return %c0_i32, %c0_i32_0 : i32, i32
  }
  func.func @transform_20(%arg0: i32, %arg1: i32) -> (i32, i32) {
    %c0_i32 = arith.constant 0 : i32
    %c0_i32_0 = arith.constant 0 : i32
    %c0_i32_1 = arith.constant 0 : i32
    return %c0_i32, %c0_i32_0 : i32, i32
  }
  func.func @transform_21(%arg0: i32, %arg1: i32) -> (i32, i32, i32) {
    %c0_i32 = arith.constant 0 : i32
    %c0_i32_0 = arith.constant 0 : i32
    %c0_i32_1 = arith.constant 0 : i32
    return %arg0, %c0_i32, %c0_i32_0 : i32, i32, i32
  }
}

</mosaic_0001>

<llo_original>
// kernel: generator_forward.2
$region0: #{generator_forward.2}
  #allocation0 [shape = 'u32[]', space=smem, size = 0x4, offset = 0x4, fixed_abs, tag = 'smem constant byte address 0x4 - core index']
  #allocation1 [shape = 'u32[144,128]{1,0:T(1,128)}', space=vmem, size = 0x12000, scoped, tag = 'internal scratch']
  %s0 = inlined_call_operand.vmem [shape: f32[2,16,32], index: 0, kind: input, shape index: {}]
  %s1 = inlined_call_operand.vmem [shape: f32[2,1,16], index: 1, kind: input, shape index: {}]
  %s2 = inlined_call_operand.vmem [shape: f32[3,1,32], index: 2, kind: input, shape index: {}]
  %s3 = inlined_call_operand.vmem [shape: f32[3,1,32], index: 3, kind: input, shape index: {}]
  %s4 = inlined_call_operand.vmem [shape: bf16[3,32,96], index: 4, kind: input, shape index: {}]
  %s5 = inlined_call_operand.vmem [shape: bf16[3,32,32], index: 5, kind: input, shape index: {}]
  %s6 = inlined_call_operand.vmem [shape: f32[3,1,32], index: 6, kind: input, shape index: {}]
  %s7 = inlined_call_operand.vmem [shape: f32[3,1,32], index: 7, kind: input, shape index: {}]
  %s8 = inlined_call_operand.vmem [shape: bf16[3,32,64], index: 8, kind: input, shape index: {}]
  %s9 = inlined_call_operand.vmem [shape: f32[3,1,64], index: 9, kind: input, shape index: {}]
  %s10 = inlined_call_operand.vmem [shape: bf16[3,64,32], index: 10, kind: input, shape index: {}]
  %s11 = inlined_call_operand.vmem [shape: f32[3,1,32], index: 11, kind: input, shape index: {}]
  %s12 = inlined_call_operand.vmem [shape: f32[1,32], index: 12, kind: input, shape index: {}]
  %s13 = inlined_call_operand.vmem [shape: f32[1,32], index: 13, kind: input, shape index: {}]
  %s14 = inlined_call_operand.vmem [shape: f32[2,16,32], index: 14, kind: output, shape index: {}]
  %s15 = sld [smem:[#allocation0]]
  $region101: #{generator_forward.2} parent=0
    _
  %s17 = ssub.s32 1, %s15
  %s18 = scalar_select 0, %s17, %s15
  loop: start=0, step=1, limit=8
  $region2: #{generator_forward.2} parent=0 // loop_pre_header
    _
  $region3: #{generator_forward.2} parent=0 // loop_header
    %s20 = sphi 0, %s24
    %p21 = scmp.ge.s32.totalorder %s20, 8
    %s27 = sphi 0, %s39
    %s28 = sphi 0, %s35
    %s29 = sphi 0, %s27
    %s30 = sphi 0, %s28
    %s31 = sphi 0, %s29
    %s32 = sphi 0, %s30
    %s42 = sphi 0, %s44
    %s45 = sphi 0, %s42
    %s46 = sphi 0, %s45
    %s62 = sphi 0, %s46
    %s68 = sphi 0, %s70
    %s71 = sphi 0, %s68
    %s72 = sphi 0, %s71
    %s88 = sphi 0, %s72
    %s94 = sphi 0, %s96
    %s97 = sphi 0, %s94
    %s98 = sphi 0, %s97
    %s114 = sphi 0, %s98
    %s120 = sphi 0, %s122
    %s123 = sphi 0, %s120
    %s124 = sphi 0, %s123
    %s140 = sphi 0, %s124
    %s146 = sphi 0, %s148
    %s149 = sphi 0, %s146
    %s150 = sphi 0, %s149
    %s166 = sphi 0, %s150
    %s172 = sphi 0, %s174
    %s175 = sphi 0, %s172
    %s176 = sphi 0, %s175
    %s192 = sphi 0, %s176
    %s198 = sphi 0, %s200
    %s201 = sphi 0, %s198
    %s202 = sphi 0, %s201
    %s218 = sphi 0, %s202
    %s224 = sphi 0, %s226
    %s227 = sphi 0, %s224
    %s228 = sphi 0, %s227
    %s244 = sphi 0, %s228
    %s250 = sphi 0, %s252
    %s253 = sphi 0, %s250
    %s254 = sphi 0, %s253
    %s270 = sphi 0, %s254
    %s276 = sphi 0, %s278
    %s279 = sphi 0, %s276
    %s280 = sphi 0, %s279
    %s296 = sphi 0, %s280
    %s302 = sphi 0, %s304
    %s305 = sphi 0, %s302
    %s306 = sphi 0, %s305
    %s322 = sphi 0, %s306
    %s328 = sphi 0, %s330
    %s331 = sphi 0, %s328
    %s332 = sphi 0, %s331
    %s348 = sphi 0, %s332
    %s352 = sphi 0, %s352
    %s354 = sphi 0, %s352
    %s355 = sphi 0, %s354
    %s369 = sphi 0, %s355
    %s373 = sphi 0, %s373
    %s375 = sphi 0, %s373
    %s376 = sphi 0, %s375
    %s390 = sphi 0, %s376
    %s396 = sphi 0, %s398
    %s399 = sphi 0, %s396
    %s400 = sphi 0, %s399
    %s416 = sphi 0, %s400
  $region4: #{generator_forward.2} parent=0 // loop_header_branch
    %23 = sbr.rel (%p21) target = $region8
  $region5: #{generator_forward.2} parent=0 // loop_body
    %s25 = ssub.s32 %s20, 1
    %s26 = ssub.s32 %s20, 2
    %s33 = sadd.s32 1, %s28
    %p34 = scmp.ge.s32.totalorder %s33, 3
    %s35 = scalar_select %p34, 0, %s33
    %s36 = sadd.s32 1, %s27
    %s37 = scalar_select %p34, %s36, %s27
    %p38 = scmp.ge.s32.totalorder %s37, 2
    %s39 = scalar_select %p38, 0, %s37
    %s40 = ssub.s32 %s27, %s39
    %p41 = scmp.eq.s32.totalorder %s40, 0
    %s43 = sadd.s32 %s42, 1
    %s44 = scalar_select %p41, %s42, %s43
    %p47 = pneg %p41
    %p48 = scmp.eq.s32.totalorder %s20, 5
    %p49 = por %p47, %p48
    %p50 = scmp.ne.s32.totalorder %s42, %s45
    %p51 = scmp.eq.s32.totalorder %s20, 0
    %p52 = por %p50, %p51
    %p53 = scmp.ne.s32.totalorder %s42, %s45
    %p54 = scmp.eq.s32.totalorder %s25, 5
    %p55 = por %p53, %p54
    %p56 = scmp.ne.s32.totalorder %s45, %s46
    %p57 = scmp.eq.s32.totalorder %s25, 0
    %p58 = por %p56, %p57
    %p59 = scmp.ne.s32.totalorder %s45, %s46
    %p60 = scmp.eq.s32.totalorder %s26, 5
    %p61 = por %p59, %p60
    %p63 = scmp.ne.s32.totalorder %s46, %s62
    %p64 = scmp.eq.s32.totalorder %s26, 0
    %p65 = por %p63, %p64
    %s66 = ssub.s32 %s27, %s39
    %p67 = scmp.eq.s32.totalorder %s66, 0
    %s69 = sadd.s32 %s68, 1
    %s70 = scalar_select %p67, %s68, %s69
    %p73 = pneg %p67
    %p74 = scmp.eq.s32.totalorder %s20, 5
    %p75 = por %p73, %p74
    %p76 = scmp.ne.s32.totalorder %s68, %s71
    %p77 = scmp.eq.s32.totalorder %s20, 0
    %p78 = por %p76, %p77
    %p79 = scmp.ne.s32.totalorder %s68, %s71
    %p80 = scmp.eq.s32.totalorder %s25, 5
    %p81 = por %p79, %p80
    %p82 = scmp.ne.s32.totalorder %s71, %s72
    %p83 = scmp.eq.s32.totalorder %s25, 0
    %p84 = por %p82, %p83
    %p85 = scmp.ne.s32.totalorder %s71, %s72
    %p86 = scmp.eq.s32.totalorder %s26, 5
    %p87 = por %p85, %p86
    %p89 = scmp.ne.s32.totalorder %s72, %s88
    %p90 = scmp.eq.s32.totalorder %s26, 0
    %p91 = por %p89, %p90
    %s92 = ssub.s32 %s28, %s35
    %p93 = scmp.eq.s32.totalorder %s92, 0
    %s95 = sadd.s32 %s94, 1
    %s96 = scalar_select %p93, %s94, %s95
    %p99 = pneg %p93
    %p100 = scmp.eq.s32.totalorder %s20, 5
    %p101 = por %p99, %p100
    %p102 = scmp.ne.s32.totalorder %s94, %s97
    %p103 = scmp.eq.s32.totalorder %s20, 0
    %p104 = por %p102, %p103
    %p105 = scmp.ne.s32.totalorder %s94, %s97
    %p106 = scmp.eq.s32.totalorder %s25, 5
    %p107 = por %p105, %p106
    %p108 = scmp.ne.s32.totalorder %s97, %s98
    %p109 = scmp.eq.s32.totalorder %s25, 0
    %p110 = por %p108, %p109
    %p111 = scmp.ne.s32.totalorder %s97, %s98
    %p112 = scmp.eq.s32.totalorder %s26, 5
    %p113 = por %p111, %p112
    %p115 = scmp.ne.s32.totalorder %s98, %s114
    %p116 = scmp.eq.s32.totalorder %s26, 0
    %p117 = por %p115, %p116
    %s118 = ssub.s32 %s28, %s35
    %p119 = scmp.eq.s32.totalorder %s118, 0
    %s121 = sadd.s32 %s120, 1
    %s122 = scalar_select %p119, %s120, %s121
    %p125 = pneg %p119
    %p126 = scmp.eq.s32.totalorder %s20, 5
    %p127 = por %p125, %p126
    %p128 = scmp.ne.s32.totalorder %s120, %s123
    %p129 = scmp.eq.s32.totalorder %s20, 0
    %p130 = por %p128, %p129
    %p131 = scmp.ne.s32.totalorder %s120, %s123
    %p132 = scmp.eq.s32.totalorder %s25, 5
    %p133 = por %p131, %p132
    %p134 = scmp.ne.s32.totalorder %s123, %s124
    %p135 = scmp.eq.s32.totalorder %s25, 0
    %p136 = por %p134, %p135
    %p137 = scmp.ne.s32.totalorder %s123, %s124
    %p138 = scmp.eq.s32.totalorder %s26, 5
    %p139 = por %p137, %p138
    %p141 = scmp.ne.s32.totalorder %s124, %s140
    %p142 = scmp.eq.s32.totalorder %s26, 0
    %p143 = por %p141, %p142
    %s144 = ssub.s32 %s28, %s35
    %p145 = scmp.eq.s32.totalorder %s144, 0
    %s147 = sadd.s32 %s146, 1
    %s148 = scalar_select %p145, %s146, %s147
    %p151 = pneg %p145
    %p152 = scmp.eq.s32.totalorder %s20, 5
    %p153 = por %p151, %p152
    %p154 = scmp.ne.s32.totalorder %s146, %s149
    %p155 = scmp.eq.s32.totalorder %s20, 0
    %p156 = por %p154, %p155
    %p157 = scmp.ne.s32.totalorder %s146, %s149
    %p158 = scmp.eq.s32.totalorder %s25, 5
    %p159 = por %p157, %p158
    %p160 = scmp.ne.s32.totalorder %s149, %s150
    %p161 = scmp.eq.s32.totalorder %s25, 0
    %p162 = por %p160, %p161
    %p163 = scmp.ne.s32.totalorder %s149, %s150
    %p164 = scmp.eq.s32.totalorder %s26, 5
    %p165 = por %p163, %p164
    %p167 = scmp.ne.s32.totalorder %s150, %s166
    %p168 = scmp.eq.s32.totalorder %s26, 0
    %p169 = por %p167, %p168
    %s170 = ssub.s32 %s28, %s35
    %p171 = scmp.eq.s32.totalorder %s170, 0
    %s173 = sadd.s32 %s172, 1
    %s174 = scalar_select %p171, %s172, %s173
    %p177 = pneg %p171
    %p178 = scmp.eq.s32.totalorder %s20, 5
    %p179 = por %p177, %p178
    %p180 = scmp.ne.s32.totalorder %s172, %s175
    %p181 = scmp.eq.s32.totalorder %s20, 0
    %p182 = por %p180, %p181
    %p183 = scmp.ne.s32.totalorder %s172, %s175
    %p184 = scmp.eq.s32.totalorder %s25, 5
    %p185 = por %p183, %p184
    %p186 = scmp.ne.s32.totalorder %s175, %s176
    %p187 = scmp.eq.s32.totalorder %s25, 0
    %p188 = por %p186, %p187
    %p189 = scmp.ne.s32.totalorder %s175, %s176
    %p190 = scmp.eq.s32.totalorder %s26, 5
    %p191 = por %p189, %p190
    %p193 = scmp.ne.s32.totalorder %s176, %s192
    %p194 = scmp.eq.s32.totalorder %s26, 0
    %p195 = por %p193, %p194
    %s196 = ssub.s32 %s28, %s35
    %p197 = scmp.eq.s32.totalorder %s196, 0
    %s199 = sadd.s32 %s198, 1
    %s200 = scalar_select %p197, %s198, %s199
    %p203 = pneg %p197
    %p204 = scmp.eq.s32.totalorder %s20, 5
    %p205 = por %p203, %p204
    %p206 = scmp.ne.s32.totalorder %s198, %s201
    %p207 = scmp.eq.s32.totalorder %s20, 0
    %p208 = por %p206, %p207
    %p209 = scmp.ne.s32.totalorder %s198, %s201
    %p210 = scmp.eq.s32.totalorder %s25, 5
    %p211 = por %p209, %p210
    %p212 = scmp.ne.s32.totalorder %s201, %s202
    %p213 = scmp.eq.s32.totalorder %s25, 0
    %p214 = por %p212, %p213
    %p215 = scmp.ne.s32.totalorder %s201, %s202
    %p216 = scmp.eq.s32.totalorder %s26, 5
    %p217 = por %p215, %p216
    %p219 = scmp.ne.s32.totalorder %s202, %s218
    %p220 = scmp.eq.s32.totalorder %s26, 0
    %p221 = por %p219, %p220
    %s222 = ssub.s32 %s28, %s35
    %p223 = scmp.eq.s32.totalorder %s222, 0
    %s225 = sadd.s32 %s224, 1
    %s226 = scalar_select %p223, %s224, %s225
    %p229 = pneg %p223
    %p230 = scmp.eq.s32.totalorder %s20, 5
    %p231 = por %p229, %p230
    %p232 = scmp.ne.s32.totalorder %s224, %s227
    %p233 = scmp.eq.s32.totalorder %s20, 0
    %p234 = por %p232, %p233
    %p235 = scmp.ne.s32.totalorder %s224, %s227
    %p236 = scmp.eq.s32.totalorder %s25, 5
    %p237 = por %p235, %p236
    %p238 = scmp.ne.s32.totalorder %s227, %s228
    %p239 = scmp.eq.s32.totalorder %s25, 0
    %p240 = por %p238, %p239
    %p241 = scmp.ne.s32.totalorder %s227, %s228
    %p242 = scmp.eq.s32.totalorder %s26, 5
    %p243 = por %p241, %p242
    %p245 = scmp.ne.s32.totalorder %s228, %s244
    %p246 = scmp.eq.s32.totalorder %s26, 0
    %p247 = por %p245, %p246
    %s248 = ssub.s32 %s28, %s35
    %p249 = scmp.eq.s32.totalorder %s248, 0
    %s251 = sadd.s32 %s250, 1
    %s252 = scalar_select %p249, %s250, %s251
    %p255 = pneg %p249
    %p256 = scmp.eq.s32.totalorder %s20, 5
    %p257 = por %p255, %p256
    %p258 = scmp.ne.s32.totalorder %s250, %s253
    %p259 = scmp.eq.s32.totalorder %s20, 0
    %p260 = por %p258, %p259
    %p261 = scmp.ne.s32.totalorder %s250, %s253
    %p262 = scmp.eq.s32.totalorder %s25, 5
    %p263 = por %p261, %p262
    %p264 = scmp.ne.s32.totalorder %s253, %s254
    %p265 = scmp.eq.s32.totalorder %s25, 0
    %p266 = por %p264, %p265
    %p267 = scmp.ne.s32.totalorder %s253, %s254
    %p268 = scmp.eq.s32.totalorder %s26, 5
    %p269 = por %p267, %p268
    %p271 = scmp.ne.s32.totalorder %s254, %s270
    %p272 = scmp.eq.s32.totalorder %s26, 0
    %p273 = por %p271, %p272
    %s274 = ssub.s32 %s28, %s35
    %p275 = scmp.eq.s32.totalorder %s274, 0
    %s277 = sadd.s32 %s276, 1
    %s278 = scalar_select %p275, %s276, %s277
    %p281 = pneg %p275
    %p282 = scmp.eq.s32.totalorder %s20, 5
    %p283 = por %p281, %p282
    %p284 = scmp.ne.s32.totalorder %s276, %s279
    %p285 = scmp.eq.s32.totalorder %s20, 0
    %p286 = por %p284, %p285
    %p287 = scmp.ne.s32.totalorder %s276, %s279
    %p288 = scmp.eq.s32.totalorder %s25, 5
    %p289 = por %p287, %p288
    %p290 = scmp.ne.s32.totalorder %s279, %s280
    %p291 = scmp.eq.s32.totalorder %s25, 0
    %p292 = por %p290, %p291
    %p293 = scmp.ne.s32.totalorder %s279, %s280
    %p294 = scmp.eq.s32.totalorder %s26, 5
    %p295 = por %p293, %p294
    %p297 = scmp.ne.s32.totalorder %s280, %s296
    %p298 = scmp.eq.s32.totalorder %s26, 0
    %p299 = por %p297, %p298
    %s300 = ssub.s32 %s28, %s35
    %p301 = scmp.eq.s32.totalorder %s300, 0
    %s303 = sadd.s32 %s302, 1
    %s304 = scalar_select %p301, %s302, %s303
    %p307 = pneg %p301
    %p308 = scmp.eq.s32.totalorder %s20, 5
    %p309 = por %p307, %p308
    %p310 = scmp.ne.s32.totalorder %s302, %s305
    %p311 = scmp.eq.s32.totalorder %s20, 0
    %p312 = por %p310, %p311
    %p313 = scmp.ne.s32.totalorder %s302, %s305
    %p314 = scmp.eq.s32.totalorder %s25, 5
    %p315 = por %p313, %p314
    %p316 = scmp.ne.s32.totalorder %s305, %s306
    %p317 = scmp.eq.s32.totalorder %s25, 0
    %p318 = por %p316, %p317
    %p319 = scmp.ne.s32.totalorder %s305, %s306
    %p320 = scmp.eq.s32.totalorder %s26, 5
    %p321 = por %p319, %p320
    %p323 = scmp.ne.s32.totalorder %s306, %s322
    %p324 = scmp.eq.s32.totalorder %s26, 0
    %p325 = por %p323, %p324
    %s326 = ssub.s32 %s28, %s35
    %p327 = scmp.eq.s32.totalorder %s326, 0
    %s329 = sadd.s32 %s328, 1
    %s330 = scalar_select %p327, %s328, %s329
    %p333 = pneg %p327
    %p334 = scmp.eq.s32.totalorder %s20, 5
    %p335 = por %p333, %p334
    %p336 = scmp.ne.s32.totalorder %s328, %s331
    %p337 = scmp.eq.s32.totalorder %s20, 0
    %p338 = por %p336, %p337
    %p339 = scmp.ne.s32.totalorder %s328, %s331
    %p340 = scmp.eq.s32.totalorder %s25, 5
    %p341 = por %p339, %p340
    %p342 = scmp.ne.s32.totalorder %s331, %s332
    %p343 = scmp.eq.s32.totalorder %s25, 0
    %p344 = por %p342, %p343
    %p345 = scmp.ne.s32.totalorder %s331, %s332
    %p346 = scmp.eq.s32.totalorder %s26, 5
    %p347 = por %p345, %p346
    %p349 = scmp.ne.s32.totalorder %s332, %s348
    %p350 = scmp.eq.s32.totalorder %s26, 0
    %p351 = por %p349, %p350
    %s353 = sadd.s32 %s352, 1
    %p356 = scmp.eq.s32.totalorder %s20, 5
    %p357 = scmp.ne.s32.totalorder %s352, %s354
    %p358 = scmp.eq.s32.totalorder %s20, 0
    %p359 = por %p357, %p358
    %p360 = scmp.ne.s32.totalorder %s352, %s354
    %p361 = scmp.eq.s32.totalorder %s25, 5
    %p362 = por %p360, %p361
    %p363 = scmp.ne.s32.totalorder %s354, %s355
    %p364 = scmp.eq.s32.totalorder %s25, 0
    %p365 = por %p363, %p364
    %p366 = scmp.ne.s32.totalorder %s354, %s355
    %p367 = scmp.eq.s32.totalorder %s26, 5
    %p368 = por %p366, %p367
    %p370 = scmp.ne.s32.totalorder %s355, %s369
    %p371 = scmp.eq.s32.totalorder %s26, 0
    %p372 = por %p370, %p371
    %s374 = sadd.s32 %s373, 1
    %p377 = scmp.eq.s32.totalorder %s20, 5
    %p378 = scmp.ne.s32.totalorder %s373, %s375
    %p379 = scmp.eq.s32.totalorder %s20, 0
    %p380 = por %p378, %p379
    %p381 = scmp.ne.s32.totalorder %s373, %s375
    %p382 = scmp.eq.s32.totalorder %s25, 5
    %p383 = por %p381, %p382
    %p384 = scmp.ne.s32.totalorder %s375, %s376
    %p385 = scmp.eq.s32.totalorder %s25, 0
    %p386 = por %p384, %p385
    %p387 = scmp.ne.s32.totalorder %s375, %s376
    %p388 = scmp.eq.s32.totalorder %s26, 5
    %p389 = por %p387, %p388
    %p391 = scmp.ne.s32.totalorder %s376, %s390
    %p392 = scmp.eq.s32.totalorder %s26, 0
    %p393 = por %p391, %p392
    %s394 = ssub.s32 %s27, %s39
    %p395 = scmp.eq.s32.totalorder %s394, 0
    %s397 = sadd.s32 %s396, 1
    %s398 = scalar_select %p395, %s396, %s397
    %p401 = pneg %p395
    %p402 = scmp.eq.s32.totalorder %s20, 5
    %p403 = por %p401, %p402
    %p404 = scmp.ne.s32.totalorder %s396, %s399
    %p405 = scmp.eq.s32.totalorder %s20, 0
    %p406 = por %p404, %p405
    %p407 = scmp.ne.s32.totalorder %s396, %s399
    %p408 = scmp.eq.s32.totalorder %s25, 5
    %p409 = por %p407, %p408
    %p410 = scmp.ne.s32.totalorder %s399, %s400
    %p411 = scmp.eq.s32.totalorder %s25, 0
    %p412 = por %p410, %p411
    %p413 = scmp.ne.s32.totalorder %s399, %s400
    %p414 = scmp.eq.s32.totalorder %s26, 5
    %p415 = por %p413, %p414
    %p417 = scmp.ne.s32.totalorder %s400, %s416
    %p418 = scmp.eq.s32.totalorder %s26, 0
    %p419 = por %p417, %p418
    %p420 = scmp.le.s32.totalorder 1, %s20
    %p421 = scmp.lt.s32.totalorder %s20, 7
    %p422 = pnand %p420, %p421
    %p423 = pneg %p422
    // Predicated region
    $region9: #{generator_forward.2} parent=5 // pred_check
      _
    $region10: #{generator_forward.2} parent=5 // pred_check_branch
      %425 = sbr.rel (%p422) target = $region12
    $region11: #{generator_forward.2} parent=5 // pred_region
      %s426 = ssub.s32 %s20, 1
      // Predicated region
      $region13: #{generator_forward.2} parent=11 // pred_check
        %p427 = pneg %p365
      $region14: #{generator_forward.2} parent=11 // pred_check_branch
        %429 = sbr.rel (%p427) target = $region16
      $region15: #{generator_forward.2} parent=11 // pred_region
        _
      $region16: #{generator_forward.2} parent=11 // pred_fallthru
        _
      // Predicated region
      $region17: #{generator_forward.2} parent=11 // pred_check
        %p430 = pneg %p386
      $region18: #{generator_forward.2} parent=11 // pred_check_branch
        %432 = sbr.rel (%p430) target = $region20
      $region19: #{generator_forward.2} parent=11 // pred_region
        _
      $region20: #{generator_forward.2} parent=11 // pred_fallthru
        _
    $region12: #{generator_forward.2} parent=5 // pred_fallthru
      _
    %p433 = scmp.lt.s32.totalorder %s20, 6
    // Predicated region
    $region21: #{generator_forward.2} parent=5 // pred_check
      %p434 = pneg %p433
    $region22: #{generator_forward.2} parent=5 // pred_check_branch
      %436 = sbr.rel (%p434) target = $region24
    $region23: #{generator_forward.2} parent=5 // pred_region
      // Predicated region
      $region25: #{generator_forward.2} parent=23 // pred_check
        %p437 = pneg %p52
      $region26: #{generator_forward.2} parent=23 // pred_check_branch
        %439 = sbr.rel (%p437) target = $region28
      $region27: #{generator_forward.2} parent=23 // pred_region
        %p440 = scmp.lt.s32.totalorder %s27, 1
        %s441 = scalar_select %p440, %s27, 1
        %s442 = smul.addr %s441, 2
        %s443 = smul.addr %s442, 8
        %s444 = scalar_lea.vmem %s0, %s443
      $region28: #{generator_forward.2} parent=23 // pred_fallthru
        _
      // Predicated region
      $region29: #{generator_forward.2} parent=23 // pred_check
        %p445 = pneg %p78
      $region30: #{generator_forward.2} parent=23 // pred_check_branch
        %447 = sbr.rel (%p445) target = $region32
      $region31: #{generator_forward.2} parent=23 // pred_region
        %p448 = scmp.lt.s32.totalorder %s27, 1
        %s449 = scalar_select %p448, %s27, 1
        %s450 = scalar_lea.vmem %s1, %s449
      $region32: #{generator_forward.2} parent=23 // pred_fallthru
        _
      // Predicated region
      $region33: #{generator_forward.2} parent=23 // pred_check
        %p451 = pneg %p104
      $region34: #{generator_forward.2} parent=23 // pred_check_branch
        %453 = sbr.rel (%p451) target = $region36
      $region35: #{generator_forward.2} parent=23 // pred_region
        %p454 = scmp.lt.s32.totalorder %s28, 2
        %s455 = scalar_select %p454, %s28, 2
        %s456 = scalar_lea.vmem %s2, %s455
      $region36: #{generator_forward.2} parent=23 // pred_fallthru
        _
      // Predicated region
      $region37: #{generator_forward.2} parent=23 // pred_check
        %p457 = pneg %p130
      $region38: #{generator_forward.2} parent=23 // pred_check_branch
        %459 = sbr.rel (%p457) target = $region40
      $region39: #{generator_forward.2} parent=23 // pred_region
        %p460 = scmp.lt.s32.totalorder %s28, 2
        %s461 = scalar_select %p460, %s28, 2
        %s462 = scalar_lea.vmem %s3, %s461
      $region40: #{generator_forward.2} parent=23 // pred_fallthru
        _
      // Predicated region
      $region41: #{generator_forward.2} parent=23 // pred_check
        %p463 = pneg %p156
      $region42: #{generator_forward.2} parent=23 // pred_check_branch
        %465 = sbr.rel (%p463) target = $region44
      $region43: #{generator_forward.2} parent=23 // pred_region
        %p466 = scmp.lt.s32.totalorder %s28, 2
        %s467 = scalar_select %p466, %s28, 2
        %s468 = smul.addr %s467, 4
        %s469 = smul.addr %s468, 4
        %s470 = scalar_lea.vmem %s4, %s469
      $region44: #{generator_forward.2} parent=23 // pred_fallthru
        _
      // Predicated region
      $region45: #{generator_forward.2} parent=23 // pred_check
        %p471 = pneg %p182
      $region46: #{generator_forward.2} parent=23 // pred_check_branch
        %473 = sbr.rel (%p471) target = $region48
      $region47: #{generator_forward.2} parent=23 // pred_region
        %p474 = scmp.lt.s32.totalorder %s28, 2
        %s475 = scalar_select %p474, %s28, 2
        %s476 = smul.addr %s475, 4
        %s477 = smul.addr %s476, 4
        %s478 = scalar_lea.vmem %s5, %s477
      $region48: #{generator_forward.2} parent=23 // pred_fallthru
        _
      // Predicated region
      $region49: #{generator_forward.2} parent=23 // pred_check
        %p479 = pneg %p208
      $region50: #{generator_forward.2} parent=23 // pred_check_branch
        %481 = sbr.rel (%p479) target = $region52
      $region51: #{generator_forward.2} parent=23 // pred_region
        %p482 = scmp.lt.s32.totalorder %s28, 2
        %s483 = scalar_select %p482, %s28, 2
        %s484 = scalar_lea.vmem %s6, %s483
      $region52: #{generator_forward.2} parent=23 // pred_fallthru
        _
      // Predicated region
      $region53: #{generator_forward.2} parent=23 // pred_check
        %p485 = pneg %p234
      $region54: #{generator_forward.2} parent=23 // pred_check_branch
        %487 = sbr.rel (%p485) target = $region56
      $region55: #{generator_forward.2} parent=23 // pred_region
        %p488 = scmp.lt.s32.totalorder %s28, 2
        %s489 = scalar_select %p488, %s28, 2
        %s490 = scalar_lea.vmem %s7, %s489
      $region56: #{generator_forward.2} parent=23 // pred_fallthru
        _
      // Predicated region
      $region57: #{generator_forward.2} parent=23 // pred_check
        %p491 = pneg %p260
      $region58: #{generator_forward.2} parent=23 // pred_check_branch
        %493 = sbr.rel (%p491) target = $region60
      $region59: #{generator_forward.2} parent=23 // pred_region
        %p494 = scmp.lt.s32.totalorder %s28, 2
        %s495 = scalar_select %p494, %s28, 2
        %s496 = smul.addr %s495, 4
        %s497 = smul.addr %s496, 4
        %s498 = scalar_lea.vmem %s8, %s497
      $region60: #{generator_forward.2} parent=23 // pred_fallthru
        _
      // Predicated region
      $region61: #{generator_forward.2} parent=23 // pred_check
        %p499 = pneg %p286
      $region62: #{generator_forward.2} parent=23 // pred_check_branch
        %501 = sbr.rel (%p499) target = $region64
      $region63: #{generator_forward.2} parent=23 // pred_region
        %p502 = scmp.lt.s32.totalorder %s28, 2
        %s503 = scalar_select %p502, %s28, 2
        %s504 = scalar_lea.vmem %s9, %s503
      $region64: #{generator_forward.2} parent=23 // pred_fallthru
        _
      // Predicated region
      $region65: #{generator_forward.2} parent=23 // pred_check
        %p505 = pneg %p312
      $region66: #{generator_forward.2} parent=23 // pred_check_branch
        %507 = sbr.rel (%p505) target = $region68
      $region67: #{generator_forward.2} parent=23 // pred_region
        %p508 = scmp.lt.s32.totalorder %s28, 2
        %s509 = scalar_select %p508, %s28, 2
        %s510 = smul.addr %s509, 8
        %s511 = smul.addr %s510, 4
        %s512 = scalar_lea.vmem %s10, %s511
      $region68: #{generator_forward.2} parent=23 // pred_fallthru
        _
      // Predicated region
      $region69: #{generator_forward.2} parent=23 // pred_check
        %p513 = pneg %p338
      $region70: #{generator_forward.2} parent=23 // pred_check_branch
        %515 = sbr.rel (%p513) target = $region72
      $region71: #{generator_forward.2} parent=23 // pred_region
        %p516 = scmp.lt.s32.totalorder %s28, 2
        %s517 = scalar_select %p516, %s28, 2
        %s518 = scalar_lea.vmem %s11, %s517
      $region72: #{generator_forward.2} parent=23 // pred_fallthru
        _
    $region24: #{generator_forward.2} parent=5 // pred_fallthru
      _
    %p519 = scmp.le.s32.totalorder 1, %s20
    %p520 = scmp.lt.s32.totalorder %s20, 7
    %p521 = pnand %p519, %p520
    %p522 = pneg %p521
    // Predicated region
    $region73: #{generator_forward.2} parent=5 // pred_check
      _
    $region74: #{generator_forward.2} parent=5 // pred_check_branch
      %524 = sbr.rel (%p521) target = $region76
    $region75: #{generator_forward.2} parent=5 // pred_region
      %s525 = ssub.s32 %s20, 1
      %p526 = scmp.lt.s32.totalorder %s29, 1
      %s527 = scalar_select %p526, %s29, 1
      %s528 = smul.addr %s527, 2
      %s529 = smul.addr %s528, 8
      %s530 = scalar_lea.vmem %s0, %s529
      %p531 = pneg %p58
      %p532 = pneg %p55
      %p533 = scmp.lt.s32.totalorder %s29, 1
      %s534 = scalar_select %p533, %s29, 1
      %s535 = scalar_lea.vmem %s1, %s534
      %p536 = pneg %p84
      %p537 = pneg %p81
      %p538 = scmp.lt.s32.totalorder %s30, 2
      %s539 = scalar_select %p538, %s30, 2
      %s540 = scalar_lea.vmem %s2, %s539
      %p541 = pneg %p110
      %p542 = pneg %p107
      %p543 = scmp.lt.s32.totalorder %s30, 2
      %s544 = scalar_select %p543, %s30, 2
      %s545 = scalar_lea.vmem %s3, %s544
      %p546 = pneg %p136
      %p547 = pneg %p133
      %p548 = scmp.lt.s32.totalorder %s30, 2
      %s549 = scalar_select %p548, %s30, 2
      %s550 = smul.addr %s549, 4
      %s551 = smul.addr %s550, 4
      %s552 = scalar_lea.vmem %s4, %s551
      %p553 = pneg %p162
      %p554 = pneg %p159
      %p555 = scmp.lt.s32.totalorder %s30, 2
      %s556 = scalar_select %p555, %s30, 2
      %s557 = smul.addr %s556, 4
      %s558 = smul.addr %s557, 4
      %s559 = scalar_lea.vmem %s5, %s558
      %p560 = pneg %p188
      %p561 = pneg %p185
      %p562 = scmp.lt.s32.totalorder %s30, 2
      %s563 = scalar_select %p562, %s30, 2
      %s564 = scalar_lea.vmem %s6, %s563
      %p565 = pneg %p214
      %p566 = pneg %p211
      %p567 = scmp.lt.s32.totalorder %s30, 2
      %s568 = scalar_select %p567, %s30, 2
      %s569 = scalar_lea.vmem %s7, %s568
      %p570 = pneg %p240
      %p571 = pneg %p237
      %p572 = scmp.lt.s32.totalorder %s30, 2
      %s573 = scalar_select %p572, %s30, 2
      %s574 = smul.addr %s573, 4
      %s575 = smul.addr %s574, 4
      %s576 = scalar_lea.vmem %s8, %s575
      %p577 = pneg %p266
      %p578 = pneg %p263
      %p579 = scmp.lt.s32.totalorder %s30, 2
      %s580 = scalar_select %p579, %s30, 2
      %s581 = scalar_lea.vmem %s9, %s580
      %p582 = pneg %p292
      %p583 = pneg %p289
      %p584 = scmp.lt.s32.totalorder %s30, 2
      %s585 = scalar_select %p584, %s30, 2
      %s586 = smul.addr %s585, 8
      %s587 = smul.addr %s586, 4
      %s588 = scalar_lea.vmem %s10, %s587
      %p589 = pneg %p318
      %p590 = pneg %p315
      %p591 = scmp.lt.s32.totalorder %s30, 2
      %s592 = scalar_select %p591, %s30, 2
      %s593 = scalar_lea.vmem %s11, %s592
      %p594 = pneg %p344
      %p595 = pneg %p341
      %p596 = pneg %p365
      %p597 = pneg %p362
      %p598 = pneg %p386
      %p599 = pneg %p383
      %p600 = pneg %p412
      %p601 = pneg %p409
      %p602 = scmp.lt.s32.totalorder %s29, 1
      %s603 = scalar_select %p602, %s29, 1
      %s604 = smul.addr %s603, 2
      %s605 = smul.addr %s604, 8
      %s606 = scalar_lea.vmem %s14, %s605
      %p607 = scmp.lt.s32.totalorder %s29, 1
      %s608 = scalar_select %p607, %s29, 1
      %s609 = smul.addr %s608, 2
      %s610 = smul.addr %s609, 8
      %s611 = scalar_lea.vmem %s0, %s610
      %p612 = scmp.lt.s32.totalorder %s29, 1
      %s613 = scalar_select %p612, %s29, 1
      %s614 = scalar_lea.vmem %s1, %s613
      %p615 = scmp.lt.s32.totalorder %s30, 2
      %s616 = scalar_select %p615, %s30, 2
      %s617 = scalar_lea.vmem %s2, %s616
      %p618 = scmp.lt.s32.totalorder %s30, 2
      %s619 = scalar_select %p618, %s30, 2
      %s620 = scalar_lea.vmem %s3, %s619
      %p621 = scmp.lt.s32.totalorder %s30, 2
      %s622 = scalar_select %p621, %s30, 2
      %s623 = smul.addr %s622, 4
      %s624 = smul.addr %s623, 4
      %s625 = scalar_lea.vmem %s4, %s624
      %p626 = scmp.lt.s32.totalorder %s30, 2
      %s627 = scalar_select %p626, %s30, 2
      %s628 = smul.addr %s627, 4
      %s629 = smul.addr %s628, 4
      %s630 = scalar_lea.vmem %s5, %s629
      %p631 = scmp.lt.s32.totalorder %s30, 2
      %s632 = scalar_select %p631, %s30, 2
      %s633 = scalar_lea.vmem %s6, %s632
      %p634 = scmp.lt.s32.totalorder %s30, 2
      %s635 = scalar_select %p634, %s30, 2
      %s636 = scalar_lea.vmem %s7, %s635
      %p637 = scmp.lt.s32.totalorder %s30, 2
      %s638 = scalar_select %p637, %s30, 2
      %s639 = smul.addr %s638, 4
      %s640 = smul.addr %s639, 4
      %s641 = scalar_lea.vmem %s8, %s640
      %p642 = scmp.lt.s32.totalorder %s30, 2
      %s643 = scalar_select %p642, %s30, 2
      %s644 = scalar_lea.vmem %s9, %s643
      %p645 = scmp.lt.s32.totalorder %s30, 2
      %s646 = scalar_select %p645, %s30, 2
      %s647 = smul.addr %s646, 8
      %s648 = smul.addr %s647, 4
      %s649 = scalar_lea.vmem %s10, %s648
      %p650 = scmp.lt.s32.totalorder %s30, 2
      %s651 = scalar_select %p650, %s30, 2
      %s652 = scalar_lea.vmem %s11, %s651
      %p653 = scmp.lt.s32.totalorder %s29, 1
      %s654 = scalar_select %p653, %s29, 1
      %s655 = smul.addr %s654, 2
      %s656 = smul.addr %s655, 8
      %s657 = scalar_lea.vmem %s14, %s656
      %p659 = scmp.eq.s32.totalorder %s30, 0
      // Predicated region
      $region77: #{generator_forward.2} parent=75 // pred_check
        %p660 = pneg %p659
      $region78: #{generator_forward.2} parent=75 // pred_check_branch
        %662 = sbr.rel (%p660) target = $region80
      $region79: #{generator_forward.2} parent=75 // pred_region
        %v663 = vld [vmem:[%s611] sm:$0xff]
        %v664 = vld [vmem:[%s611 + $0x8] sm:$0xff]
        %vm665 = vcmask 261120
        %666 = vst.msk [vmem:[%s657] sm:$0xff] %vm665, %v663
        %667 = vst.msk [vmem:[%s657 + $0x8] sm:$0xff] %vm665, %v664
      $region80: #{generator_forward.2} parent=75 // pred_fallthru
        _
      %v668 = vld [vmem:[%s657] sm:$0xff]
      %v669 = vld [vmem:[%s657 + $0x8] sm:$0xff]
      %v670 = vld [vmem:[%s614] sm:$0x1]
      %v672 = vlaneseq
      %v673 = vshrl.u32 %v672, 7
      %v674 = vsub.s32 0, %v673
      %v675 = vrot.slane %v670, %v674
      %v677 = vld [vmem:[%s617] sm:$0x1]
      %v678 = vld [vmem:[%s620] sm:$0x1]
      %vm679 = vcmask 261120
      %v680 = vsel %vm679, %v668, 0.0
      %681 = vadd.xlane.f32.xlu0 %v680
      %v682 = vpop.xlane.xlu0 %681
      %v683 = vsel %vm679, %v669, 0.0
      %684 = vadd.xlane.f32.xlu0 %v683
      %v685 = vpop.xlane.xlu0 %684
      %v686 = vrcp.pop 32.0
      %v687 = vmul.f32 %v682, %v686
      %v688 = vmul.f32 %v685, %v686
      %v689 = vsub.f32 %v668, %v687
      %v690 = vsub.f32 %v669, %v688
      %v691 = vmul.f32 %v689, %v689
      %v692 = vmul.f32 %v690, %v690
      %v693 = vsel %vm679, %v691, 0.0
      %694 = vadd.xlane.f32.xlu0 %v693
      %v695 = vpop.xlane.xlu0 %694
      %v696 = vsel %vm679, %v692, 0.0
      %697 = vadd.xlane.f32.xlu0 %v696
      %v698 = vpop.xlane.xlu0 %697
      %v699 = vmul.f32 %v695, %v686
      %v700 = vmul.f32 %v698, %v686
      %v701 = vadd.f32 %v699, 1e-06
      %v702 = vadd.f32 %v700, 1e-06
      %v703 = vrsqrt.pop %v701
      %v704 = vrsqrt.pop %v702
      %v705 = vmul.f32 %v689, %v703
      %v706 = vmul.f32 %v690, %v704
      %v708 = vlaneseq
      %v709 = vshrl.u32 %v708, 7
      %v710 = vsub.s32 0, %v709
      %v711 = vrot.slane %v677, %v710
      %v713 = vmul.f32 %v705, %v711
      %v714 = vmul.f32 %v706, %v711
      %v716 = vlaneseq
      %v717 = vshrl.u32 %v716, 7
      %v718 = vsub.s32 0, %v717
      %v719 = vrot.slane %v678, %v718
      %v721 = vadd.f32 %v713, %v719
      %v722 = vadd.f32 %v714, %v719
      %v723 = vld [vmem:[%s625] sm:$0xf]
      %v724 = vld [vmem:[%s625 + $0x4] sm:$0xf]
      %v725 = vld [vmem:[%s625 + $0x8] sm:$0xf]
      %v726 = vld [vmem:[%s625 + $0xc] sm:$0xf]
      %v727 = vpack.c.bf16 %v722, %v721
      %v732 = vunpack.c.l.b16 %v723
      %v733 = vunpack.c.l.b16 %v724
      %v734 = vunpack.c.l.b16 %v725
      %v735 = vunpack.c.l.b16 %v726
      %v736 = vpack.c.b16 %v733, %v732
      %v737 = vpack.c.b16 %v735, %v734
      %v741 = vsel %vm679, %v727, 0
      %743 = vmatprep.subr.bf16.mxu0 0
      %744 = vmatpush1.bf16.msra.mxu0 0
      %745 = vmatprep.subr.bf16.mxu0 0
      %746 = vmatpush1.bf16.msra.mxu0 0
      %747 = vmatprep.subr.bf16.mxu0 0
      %748 = vmatpush1.bf16.msra.mxu0 0
      %749 = vmatprep.subr.bf16.mxu0 0
      %750 = vmatpush1.bf16.msra.mxu0 0
      %751 = vmatprep.subr.bf16.mxu0 0
      %752 = vmatpush1.bf16.msra.mxu0 0
      %753 = vmatprep.subr.bf16.mxu0 0
      %754 = vmatpush1.bf16.msra.mxu0 0
      %755 = vmatprep.subr.bf16.mxu0 0
      %756 = vmatpush1.bf16.msra.mxu0 %v737
      %757 = vmatprep.subr.bf16.mxu0 0
      %758 = vmatpush1.bf16.msra.mxu0 %v736
      %759 = vmatprep.subr.bf16.mxu0 0
      %760 = vmatpush2.bf16.msra.mxu0 0
      %761 = vmatprep.subr.bf16.mxu0 0
      %762 = vmatpush2.bf16.msra.mxu0 0
      %763 = vmatprep.subr.bf16.mxu0 0
      %764 = vmatpush2.bf16.msra.mxu0 0
      %765 = vmatprep.subr.bf16.mxu0 0
      %766 = vmatpush2.bf16.msra.mxu0 0
      %767 = vmatprep.subr.bf16.mxu0 0
      %768 = vmatpush2.bf16.msra.mxu0 0
      %769 = vmatprep.subr.bf16.mxu0 0
      %770 = vmatpush2.bf16.msra.mxu0 0
      %771 = vmatprep.subr.bf16.mxu0 0
      %772 = vmatpush2.bf16.msra.mxu0 0
      %773 = vmatprep.subr.bf16.mxu0 0
      %774 = vmatpush2.bf16.msra.mxu0 0
      %775 = vmatprep.mubr.bf16.mxu0 0
      %776 = vmatmul.mubr.bf16.gmra.mxu0 %v741
      %v777 = vpop.f32.mrf.mxu0
      %v778 = vadd.f32 0.0, %v777
      %v779 = vpop.f32.mrf.mxu0
      %v780 = vpop.f32.mrf.mxu0
      %v781 = vadd.f32 0.0, %v780
      %v782 = vpop.f32.mrf.mxu0
      %783 = vdwg.mxu0
      %v784 = vpack.c.bf16 %v781, %v778
      %786 = vrot.lane.b32.xlu0 %v784, 96
      %v787 = vpop.permute.xlu0 %786
      %vm788 = vcmask 64512
      %v790 = vsel %vm788, %v784, 0
      %v793 = vsel %vm788, %v787, 0
      %795 = vmatprep.subr.bf16.mxu0 0
      %796 = vmatpush1.bf16.xpose.msra.mxu0 0
      %797 = vmatprep.subr.bf16.mxu0 0
      %798 = vmatpush1.bf16.xpose.msra.mxu0 0
      %799 = vmatprep.subr.bf16.mxu0 0
      %800 = vmatpush1.bf16.xpose.msra.mxu0 0
      %801 = vmatprep.subr.bf16.mxu0 0
      %802 = vmatpush1.bf16.xpose.msra.mxu0 0
      %803 = vmatprep.subr.bf16.mxu0 0
      %804 = vmatpush1.bf16.xpose.msra.mxu0 0
      %805 = vmatprep.subr.bf16.mxu0 0
      %806 = vmatpush1.bf16.xpose.msra.mxu0 0
      %807 = vmatprep.subr.bf16.mxu0 0
      %808 = vmatpush1.bf16.xpose.msra.mxu0 0
      %809 = vmatprep.subr.bf16.mxu0 0
      %810 = vmatpush1.bf16.xpose.msra.mxu0 %v793
      %811 = vmatprep.subr.bf16.mxu0 0
      %812 = vmatpush2.bf16.xpose.msra.mxu0 0
      %813 = vmatprep.subr.bf16.mxu0 0
      %814 = vmatpush2.bf16.xpose.msra.mxu0 0
      %815 = vmatprep.subr.bf16.mxu0 0
      %816 = vmatpush2.bf16.xpose.msra.mxu0 0
      %817 = vmatprep.subr.bf16.mxu0 0
      %818 = vmatpush2.bf16.xpose.msra.mxu0 0
      %819 = vmatprep.subr.bf16.mxu0 0
      %820 = vmatpush2.bf16.xpose.msra.mxu0 0
      %821 = vmatprep.subr.bf16.mxu0 0
      %822 = vmatpush2.bf16.xpose.msra.mxu0 0
      %823 = vmatprep.subr.bf16.mxu0 0
      %824 = vmatpush2.bf16.xpose.msra.mxu0 0
      %825 = vmatprep.subr.bf16.mxu0 0
      %826 = vmatpush2.bf16.xpose.msra.mxu0 0
      %827 = vmatprep.mubr.bf16.mxu0 0
      %828 = vmatmul.mubr.bf16.gmra.mxu0 %v790
      %v829 = vpop.f32.mrf.mxu0
      %v830 = vadd.f32 %v675, %v829
      %v831 = vpop.f32.mrf.mxu0
      %v832 = vpop.f32.mrf.mxu0
      %v833 = vadd.f32 %v675, %v832
      %v834 = vpop.f32.mrf.mxu0
      %835 = vdwg.mxu0
      %vm836 = vcmask 130048
      %v837 = vsel %vm836, %v830, -inf
      %838 = vmax.xlane.f32.xlu0 %v837
      %v839 = vpop.xlane.xlu0 %838
      %v840 = vsel %vm836, %v833, -inf
      %841 = vmax.xlane.f32.xlu0 %v840
      %v842 = vpop.xlane.xlu0 %841
      %v843 = vsub.f32 %v830, %v839
      %v844 = vsub.f32 %v833, %v842
      %v845 = vmul.f32 %v843, 1.442695
      %v846 = vpow.pop %v845
      %v847 = vmul.f32 %v844, 1.442695
      %v848 = vpow.pop %v847
      %v849 = vsel %vm836, %v846, 0.0
      %850 = vadd.xlane.f32.xlu0 %v849
      %v851 = vpop.xlane.xlu0 %850
      %v852 = vsel %vm836, %v848, 0.0
      %853 = vadd.xlane.f32.xlu0 %v852
      %v854 = vpop.xlane.xlu0 %853
      %v855 = vrcp.pop %v851
      %v856 = vrcp.pop %v854
      %v857 = vmul.f32 %v846, %v855
      %v858 = vmul.f32 %v848, %v856
      %v859 = vpack.c.bf16 %v858, %v857
      %860 = vrot.lane.b32.xlu0 %v784, 64
      %v861 = vpop.permute.xlu0 %860
      %v864 = vsel %vm836, %v859, 0
      %866 = vmatprep.subr.bf16.mxu0 0
      %867 = vmatpush1.bf16.msra.mxu0 0
      %868 = vmatprep.subr.bf16.mxu0 0
      %869 = vmatpush1.bf16.msra.mxu0 0
      %870 = vmatprep.subr.bf16.mxu0 0
      %871 = vmatpush1.bf16.msra.mxu0 0
      %872 = vmatprep.subr.bf16.mxu0 0
      %873 = vmatpush1.bf16.msra.mxu0 0
      %874 = vmatprep.subr.bf16.mxu0 0
      %875 = vmatpush1.bf16.msra.mxu0 0
      %876 = vmatprep.subr.bf16.mxu0 0
      %877 = vmatpush1.bf16.msra.mxu0 0
      %878 = vmatprep.subr.bf16.mxu0 0
      %879 = vmatpush1.bf16.msra.mxu0 0
      %880 = vmatprep.subr.bf16.mxu0 0
      %881 = vmatpush1.bf16.msra.mxu0 %v861
      %882 = vmatprep.subr.bf16.mxu0 0
      %883 = vmatpush2.bf16.msra.mxu0 0
      %884 = vmatprep.subr.bf16.mxu0 0
      %885 = vmatpush2.bf16.msra.mxu0 0
      %886 = vmatprep.subr.bf16.mxu0 0
      %887 = vmatpush2.bf16.msra.mxu0 0
      %888 = vmatprep.subr.bf16.mxu0 0
      %889 = vmatpush2.bf16.msra.mxu0 0
      %890 = vmatprep.subr.bf16.mxu0 0
      %891 = vmatpush2.bf16.msra.mxu0 0
      %892 = vmatprep.subr.bf16.mxu0 0
      %893 = vmatpush2.bf16.msra.mxu0 0
      %894 = vmatprep.subr.bf16.mxu0 0
      %895 = vmatpush2.bf16.msra.mxu0 0
      %896 = vmatprep.subr.bf16.mxu0 0
      %897 = vmatpush2.bf16.msra.mxu0 0
      %898 = vmatprep.mubr.bf16.mxu0 0
      %899 = vmatmul.mubr.bf16.gmra.mxu0 %v864
      %v900 = vpop.f32.mrf.mxu0
      %v901 = vadd.f32 0.0, %v900
      %v902 = vpop.f32.mrf.mxu0
      %v903 = vpop.f32.mrf.mxu0
      %v904 = vadd.f32 0.0, %v903
      %v905 = vpop.f32.mrf.mxu0
      %906 = vdwg.mxu0
      %907 = vrot.lane.b32.xlu0 %v784, 120
      %v908 = vpop.permute.xlu0 %907
      %909 = vrot.lane.b32.xlu0 %v784, 88
      %v910 = vpop.permute.xlu0 %909
      %v912 = vsel %vm788, %v908, 0
      %v915 = vsel %vm788, %v910, 0
      %917 = vmatprep.subr.bf16.mxu0 0
      %918 = vmatpush1.bf16.xpose.msra.mxu0 0
      %919 = vmatprep.subr.bf16.mxu0 0
      %920 = vmatpush1.bf16.xpose.msra.mxu0 0
      %921 = vmatprep.subr.bf16.mxu0 0
      %922 = vmatpush1.bf16.xpose.msra.mxu0 0
      %923 = vmatprep.subr.bf16.mxu0 0
      %924 = vmatpush1.bf16.xpose.msra.mxu0 0
      %925 = vmatprep.subr.bf16.mxu0 0
      %926 = vmatpush1.bf16.xpose.msra.mxu0 0
      %927 = vmatprep.subr.bf16.mxu0 0
      %928 = vmatpush1.bf16.xpose.msra.mxu0 0
      %929 = vmatprep.subr.bf16.mxu0 0
      %930 = vmatpush1.bf16.xpose.msra.mxu0 0
      %931 = vmatprep.subr.bf16.mxu0 0
      %932 = vmatpush1.bf16.xpose.msra.mxu0 %v915
      %933 = vmatprep.subr.bf16.mxu0 0
      %934 = vmatpush2.bf16.xpose.msra.mxu0 0
      %935 = vmatprep.subr.bf16.mxu0 0
      %936 = vmatpush2.bf16.xpose.msra.mxu0 0
      %937 = vmatprep.subr.bf16.mxu0 0
      %938 = vmatpush2.bf16.xpose.msra.mxu0 0
      %939 = vmatprep.subr.bf16.mxu0 0
      %940 = vmatpush2.bf16.xpose.msra.mxu0 0
      %941 = vmatprep.subr.bf16.mxu0 0
      %942 = vmatpush2.bf16.xpose.msra.mxu0 0
      %943 = vmatprep.subr.bf16.mxu0 0
      %944 = vmatpush2.bf16.xpose.msra.mxu0 0
      %945 = vmatprep.subr.bf16.mxu0 0
      %946 = vmatpush2.bf16.xpose.msra.mxu0 0
      %947 = vmatprep.subr.bf16.mxu0 0
      %948 = vmatpush2.bf16.xpose.msra.mxu0 0
      %949 = vmatprep.mubr.bf16.mxu0 0
      %950 = vmatmul.mubr.bf16.gmra.mxu0 %v912
      %v951 = vpop.f32.mrf.mxu0
      %v952 = vadd.f32 %v675, %v951
      %v953 = vpop.f32.mrf.mxu0
      %v954 = vpop.f32.mrf.mxu0
      %v955 = vadd.f32 %v675, %v954
      %v956 = vpop.f32.mrf.mxu0
      %957 = vdwg.mxu0
      %v958 = vsel %vm836, %v952, -inf
      %959 = vmax.xlane.f32.xlu0 %v958
      %v960 = vpop.xlane.xlu0 %959
      %v961 = vsel %vm836, %v955, -inf
      %962 = vmax.xlane.f32.xlu0 %v961
      %v963 = vpop.xlane.xlu0 %962
      %v964 = vsub.f32 %v952, %v960
      %v965 = vsub.f32 %v955, %v963
      %v966 = vmul.f32 %v964, 1.442695
      %v967 = vpow.pop %v966
      %v968 = vmul.f32 %v965, 1.442695
      %v969 = vpow.pop %v968
      %v970 = vsel %vm836, %v967, 0.0
      %971 = vadd.xlane.f32.xlu0 %v970
      %v972 = vpop.xlane.xlu0 %971
      %v973 = vsel %vm836, %v969, 0.0
      %974 = vadd.xlane.f32.xlu0 %v973
      %v975 = vpop.xlane.xlu0 %974
      %v976 = vrcp.pop %v972
      %v977 = vrcp.pop %v975
      %v978 = vmul.f32 %v967, %v976
      %v979 = vmul.f32 %v969, %v977
      %v980 = vpack.c.bf16 %v979, %v978
      %981 = vrot.lane.b32.xlu0 %v784, 56
      %v982 = vpop.permute.xlu0 %981
      %v985 = vsel %vm836, %v980, 0
      %987 = vmatprep.subr.bf16.mxu0 0
      %988 = vmatpush1.bf16.msra.mxu0 0
      %989 = vmatprep.subr.bf16.mxu0 0
      %990 = vmatpush1.bf16.msra.mxu0 0
      %991 = vmatprep.subr.bf16.mxu0 0
      %992 = vmatpush1.bf16.msra.mxu0 0
      %993 = vmatprep.subr.bf16.mxu0 0
      %994 = vmatpush1.bf16.msra.mxu0 0
      %995 = vmatprep.subr.bf16.mxu0 0
      %996 = vmatpush1.bf16.msra.mxu0 0
      %997 = vmatprep.subr.bf16.mxu0 0
      %998 = vmatpush1.bf16.msra.mxu0 0
      %999 = vmatprep.subr.bf16.mxu0 0
      %1000 = vmatpush1.bf16.msra.mxu0 0
      %1001 = vmatprep.subr.bf16.mxu0 0
      %1002 = vmatpush1.bf16.msra.mxu0 %v982
      %1003 = vmatprep.subr.bf16.mxu0 0
      %1004 = vmatpush2.bf16.msra.mxu0 0
      %1005 = vmatprep.subr.bf16.mxu0 0
      %1006 = vmatpush2.bf16.msra.mxu0 0
      %1007 = vmatprep.subr.bf16.mxu0 0
      %1008 = vmatpush2.bf16.msra.mxu0 0
      %1009 = vmatprep.subr.bf16.mxu0 0
      %1010 = vmatpush2.bf16.msra.mxu0 0
      %1011 = vmatprep.subr.bf16.mxu0 0
      %1012 = vmatpush2.bf16.msra.mxu0 0
      %1013 = vmatprep.subr.bf16.mxu0 0
      %1014 = vmatpush2.bf16.msra.mxu0 0
      %1015 = vmatprep.subr.bf16.mxu0 0
      %1016 = vmatpush2.bf16.msra.mxu0 0
      %1017 = vmatprep.subr.bf16.mxu0 0
      %1018 = vmatpush2.bf16.msra.mxu0 0
      %1019 = vmatprep.mubr.bf16.mxu0 0
      %1020 = vmatmul.mubr.bf16.gmra.mxu0 %v985
      %v1021 = vpop.f32.mrf.mxu0
      %v1022 = vadd.f32 0.0, %v1021
      %v1023 = vpop.f32.mrf.mxu0
      %v1024 = vpop.f32.mrf.mxu0
      %v1025 = vadd.f32 0.0, %v1024
      %v1026 = vpop.f32.mrf.mxu0
      %1027 = vdwg.mxu0
      %1028 = vrot.lane.b32.xlu0 %v784, 112
      %v1029 = vpop.permute.xlu0 %1028
      %1030 = vrot.lane.b32.xlu0 %v784, 80
      %v1031 = vpop.permute.xlu0 %1030
      %v1033 = vsel %vm788, %v1029, 0
      %v1036 = vsel %vm788, %v1031, 0
      %1038 = vmatprep.subr.bf16.mxu0 0
      %1039 = vmatpush1.bf16.xpose.msra.mxu0 0
      %1040 = vmatprep.subr.bf16.mxu0 0
      %1041 = vmatpush1.bf16.xpose.msra.mxu0 0
      %1042 = vmatprep.subr.bf16.mxu0 0
      %1043 = vmatpush1.bf16.xpose.msra.mxu0 0
      %1044 = vmatprep.subr.bf16.mxu0 0
      %1045 = vmatpush1.bf16.xpose.msra.mxu0 0
      %1046 = vmatprep.subr.bf16.mxu0 0
      %1047 = vmatpush1.bf16.xpose.msra.mxu0 0
      %1048 = vmatprep.subr.bf16.mxu0 0
      %1049 = vmatpush1.bf16.xpose.msra.mxu0 0
      %1050 = vmatprep.subr.bf16.mxu0 0
      %1051 = vmatpush1.bf16.xpose.msra.mxu0 0
      %1052 = vmatprep.subr.bf16.mxu0 0
      %1053 = vmatpush1.bf16.xpose.msra.mxu0 %v1036
      %1054 = vmatprep.subr.bf16.mxu0 0
      %1055 = vmatpush2.bf16.xpose.msra.mxu0 0
      %1056 = vmatprep.subr.bf16.mxu0 0
      %1057 = vmatpush2.bf16.xpose.msra.mxu0 0
      %1058 = vmatprep.subr.bf16.mxu0 0
      %1059 = vmatpush2.bf16.xpose.msra.mxu0 0
      %1060 = vmatprep.subr.bf16.mxu0 0
      %1061 = vmatpush2.bf16.xpose.msra.mxu0 0
      %1062 = vmatprep.subr.bf16.mxu0 0
      %1063 = vmatpush2.bf16.xpose.msra.mxu0 0
      %1064 = vmatprep.subr.bf16.mxu0 0
      %1065 = vmatpush2.bf16.xpose.msra.mxu0 0
      %1066 = vmatprep.subr.bf16.mxu0 0
      %1067 = vmatpush2.bf16.xpose.msra.mxu0 0
      %1068 = vmatprep.subr.bf16.mxu0 0
      %1069 = vmatpush2.bf16.xpose.msra.mxu0 0
      %1070 = vmatprep.mubr.bf16.mxu0 0
      %1071 = vmatmul.mubr.bf16.gmra.mxu0 %v1033
      %v1072 = vpop.f32.mrf.mxu0
      %v1073 = vadd.f32 %v675, %v1072
      %v1074 = vpop.f32.mrf.mxu0
      %v1075 = vpop.f32.mrf.mxu0
      %v1076 = vadd.f32 %v675, %v1075
      %v1077 = vpop.f32.mrf.mxu0
      %1078 = vdwg.mxu0
      %v1079 = vsel %vm836, %v1073, -inf
      %1080 = vmax.xlane.f32.xlu0 %v1079
      %v1081 = vpop.xlane.xlu0 %1080
      %v1082 = vsel %vm836, %v1076, -inf
      %1083 = vmax.xlane.f32.xlu0 %v1082
      %v1084 = vpop.xlane.xlu0 %1083
      %v1085 = vsub.f32 %v1073, %v1081
      %v1086 = vsub.f32 %v1076, %v1084
      %v1087 = vmul.f32 %v1085, 1.442695
      %v1088 = vpow.pop %v1087
      %v1089 = vmul.f32 %v1086, 1.442695
      %v1090 = vpow.pop %v1089
      %v1091 = vsel %vm836, %v1088, 0.0
      %1092 = vadd.xlane.f32.xlu0 %v1091
      %v1093 = vpop.xlane.xlu0 %1092
      %v1094 = vsel %vm836, %v1090, 0.0
      %1095 = vadd.xlane.f32.xlu0 %v1094
      %v1096 = vpop.xlane.xlu0 %1095
      %v1097 = vrcp.pop %v1093
      %v1098 = vrcp.pop %v1096
      %v1099 = vmul.f32 %v1088, %v1097
      %v1100 = vmul.f32 %v1090, %v1098
      %v1101 = vpack.c.bf16 %v1100, %v1099
      %1102 = vrot.lane.b32.xlu0 %v784, 48
      %v1103 = vpop.permute.xlu0 %1102
      %v1106 = vsel %vm836, %v1101, 0
      %1108 = vmatprep.subr.bf16.mxu0 0
      %1109 = vmatpush1.bf16.msra.mxu0 0
      %1110 = vmatprep.subr.bf16.mxu0 0
      %1111 = vmatpush1.bf16.msra.mxu0 0
      %1112 = vmatprep.subr.bf16.mxu0 0
      %1113 = vmatpush1.bf16.msra.mxu0 0
      %1114 = vmatprep.subr.bf16.mxu0 0
      %1115 = vmatpush1.bf16.msra.mxu0 0
      %1116 = vmatprep.subr.bf16.mxu0 0
      %1117 = vmatpush1.bf16.msra.mxu0 0
      %1118 = vmatprep.subr.bf16.mxu0 0
      %1119 = vmatpush1.bf16.msra.mxu0 0
      %1120 = vmatprep.subr.bf16.mxu0 0
      %1121 = vmatpush1.bf16.msra.mxu0 0
      %1122 = vmatprep.subr.bf16.mxu0 0
      %1123 = vmatpush1.bf16.msra.mxu0 %v1103
      %1124 = vmatprep.subr.bf16.mxu0 0
      %1125 = vmatpush2.bf16.msra.mxu0 0
      %1126 = vmatprep.subr.bf16.mxu0 0
      %1127 = vmatpush2.bf16.msra.mxu0 0
      %1128 = vmatprep.subr.bf16.mxu0 0
      %1129 = vmatpush2.bf16.msra.mxu0 0
      %1130 = vmatprep.subr.bf16.mxu0 0
      %1131 = vmatpush2.bf16.msra.mxu0 0
      %1132 = vmatprep.subr.bf16.mxu0 0
      %1133 = vmatpush2.bf16.msra.mxu0 0
      %1134 = vmatprep.subr.bf16.mxu0 0
      %1135 = vmatpush2.bf16.msra.mxu0 0
      %1136 = vmatprep.subr.bf16.mxu0 0
      %1137 = vmatpush2.bf16.msra.mxu0 0
      %1138 = vmatprep.subr.bf16.mxu0 0
      %1139 = vmatpush2.bf16.msra.mxu0 0
      %1140 = vmatprep.mubr.bf16.mxu0 0
      %1141 = vmatmul.mubr.bf16.gmra.mxu0 %v1106
      %v1142 = vpop.f32.mrf.mxu0
      %v1143 = vadd.f32 0.0, %v1142
      %v1144 = vpop.f32.mrf.mxu0
      %v1145 = vpop.f32.mrf.mxu0
      %v1146 = vadd.f32 0.0, %v1145
      %v1147 = vpop.f32.mrf.mxu0
      %1148 = vdwg.mxu0
      %1149 = vrot.lane.b32.xlu0 %v784, 104
      %v1150 = vpop.permute.xlu0 %1149
      %1151 = vrot.lane.b32.xlu0 %v784, 72
      %v1152 = vpop.permute.xlu0 %1151
      %v1154 = vsel %vm788, %v1150, 0
      %v1157 = vsel %vm788, %v1152, 0
      %1159 = vmatprep.subr.bf16.mxu0 0
      %1160 = vmatpush1.bf16.xpose.msra.mxu0 0
      %1161 = vmatprep.subr.bf16.mxu0 0
      %1162 = vmatpush1.bf16.xpose.msra.mxu0 0
      %1163 = vmatprep.subr.bf16.mxu0 0
      %1164 = vmatpush1.bf16.xpose.msra.mxu0 0
      %1165 = vmatprep.subr.bf16.mxu0 0
      %1166 = vmatpush1.bf16.xpose.msra.mxu0 0
      %1167 = vmatprep.subr.bf16.mxu0 0
      %1168 = vmatpush1.bf16.xpose.msra.mxu0 0
      %1169 = vmatprep.subr.bf16.mxu0 0
      %1170 = vmatpush1.bf16.xpose.msra.mxu0 0
      %1171 = vmatprep.subr.bf16.mxu0 0
      %1172 = vmatpush1.bf16.xpose.msra.mxu0 0
      %1173 = vmatprep.subr.bf16.mxu0 0
      %1174 = vmatpush1.bf16.xpose.msra.mxu0 %v1157
      %1175 = vmatprep.subr.bf16.mxu0 0
      %1176 = vmatpush2.bf16.xpose.msra.mxu0 0
      %1177 = vmatprep.subr.bf16.mxu0 0
      %1178 = vmatpush2.bf16.xpose.msra.mxu0 0
      %1179 = vmatprep.subr.bf16.mxu0 0
      %1180 = vmatpush2.bf16.xpose.msra.mxu0 0
      %1181 = vmatprep.subr.bf16.mxu0 0
      %1182 = vmatpush2.bf16.xpose.msra.mxu0 0
      %1183 = vmatprep.subr.bf16.mxu0 0
      %1184 = vmatpush2.bf16.xpose.msra.mxu0 0
      %1185 = vmatprep.subr.bf16.mxu0 0
      %1186 = vmatpush2.bf16.xpose.msra.mxu0 0
      %1187 = vmatprep.subr.bf16.mxu0 0
      %1188 = vmatpush2.bf16.xpose.msra.mxu0 0
      %1189 = vmatprep.subr.bf16.mxu0 0
      %1190 = vmatpush2.bf16.xpose.msra.mxu0 0
      %1191 = vmatprep.mubr.bf16.mxu0 0
      %1192 = vmatmul.mubr.bf16.gmra.mxu0 %v1154
      %v1193 = vpop.f32.mrf.mxu0
      %v1194 = vadd.f32 %v675, %v1193
      %v1195 = vpop.f32.mrf.mxu0
      %v1196 = vpop.f32.mrf.mxu0
      %v1197 = vadd.f32 %v675, %v1196
      %v1198 = vpop.f32.mrf.mxu0
      %1199 = vdwg.mxu0
      %v1200 = vsel %vm836, %v1194, -inf
      %1201 = vmax.xlane.f32.xlu0 %v1200
      %v1202 = vpop.xlane.xlu0 %1201
      %v1203 = vsel %vm836, %v1197, -inf
      %1204 = vmax.xlane.f32.xlu0 %v1203
      %v1205 = vpop.xlane.xlu0 %1204
      %v1206 = vsub.f32 %v1194, %v1202
      %v1207 = vsub.f32 %v1197, %v1205
      %v1208 = vmul.f32 %v1206, 1.442695
      %v1209 = vpow.pop %v1208
      %v1210 = vmul.f32 %v1207, 1.442695
      %v1211 = vpow.pop %v1210
      %v1212 = vsel %vm836, %v1209, 0.0
      %1213 = vadd.xlane.f32.xlu0 %v1212
      %v1214 = vpop.xlane.xlu0 %1213
      %v1215 = vsel %vm836, %v1211, 0.0
      %1216 = vadd.xlane.f32.xlu0 %v1215
      %v1217 = vpop.xlane.xlu0 %1216
      %v1218 = vrcp.pop %v1214
      %v1219 = vrcp.pop %v1217
      %v1220 = vmul.f32 %v1209, %v1218
      %v1221 = vmul.f32 %v1211, %v1219
      %v1222 = vpack.c.bf16 %v1221, %v1220
      %1223 = vrot.lane.b32.xlu0 %v784, 40
      %v1224 = vpop.permute.xlu0 %1223
      %v1227 = vsel %vm836, %v1222, 0
      %1229 = vmatprep.subr.bf16.mxu0 0
      %1230 = vmatpush1.bf16.msra.mxu0 0
      %1231 = vmatprep.subr.bf16.mxu0 0
      %1232 = vmatpush1.bf16.msra.mxu0 0
      %1233 = vmatprep.subr.bf16.mxu0 0
      %1234 = vmatpush1.bf16.msra.mxu0 0
      %1235 = vmatprep.subr.bf16.mxu0 0
      %1236 = vmatpush1.bf16.msra.mxu0 0
      %1237 = vmatprep.subr.bf16.mxu0 0
      %1238 = vmatpush1.bf16.msra.mxu0 0
      %1239 = vmatprep.subr.bf16.mxu0 0
      %1240 = vmatpush1.bf16.msra.mxu0 0
      %1241 = vmatprep.subr.bf16.mxu0 0
      %1242 = vmatpush1.bf16.msra.mxu0 0
      %1243 = vmatprep.subr.bf16.mxu0 0
      %1244 = vmatpush1.bf16.msra.mxu0 %v1224
      %1245 = vmatprep.subr.bf16.mxu0 0
      %1246 = vmatpush2.bf16.msra.mxu0 0
      %1247 = vmatprep.subr.bf16.mxu0 0
      %1248 = vmatpush2.bf16.msra.mxu0 0
      %1249 = vmatprep.subr.bf16.mxu0 0
      %1250 = vmatpush2.bf16.msra.mxu0 0
      %1251 = vmatprep.subr.bf16.mxu0 0
      %1252 = vmatpush2.bf16.msra.mxu0 0
      %1253 = vmatprep.subr.bf16.mxu0 0
      %1254 = vmatpush2.bf16.msra.mxu0 0
      %1255 = vmatprep.subr.bf16.mxu0 0
      %1256 = vmatpush2.bf16.msra.mxu0 0
      %1257 = vmatprep.subr.bf16.mxu0 0
      %1258 = vmatpush2.bf16.msra.mxu0 0
      %1259 = vmatprep.subr.bf16.mxu0 0
      %1260 = vmatpush2.bf16.msra.mxu0 0
      %1261 = vmatprep.mubr.bf16.mxu0 0
      %1262 = vmatmul.mubr.bf16.gmra.mxu0 %v1227
      %v1263 = vpop.f32.mrf.mxu0
      %v1264 = vadd.f32 0.0, %v1263
      %v1265 = vpop.f32.mrf.mxu0
      %v1266 = vpop.f32.mrf.mxu0
      %v1267 = vadd.f32 0.0, %v1266
      %v1268 = vpop.f32.mrf.mxu0
      %1269 = vdwg.mxu0
      %1272 = vrot.lane.b32.xlu0 %v1022, 8
      %v1273 = vpop.permute.xlu0 %1272
      %1274 = vrot.lane.b32.xlu0 %v1025, 8
      %v1275 = vpop.permute.xlu0 %1274
      %1280 = vrot.lane.b32.xlu0 %v1143, 16
      %v1281 = vpop.permute.xlu0 %1280
      %1282 = vrot.lane.b32.xlu0 %v1146, 16
      %v1283 = vpop.permute.xlu0 %1282
      %1288 = vrot.lane.b32.xlu0 %v1264, 24
      %v1289 = vpop.permute.xlu0 %1288
      %1290 = vrot.lane.b32.xlu0 %v1267, 24
      %v1291 = vpop.permute.xlu0 %1290
      %v1294 = vsel %vm788, %v901, %v1273
      %v1295 = vsel %vm788, %v904, %v1275
      %v1296 = vsel %vm836, %v1294, %v1281
      %v1297 = vsel %vm836, %v1295, %v1283
      %vm1298 = vcmask 195584
      %v1299 = vsel %vm1298, %v1296, %v1289
      %v1300 = vsel %vm1298, %v1297, %v1291
      %v1301 = vld [vmem:[%s630] sm:$0xf]
      %v1302 = vld [vmem:[%s630 + $0x4] sm:$0xf]
      %v1303 = vld [vmem:[%s630 + $0x8] sm:$0xf]
      %v1304 = vld [vmem:[%s630 + $0xc] sm:$0xf]
      %v1305 = vpack.c.bf16 %v1300, %v1299
      %v1310 = vunpack.c.l.b16 %v1301
      %v1311 = vunpack.c.l.b16 %v1302
      %v1312 = vunpack.c.l.b16 %v1303
      %v1313 = vunpack.c.l.b16 %v1304
      %v1314 = vpack.c.b16 %v1311, %v1310
      %v1315 = vpack.c.b16 %v1313, %v1312
      %v1319 = vsel %vm679, %v1305, 0
      %1321 = vmatprep.subr.bf16.mxu0 0
      %1322 = vmatpush1.bf16.msra.mxu0 0
      %1323 = vmatprep.subr.bf16.mxu0 0
      %1324 = vmatpush1.bf16.msra.mxu0 0
      %1325 = vmatprep.subr.bf16.mxu0 0
      %1326 = vmatpush1.bf16.msra.mxu0 0
      %1327 = vmatprep.subr.bf16.mxu0 0
      %1328 = vmatpush1.bf16.msra.mxu0 0
      %1329 = vmatprep.subr.bf16.mxu0 0
      %1330 = vmatpush1.bf16.msra.mxu0 0
      %1331 = vmatprep.subr.bf16.mxu0 0
      %1332 = vmatpush1.bf16.msra.mxu0 0
      %1333 = vmatprep.subr.bf16.mxu0 0
      %1334 = vmatpush1.bf16.msra.mxu0 %v1315
      %1335 = vmatprep.subr.bf16.mxu0 0
      %1336 = vmatpush1.bf16.msra.mxu0 %v1314
      %1337 = vmatprep.subr.bf16.mxu0 0
      %1338 = vmatpush2.bf16.msra.mxu0 0
      %1339 = vmatprep.subr.bf16.mxu0 0
      %1340 = vmatpush2.bf16.msra.mxu0 0
      %1341 = vmatprep.subr.bf16.mxu0 0
      %1342 = vmatpush2.bf16.msra.mxu0 0
      %1343 = vmatprep.subr.bf16.mxu0 0
      %1344 = vmatpush2.bf16.msra.mxu0 0
      %1345 = vmatprep.subr.bf16.mxu0 0
      %1346 = vmatpush2.bf16.msra.mxu0 0
      %1347 = vmatprep.subr.bf16.mxu0 0
      %1348 = vmatpush2.bf16.msra.mxu0 0
      %1349 = vmatprep.subr.bf16.mxu0 0
      %1350 = vmatpush2.bf16.msra.mxu0 0
      %1351 = vmatprep.subr.bf16.mxu0 0
      %1352 = vmatpush2.bf16.msra.mxu0 0
      %1353 = vmatprep.mubr.bf16.mxu0 0
      %1354 = vmatmul.mubr.bf16.gmra.mxu0 %v1319
      %v1355 = vpop.f32.mrf.mxu0
      %v1356 = vadd.f32 0.0, %v1355
      %v1357 = vpop.f32.mrf.mxu0
      %v1358 = vpop.f32.mrf.mxu0
      %v1359 = vadd.f32 0.0, %v1358
      %v1360 = vpop.f32.mrf.mxu0
      %1361 = vdwg.mxu0
      %v1362 = vadd.f32 %v668, %v1356
      %v1363 = vadd.f32 %v669, %v1359
      %v1364 = vld [vmem:[%s633] sm:$0x1]
      %v1365 = vld [vmem:[%s636] sm:$0x1]
      %v1366 = vsel %vm679, %v1362, 0.0
      %1367 = vadd.xlane.f32.xlu0 %v1366
      %v1368 = vpop.xlane.xlu0 %1367
      %v1369 = vsel %vm679, %v1363, 0.0
      %1370 = vadd.xlane.f32.xlu0 %v1369
      %v1371 = vpop.xlane.xlu0 %1370
      %v1372 = vmul.f32 %v1368, %v686
      %v1373 = vmul.f32 %v1371, %v686
      %v1374 = vsub.f32 %v1362, %v1372
      %v1375 = vsub.f32 %v1363, %v1373
      %v1376 = vmul.f32 %v1374, %v1374
      %v1377 = vmul.f32 %v1375, %v1375
      %v1378 = vsel %vm679, %v1376, 0.0
      %1379 = vadd.xlane.f32.xlu0 %v1378
      %v1380 = vpop.xlane.xlu0 %1379
      %v1381 = vsel %vm679, %v1377, 0.0
      %1382 = vadd.xlane.f32.xlu0 %v1381
      %v1383 = vpop.xlane.xlu0 %1382
      %v1384 = vmul.f32 %v1380, %v686
      %v1385 = vmul.f32 %v1383, %v686
      %v1386 = vadd.f32 %v1384, 1e-06
      %v1387 = vadd.f32 %v1385, 1e-06
      %v1388 = vrsqrt.pop %v1386
      %v1389 = vrsqrt.pop %v1387
      %v1390 = vmul.f32 %v1374, %v1388
      %v1391 = vmul.f32 %v1375, %v1389
      %v1393 = vlaneseq
      %v1394 = vshrl.u32 %v1393, 7
      %v1395 = vsub.s32 0, %v1394
      %v1396 = vrot.slane %v1364, %v1395
      %v1398 = vmul.f32 %v1390, %v1396
      %v1399 = vmul.f32 %v1391, %v1396
      %v1401 = vlaneseq
      %v1402 = vshrl.u32 %v1401, 7
      %v1403 = vsub.s32 0, %v1402
      %v1404 = vrot.slane %v1365, %v1403
      %v1406 = vadd.f32 %v1398, %v1404
      %v1407 = vadd.f32 %v1399, %v1404
      %v1408 = vld [vmem:[%s641] sm:$0xf]
      %v1409 = vld [vmem:[%s641 + $0x4] sm:$0xf]
      %v1410 = vld [vmem:[%s641 + $0x8] sm:$0xf]
      %v1411 = vld [vmem:[%s641 + $0xc] sm:$0xf]
      %v1412 = vpack.c.bf16 %v1407, %v1406
      %v1413 = vld [vmem:[%s644] sm:$0x1]
      %v1415 = vlaneseq
      %v1416 = vshrl.u32 %v1415, 7
      %v1417 = vsub.s32 0, %v1416
      %v1418 = vrot.slane %v1413, %v1417
      %v1424 = vunpack.c.l.b16 %v1408
      %v1425 = vunpack.c.l.b16 %v1409
      %v1426 = vunpack.c.l.b16 %v1410
      %v1427 = vunpack.c.l.b16 %v1411
      %v1428 = vpack.c.b16 %v1425, %v1424
      %v1429 = vpack.c.b16 %v1427, %v1426
      %v1433 = vsel %vm679, %v1412, 0
      %1435 = vmatprep.subr.bf16.mxu0 0
      %1436 = vmatpush1.bf16.msra.mxu0 0
      %1437 = vmatprep.subr.bf16.mxu0 0
      %1438 = vmatpush1.bf16.msra.mxu0 0
      %1439 = vmatprep.subr.bf16.mxu0 0
      %1440 = vmatpush1.bf16.msra.mxu0 0
      %1441 = vmatprep.subr.bf16.mxu0 0
      %1442 = vmatpush1.bf16.msra.mxu0 0
      %1443 = vmatprep.subr.bf16.mxu0 0
      %1444 = vmatpush1.bf16.msra.mxu0 0
      %1445 = vmatprep.subr.bf16.mxu0 0
      %1446 = vmatpush1.bf16.msra.mxu0 0
      %1447 = vmatprep.subr.bf16.mxu0 0
      %1448 = vmatpush1.bf16.msra.mxu0 %v1429
      %1449 = vmatprep.subr.bf16.mxu0 0
      %1450 = vmatpush1.bf16.msra.mxu0 %v1428
      %1451 = vmatprep.subr.bf16.mxu0 0
      %1452 = vmatpush2.bf16.msra.mxu0 0
      %1453 = vmatprep.subr.bf16.mxu0 0
      %1454 = vmatpush2.bf16.msra.mxu0 0
      %1455 = vmatprep.subr.bf16.mxu0 0
      %1456 = vmatpush2.bf16.msra.mxu0 0
      %1457 = vmatprep.subr.bf16.mxu0 0
      %1458 = vmatpush2.bf16.msra.mxu0 0
      %1459 = vmatprep.subr.bf16.mxu0 0
      %1460 = vmatpush2.bf16.msra.mxu0 0
      %1461 = vmatprep.subr.bf16.mxu0 0
      %1462 = vmatpush2.bf16.msra.mxu0 0
      %1463 = vmatprep.subr.bf16.mxu0 0
      %1464 = vmatpush2.bf16.msra.mxu0 0
      %1465 = vmatprep.subr.bf16.mxu0 0
      %1466 = vmatpush2.bf16.msra.mxu0 0
      %1467 = vmatprep.mubr.bf16.mxu0 0
      %1468 = vmatmul.mubr.bf16.gmra.mxu0 %v1433
      %v1469 = vpop.f32.mrf.mxu0
      %v1470 = vadd.f32 %v1418, %v1469
      %v1471 = vpop.f32.mrf.mxu0
      %v1472 = vpop.f32.mrf.mxu0
      %v1473 = vadd.f32 %v1418, %v1472
      %v1474 = vpop.f32.mrf.mxu0
      %1475 = vdwg.mxu0
      %v1476 = vmax.f32 %v1470, 0.0
      %v1477 = vmax.f32 %v1473, 0.0
      %v1478 = vpack.c.bf16 %v1477, %v1476
      %v1479 = vld [vmem:[%s649] sm:$0xf]
      %v1480 = vld [vmem:[%s649 + $0x4] sm:$0xf]
      %v1481 = vld [vmem:[%s649 + $0x8] sm:$0xf]
      %v1482 = vld [vmem:[%s649 + $0xc] sm:$0xf]
      %v1483 = vld [vmem:[%s649 + $0x10] sm:$0xf]
      %v1484 = vld [vmem:[%s649 + $0x14] sm:$0xf]
      %v1485 = vld [vmem:[%s649 + $0x18] sm:$0xf]
      %v1486 = vld [vmem:[%s649 + $0x1c] sm:$0xf]
      %v1487 = vld [vmem:[%s652] sm:$0x1]
      %v1489 = vlaneseq
      %v1490 = vshrl.u32 %v1489, 7
      %v1491 = vsub.s32 0, %v1490
      %v1492 = vrot.slane %v1487, %v1491
      %v1502 = vunpack.c.l.b16 %v1479
      %v1503 = vunpack.c.l.b16 %v1480
      %v1504 = vunpack.c.l.b16 %v1481
      %v1505 = vunpack.c.l.b16 %v1482
      %v1506 = vunpack.c.l.b16 %v1483
      %v1507 = vunpack.c.l.b16 %v1484
      %v1508 = vunpack.c.l.b16 %v1485
      %v1509 = vunpack.c.l.b16 %v1486
      %v1510 = vpack.c.b16 %v1503, %v1502
      %v1511 = vpack.c.b16 %v1505, %v1504
      %v1512 = vpack.c.b16 %v1507, %v1506
      %v1513 = vpack.c.b16 %v1509, %v1508
      %vm1518 = vcmask 523264
      %v1520 = vsel %vm1518, %v1478, 0
      %1522 = vmatprep.subr.bf16.mxu0 0
      %1523 = vmatpush1.bf16.msra.mxu0 0
      %1524 = vmatprep.subr.bf16.mxu0 0
      %1525 = vmatpush1.bf16.msra.mxu0 0
      %1526 = vmatprep.subr.bf16.mxu0 0
      %1527 = vmatpush1.bf16.msra.mxu0 0
      %1528 = vmatprep.subr.bf16.mxu0 0
      %1529 = vmatpush1.bf16.msra.mxu0 0
      %1530 = vmatprep.subr.bf16.mxu0 0
      %1531 = vmatpush1.bf16.msra.mxu0 %v1513
      %1532 = vmatprep.subr.bf16.mxu0 0
      %1533 = vmatpush1.bf16.msra.mxu0 %v1512
      %1534 = vmatprep.subr.bf16.mxu0 0
      %1535 = vmatpush1.bf16.msra.mxu0 %v1511
      %1536 = vmatprep.subr.bf16.mxu0 0
      %1537 = vmatpush1.bf16.msra.mxu0 %v1510
      %1538 = vmatprep.subr.bf16.mxu0 0
      %1539 = vmatpush2.bf16.msra.mxu0 0
      %1540 = vmatprep.subr.bf16.mxu0 0
      %1541 = vmatpush2.bf16.msra.mxu0 0
      %1542 = vmatprep.subr.bf16.mxu0 0
      %1543 = vmatpush2.bf16.msra.mxu0 0
      %1544 = vmatprep.subr.bf16.mxu0 0
      %1545 = vmatpush2.bf16.msra.mxu0 0
      %1546 = vmatprep.subr.bf16.mxu0 0
      %1547 = vmatpush2.bf16.msra.mxu0 0
      %1548 = vmatprep.subr.bf16.mxu0 0
      %1549 = vmatpush2.bf16.msra.mxu0 0
      %1550 = vmatprep.subr.bf16.mxu0 0
      %1551 = vmatpush2.bf16.msra.mxu0 0
      %1552 = vmatprep.subr.bf16.mxu0 0
      %1553 = vmatpush2.bf16.msra.mxu0 0
      %1554 = vmatprep.mubr.bf16.mxu0 0
      %1555 = vmatmul.mubr.bf16.gmra.mxu0 %v1520
      %v1556 = vpop.f32.mrf.mxu0
      %v1557 = vadd.f32 %v1492, %v1556
      %v1558 = vpop.f32.mrf.mxu0
      %v1559 = vpop.f32.mrf.mxu0
      %v1560 = vadd.f32 %v1492, %v1559
      %v1561 = vpop.f32.mrf.mxu0
      %1562 = vdwg.mxu0
      %v1563 = vadd.f32 %v1362, %v1557
      %v1564 = vadd.f32 %v1363, %v1560
      %p1565 = scmp.eq.s32.totalorder %s30, 2
      // Predicated region
      $region81: #{generator_forward.2} parent=75 // pred_check
        %p1566 = pneg %p1565
      $region82: #{generator_forward.2} parent=75 // pred_check_branch
        %1568 = sbr.rel (%p1566) target = $region84
      $region83: #{generator_forward.2} parent=75 // pred_region
        %v1569 = vld [vmem:[%s12] sm:$0x1]
        %v1570 = vld [vmem:[%s13] sm:$0x1]
        %v1571 = vsel %vm679, %v1563, 0.0
        %1572 = vadd.xlane.f32.xlu0 %v1571
        %v1573 = vpop.xlane.xlu0 %1572
        %v1574 = vsel %vm679, %v1564, 0.0
        %1575 = vadd.xlane.f32.xlu0 %v1574
        %v1576 = vpop.xlane.xlu0 %1575
        %v1577 = vmul.f32 %v1573, %v686
        %v1578 = vmul.f32 %v1576, %v686
        %v1579 = vsub.f32 %v1563, %v1577
        %v1580 = vsub.f32 %v1564, %v1578
        %v1581 = vmul.f32 %v1579, %v1579
        %v1582 = vmul.f32 %v1580, %v1580
        %v1583 = vsel %vm679, %v1581, 0.0
        %1584 = vadd.xlane.f32.xlu0 %v1583
        %v1585 = vpop.xlane.xlu0 %1584
        %v1586 = vsel %vm679, %v1582, 0.0
        %1587 = vadd.xlane.f32.xlu0 %v1586
        %v1588 = vpop.xlane.xlu0 %1587
        %v1589 = vmul.f32 %v1585, %v686
        %v1590 = vmul.f32 %v1588, %v686
        %v1591 = vadd.f32 %v1589, 1e-06
        %v1592 = vadd.f32 %v1590, 1e-06
        %v1593 = vrsqrt.pop %v1591
        %v1594 = vrsqrt.pop %v1592
        %v1595 = vmul.f32 %v1579, %v1593
        %v1596 = vmul.f32 %v1580, %v1594
        %v1598 = vlaneseq
        %v1599 = vshrl.u32 %v1598, 7
        %v1600 = vsub.s32 0, %v1599
        %v1601 = vrot.slane %v1569, %v1600
        %v1603 = vmul.f32 %v1595, %v1601
        %v1604 = vmul.f32 %v1596, %v1601
        %v1606 = vlaneseq
        %v1607 = vshrl.u32 %v1606, 7
        %v1608 = vsub.s32 0, %v1607
        %v1609 = vrot.slane %v1570, %v1608
        %v1611 = vadd.f32 %v1603, %v1609
        %v1612 = vadd.f32 %v1604, %v1609
        %1613 = vst.msk [vmem:[%s657] sm:$0xff] %vm679, %v1611
        %1614 = vst.msk [vmem:[%s657 + $0x8] sm:$0xff] %vm679, %v1612
      $region84: #{generator_forward.2} parent=75 // pred_fallthru
        _
      %p1615 = scmp.ne.s32.totalorder %s30, 2
      // Predicated region
      $region85: #{generator_forward.2} parent=75 // pred_check
        %p1616 = pneg %p1615
      $region86: #{generator_forward.2} parent=75 // pred_check_branch
        %1618 = sbr.rel (%p1616) target = $region88
      $region87: #{generator_forward.2} parent=75 // pred_region
        %1619 = vst.msk [vmem:[%s657] sm:$0xff] %vm679, %v1563
        %1620 = vst.msk [vmem:[%s657 + $0x8] sm:$0xff] %vm679, %v1564
      $region88: #{generator_forward.2} parent=75 // pred_fallthru
        _
      %p1621 = scmp.lt.s32.totalorder %s29, 1
      %s1622 = scalar_select %p1621, %s29, 1
      %s1623 = smul.addr %s1622, 2
      %s1624 = smul.addr %s1623, 8
      %s1625 = scalar_lea.vmem %s14, %s1624
      // Predicated region
      $region89: #{generator_forward.2} parent=75 // pred_check
        %p1626 = pneg %p409
      $region90: #{generator_forward.2} parent=75 // pred_check_branch
        %1628 = sbr.rel (%p1626) target = $region92
      $region91: #{generator_forward.2} parent=75 // pred_region
        _
      $region92: #{generator_forward.2} parent=75 // pred_fallthru
        _
    $region76: #{generator_forward.2} parent=5 // pred_fallthru
      _
    %p1629 = scmp.le.s32.totalorder 2, %s20
    // Predicated region
    $region93: #{generator_forward.2} parent=5 // pred_check
      %p1630 = pneg %p1629
    $region94: #{generator_forward.2} parent=5 // pred_check_branch
      %1632 = sbr.rel (%p1630) target = $region96
    $region95: #{generator_forward.2} parent=5 // pred_region
      %s1633 = ssub.s32 %s20, 2
      // Predicated region
      $region97: #{generator_forward.2} parent=95 // pred_check
        %p1634 = pneg %p415
      $region98: #{generator_forward.2} parent=95 // pred_check_branch
        %1636 = sbr.rel (%p1634) target = $region100
      $region99: #{generator_forward.2} parent=95 // pred_region
        %p1637 = scmp.lt.s32.totalorder %s31, 1
        %s1638 = scalar_select %p1637, %s31, 1
        %s1639 = smul.addr %s1638, 2
        %s1640 = smul.addr %s1639, 8
        %s1641 = scalar_lea.vmem %s14, %s1640
      $region100: #{generator_forward.2} parent=95 // pred_fallthru
        _
    $region96: #{generator_forward.2} parent=5 // pred_fallthru
      _
  $region6: #{generator_forward.2} parent=0 // loop_footer
    %s24 = sadd.s32 1, %s20
  $region7: #{generator_forward.2} parent=0 // loop_footer_branch
    %19 = sbr.rel target = $region3
  $region8: #{generator_forward.2} parent=0 // loop_exit
    _

// kernel: generator_forward.3
$region0: #{generator_forward.3}
  #allocation0 [shape = 'u32[]', space=smem, size = 0x4, offset = 0x4, fixed_abs, tag = 'smem constant byte address 0x4 - core index']
  #allocation1 [shape = 'u32[144,128]{1,0:T(1,128)}', space=vmem, size = 0x12000, scoped, tag = 'internal scratch']
  %s0 = inlined_call_operand.vmem [shape: f32[2,8,32], index: 0, kind: input, shape index: {}]
  %s1 = inlined_call_operand.vmem [shape: f32[2,16,32], index: 1, kind: input, shape index: {}]
  %s2 = inlined_call_operand.vmem [shape: f32[2,1,16], index: 2, kind: input, shape index: {}]
  %s3 = inlined_call_operand.vmem [shape: f32[1,8,8], index: 3, kind: input, shape index: {}]
  %s4 = inlined_call_operand.vmem [shape: f32[1,1,32], index: 4, kind: input, shape index: {}]
  %s5 = inlined_call_operand.vmem [shape: f32[1,1,32], index: 5, kind: input, shape index: {}]
  %s6 = inlined_call_operand.vmem [shape: bf16[1,32,96], index: 6, kind: input, shape index: {}]
  %s7 = inlined_call_operand.vmem [shape: bf16[1,32,32], index: 7, kind: input, shape index: {}]
  %s8 = inlined_call_operand.vmem [shape: f32[1,1,32], index: 8, kind: input, shape index: {}]
  %s9 = inlined_call_operand.vmem [shape: f32[1,1,32], index: 9, kind: input, shape index: {}]
  %s10 = inlined_call_operand.vmem [shape: bf16[1,32,32], index: 10, kind: input, shape index: {}]
  %s11 = inlined_call_operand.vmem [shape: bf16[1,32,64], index: 11, kind: input, shape index: {}]
  %s12 = inlined_call_operand.vmem [shape: bf16[1,32,32], index: 12, kind: input, shape index: {}]
  %s13 = inlined_call_operand.vmem [shape: f32[1,1,32], index: 13, kind: input, shape index: {}]
  %s14 = inlined_call_operand.vmem [shape: f32[1,1,32], index: 14, kind: input, shape index: {}]
  %s15 = inlined_call_operand.vmem [shape: bf16[1,32,64], index: 15, kind: input, shape index: {}]
  %s16 = inlined_call_operand.vmem [shape: f32[1,1,64], index: 16, kind: input, shape index: {}]
  %s17 = inlined_call_operand.vmem [shape: bf16[1,64,32], index: 17, kind: input, shape index: {}]
  %s18 = inlined_call_operand.vmem [shape: f32[1,1,32], index: 18, kind: input, shape index: {}]
  %s19 = inlined_call_operand.vmem [shape: f32[1,32], index: 19, kind: input, shape index: {}]
  %s20 = inlined_call_operand.vmem [shape: f32[1,32], index: 20, kind: input, shape index: {}]
  %s21 = inlined_call_operand.hbm [shape: f32[2,8,32], index: 21, kind: output, shape index: {}]
  %s22 = sld [smem:[#allocation0]]
  $region129: #{generator_forward.3} parent=0
    _
  %s24 = ssub.s32 1, %s22
  %s25 = scalar_select 0, %s24, %s22
  $region1: #{generator_forward.3} parent=0
    #allocation2 [shape = 'u8[8192]{0}', space=vmem, size = 0x2000, scoped, tag = 'output window, operand 0']
    #allocation3 [shape = 's32[2]{0}', space=sflag, size = 0x8, scoped, tag = 'scoped memory for generator_forward.3']
    %26 = vsyncpa [#allocation3], 0
    %s27 = scalar_lea.sflag [#allocation3], 1
    %28 = vsyncpa %s27, 0
    loop: start=0, step=1, limit=4
    $region2: #{generator_forward.3} parent=1 // loop_pre_header
      _
    $region3: #{generator_forward.3} parent=1 // loop_header
      %s30 = sphi 0, %s34
      %p31 = scmp.ge.s32.totalorder %s30, 4
      %s37 = sphi 0, %s49
      %s38 = sphi 0, %s45
      %s39 = sphi 0, %s37
      %s40 = sphi 0, %s38
      %s41 = sphi 0, %s39
      %s42 = sphi 0, %s40
      %s52 = sphi 0, %s54
      %s55 = sphi 0, %s52
      %s56 = sphi 0, %s55
      %s72 = sphi 0, %s56
      %s78 = sphi 0, %s80
      %s81 = sphi 0, %s78
      %s82 = sphi 0, %s81
      %s98 = sphi 0, %s82
      %s104 = sphi 0, %s106
      %s107 = sphi 0, %s104
      %s108 = sphi 0, %s107
      %s124 = sphi 0, %s108
      %s128 = sphi 0, %s128
      %s130 = sphi 0, %s128
      %s131 = sphi 0, %s130
      %s145 = sphi 0, %s131
      %s151 = sphi 0, %s153
      %s154 = sphi 0, %s151
      %s155 = sphi 0, %s154
      %s171 = sphi 0, %s155
      %s177 = sphi 0, %s179
      %s180 = sphi 0, %s177
      %s181 = sphi 0, %s180
      %s197 = sphi 0, %s181
      %s203 = sphi 0, %s205
      %s206 = sphi 0, %s203
      %s207 = sphi 0, %s206
      %s223 = sphi 0, %s207
      %s229 = sphi 0, %s231
      %s232 = sphi 0, %s229
      %s233 = sphi 0, %s232
      %s249 = sphi 0, %s233
      %s255 = sphi 0, %s257
      %s258 = sphi 0, %s255
      %s259 = sphi 0, %s258
      %s275 = sphi 0, %s259
      %s281 = sphi 0, %s283
      %s284 = sphi 0, %s281
      %s285 = sphi 0, %s284
      %s301 = sphi 0, %s285
      %s307 = sphi 0, %s309
      %s310 = sphi 0, %s307
      %s311 = sphi 0, %s310
      %s327 = sphi 0, %s311
      %s333 = sphi 0, %s335
      %s336 = sphi 0, %s333
      %s337 = sphi 0, %s336
      %s353 = sphi 0, %s337
      %s359 = sphi 0, %s361
      %s362 = sphi 0, %s359
      %s363 = sphi 0, %s362
      %s379 = sphi 0, %s363
      %s385 = sphi 0, %s387
      %s388 = sphi 0, %s385
      %s389 = sphi 0, %s388
      %s405 = sphi 0, %s389
      %s411 = sphi 0, %s413
      %s414 = sphi 0, %s411
      %s415 = sphi 0, %s414
      %s431 = sphi 0, %s415
      %s437 = sphi 0, %s439
      %s440 = sphi 0, %s437
      %s441 = sphi 0, %s440
      %s457 = sphi 0, %s441
      %s463 = sphi 0, %s465
      %s466 = sphi 0, %s463
      %s467 = sphi 0, %s466
      %s483 = sphi 0, %s467
      %s489 = sphi 0, %s491
      %s492 = sphi 0, %s489
      %s493 = sphi 0, %s492
      %s509 = sphi 0, %s493
      %s515 = sphi 0, %s517
      %s518 = sphi 0, %s515
      %s519 = sphi 0, %s518
      %s535 = sphi 0, %s519
      %s539 = sphi 0, %s539
      %s541 = sphi 0, %s539
      %s542 = sphi 0, %s541
      %s556 = sphi 0, %s542
      %s560 = sphi 0, %s560
      %s562 = sphi 0, %s560
      %s563 = sphi 0, %s562
      %s577 = sphi 0, %s563
      %s583 = sphi 0, %s585
      %s586 = sphi 0, %s583
      %s587 = sphi 0, %s586
      %s603 = sphi 0, %s587
    $region4: #{generator_forward.3} parent=1 // loop_header_branch
      %33 = sbr.rel (%p31) target = $region8
    $region5: #{generator_forward.3} parent=1 // loop_body
      %s35 = ssub.s32 %s30, 1
      %s36 = ssub.s32 %s30, 2
      %s43 = sadd.s32 1, %s38
      %p44 = scmp.ge.s32.totalorder %s43, 1
      %s45 = scalar_select %p44, 0, %s43
      %s46 = sadd.s32 1, %s37
      %s47 = scalar_select %p44, %s46, %s37
      %p48 = scmp.ge.s32.totalorder %s47, 2
      %s49 = scalar_select %p48, 0, %s47
      %s50 = ssub.s32 %s37, %s49
      %p51 = scmp.eq.s32.totalorder %s50, 0
      %s53 = sadd.s32 %s52, 1
      %s54 = scalar_select %p51, %s52, %s53
      %p57 = pneg %p51
      %p58 = scmp.eq.s32.totalorder %s30, 1
      %p59 = por %p57, %p58
      %p60 = scmp.ne.s32.totalorder %s52, %s55
      %p61 = scmp.eq.s32.totalorder %s30, 0
      %p62 = por %p60, %p61
      %p63 = scmp.ne.s32.totalorder %s52, %s55
      %p64 = scmp.eq.s32.totalorder %s35, 1
      %p65 = por %p63, %p64
      %p66 = scmp.ne.s32.totalorder %s55, %s56
      %p67 = scmp.eq.s32.totalorder %s35, 0
      %p68 = por %p66, %p67
      %p69 = scmp.ne.s32.totalorder %s55, %s56
      %p70 = scmp.eq.s32.totalorder %s36, 1
      %p71 = por %p69, %p70
      %p73 = scmp.ne.s32.totalorder %s56, %s72
      %p74 = scmp.eq.s32.totalorder %s36, 0
      %p75 = por %p73, %p74
      %s76 = ssub.s32 %s37, %s49
      %p77 = scmp.eq.s32.totalorder %s76, 0
      %s79 = sadd.s32 %s78, 1
      %s80 = scalar_select %p77, %s78, %s79
      %p83 = pneg %p77
      %p84 = scmp.eq.s32.totalorder %s30, 1
      %p85 = por %p83, %p84
      %p86 = scmp.ne.s32.totalorder %s78, %s81
      %p87 = scmp.eq.s32.totalorder %s30, 0
      %p88 = por %p86, %p87
      %p89 = scmp.ne.s32.totalorder %s78, %s81
      %p90 = scmp.eq.s32.totalorder %s35, 1
      %p91 = por %p89, %p90
      %p92 = scmp.ne.s32.totalorder %s81, %s82
      %p93 = scmp.eq.s32.totalorder %s35, 0
      %p94 = por %p92, %p93
      %p95 = scmp.ne.s32.totalorder %s81, %s82
      %p96 = scmp.eq.s32.totalorder %s36, 1
      %p97 = por %p95, %p96
      %p99 = scmp.ne.s32.totalorder %s82, %s98
      %p100 = scmp.eq.s32.totalorder %s36, 0
      %p101 = por %p99, %p100
      %s102 = ssub.s32 %s37, %s49
      %p103 = scmp.eq.s32.totalorder %s102, 0
      %s105 = sadd.s32 %s104, 1
      %s106 = scalar_select %p103, %s104, %s105
      %p109 = pneg %p103
      %p110 = scmp.eq.s32.totalorder %s30, 1
      %p111 = por %p109, %p110
      %p112 = scmp.ne.s32.totalorder %s104, %s107
      %p113 = scmp.eq.s32.totalorder %s30, 0
      %p114 = por %p112, %p113
      %p115 = scmp.ne.s32.totalorder %s104, %s107
      %p116 = scmp.eq.s32.totalorder %s35, 1
      %p117 = por %p115, %p116
      %p118 = scmp.ne.s32.totalorder %s107, %s108
      %p119 = scmp.eq.s32.totalorder %s35, 0
      %p120 = por %p118, %p119
      %p121 = scmp.ne.s32.totalorder %s107, %s108
      %p122 = scmp.eq.s32.totalorder %s36, 1
      %p123 = por %p121, %p122
      %p125 = scmp.ne.s32.totalorder %s108, %s124
      %p126 = scmp.eq.s32.totalorder %s36, 0
      %p127 = por %p125, %p126
      %s129 = sadd.s32 %s128, 1
      %p132 = scmp.eq.s32.totalorder %s30, 1
      %p133 = scmp.ne.s32.totalorder %s128, %s130
      %p134 = scmp.eq.s32.totalorder %s30, 0
      %p135 = por %p133, %p134
      %p136 = scmp.ne.s32.totalorder %s128, %s130
      %p137 = scmp.eq.s32.totalorder %s35, 1
      %p138 = por %p136, %p137
      %p139 = scmp.ne.s32.totalorder %s130, %s131
      %p140 = scmp.eq.s32.totalorder %s35, 0
      %p141 = por %p139, %p140
      %p142 = scmp.ne.s32.totalorder %s130, %s131
      %p143 = scmp.eq.s32.totalorder %s36, 1
      %p144 = por %p142, %p143
      %p146 = scmp.ne.s32.totalorder %s131, %s145
      %p147 = scmp.eq.s32.totalorder %s36, 0
      %p148 = por %p146, %p147
      %s149 = ssub.s32 %s38, %s45
      %p150 = scmp.eq.s32.totalorder %s149, 0
      %s152 = sadd.s32 %s151, 1
      %s153 = scalar_select %p150, %s151, %s152
      %p156 = pneg %p150
      %p157 = scmp.eq.s32.totalorder %s30, 1
      %p158 = por %p156, %p157
      %p159 = scmp.ne.s32.totalorder %s151, %s154
      %p160 = scmp.eq.s32.totalorder %s30, 0
      %p161 = por %p159, %p160
      %p162 = scmp.ne.s32.totalorder %s151, %s154
      %p163 = scmp.eq.s32.totalorder %s35, 1
      %p164 = por %p162, %p163
      %p165 = scmp.ne.s32.totalorder %s154, %s155
      %p166 = scmp.eq.s32.totalorder %s35, 0
      %p167 = por %p165, %p166
      %p168 = scmp.ne.s32.totalorder %s154, %s155
      %p169 = scmp.eq.s32.totalorder %s36, 1
      %p170 = por %p168, %p169
      %p172 = scmp.ne.s32.totalorder %s155, %s171
      %p173 = scmp.eq.s32.totalorder %s36, 0
      %p174 = por %p172, %p173
      %s175 = ssub.s32 %s38, %s45
      %p176 = scmp.eq.s32.totalorder %s175, 0
      %s178 = sadd.s32 %s177, 1
      %s179 = scalar_select %p176, %s177, %s178
      %p182 = pneg %p176
      %p183 = scmp.eq.s32.totalorder %s30, 1
      %p184 = por %p182, %p183
      %p185 = scmp.ne.s32.totalorder %s177, %s180
      %p186 = scmp.eq.s32.totalorder %s30, 0
      %p187 = por %p185, %p186
      %p188 = scmp.ne.s32.totalorder %s177, %s180
      %p189 = scmp.eq.s32.totalorder %s35, 1
      %p190 = por %p188, %p189
      %p191 = scmp.ne.s32.totalorder %s180, %s181
      %p192 = scmp.eq.s32.totalorder %s35, 0
      %p193 = por %p191, %p192
      %p194 = scmp.ne.s32.totalorder %s180, %s181
      %p195 = scmp.eq.s32.totalorder %s36, 1
      %p196 = por %p194, %p195
      %p198 = scmp.ne.s32.totalorder %s181, %s197
      %p199 = scmp.eq.s32.totalorder %s36, 0
      %p200 = por %p198, %p199
      %s201 = ssub.s32 %s38, %s45
      %p202 = scmp.eq.s32.totalorder %s201, 0
      %s204 = sadd.s32 %s203, 1
      %s205 = scalar_select %p202, %s203, %s204
      %p208 = pneg %p202
      %p209 = scmp.eq.s32.totalorder %s30, 1
      %p210 = por %p208, %p209
      %p211 = scmp.ne.s32.totalorder %s203, %s206
      %p212 = scmp.eq.s32.totalorder %s30, 0
      %p213 = por %p211, %p212
      %p214 = scmp.ne.s32.totalorder %s203, %s206
      %p215 = scmp.eq.s32.totalorder %s35, 1
      %p216 = por %p214, %p215
      %p217 = scmp.ne.s32.totalorder %s206, %s207
      %p218 = scmp.eq.s32.totalorder %s35, 0
      %p219 = por %p217, %p218
      %p220 = scmp.ne.s32.totalorder %s206, %s207
      %p221 = scmp.eq.s32.totalorder %s36, 1
      %p222 = por %p220, %p221
      %p224 = scmp.ne.s32.totalorder %s207, %s223
      %p225 = scmp.eq.s32.totalorder %s36, 0
      %p226 = por %p224, %p225
      %s227 = ssub.s32 %s38, %s45
      %p228 = scmp.eq.s32.totalorder %s227, 0
      %s230 = sadd.s32 %s229, 1
      %s231 = scalar_select %p228, %s229, %s230
      %p234 = pneg %p228
      %p235 = scmp.eq.s32.totalorder %s30, 1
      %p236 = por %p234, %p235
      %p237 = scmp.ne.s32.totalorder %s229, %s232
      %p238 = scmp.eq.s32.totalorder %s30, 0
      %p239 = por %p237, %p238
      %p240 = scmp.ne.s32.totalorder %s229, %s232
      %p241 = scmp.eq.s32.totalorder %s35, 1
      %p242 = por %p240, %p241
      %p243 = scmp.ne.s32.totalorder %s232, %s233
      %p244 = scmp.eq.s32.totalorder %s35, 0
      %p245 = por %p243, %p244
      %p246 = scmp.ne.s32.totalorder %s232, %s233
      %p247 = scmp.eq.s32.totalorder %s36, 1
      %p248 = por %p246, %p247
      %p250 = scmp.ne.s32.totalorder %s233, %s249
      %p251 = scmp.eq.s32.totalorder %s36, 0
      %p252 = por %p250, %p251
      %s253 = ssub.s32 %s38, %s45
      %p254 = scmp.eq.s32.totalorder %s253, 0
      %s256 = sadd.s32 %s255, 1
      %s257 = scalar_select %p254, %s255, %s256
      %p260 = pneg %p254
      %p261 = scmp.eq.s32.totalorder %s30, 1
      %p262 = por %p260, %p261
      %p263 = scmp.ne.s32.totalorder %s255, %s258
      %p264 = scmp.eq.s32.totalorder %s30, 0
      %p265 = por %p263, %p264
      %p266 = scmp.ne.s32.totalorder %s255, %s258
      %p267 = scmp.eq.s32.totalorder %s35, 1
      %p268 = por %p266, %p267
      %p269 = scmp.ne.s32.totalorder %s258, %s259
      %p270 = scmp.eq.s32.totalorder %s35, 0
      %p271 = por %p269, %p270
      %p272 = scmp.ne.s32.totalorder %s258, %s259
      %p273 = scmp.eq.s32.totalorder %s36, 1
      %p274 = por %p272, %p273
      %p276 = scmp.ne.s32.totalorder %s259, %s275
      %p277 = scmp.eq.s32.totalorder %s36, 0
      %p278 = por %p276, %p277
      %s279 = ssub.s32 %s38, %s45
      %p280 = scmp.eq.s32.totalorder %s279, 0
      %s282 = sadd.s32 %s281, 1
      %s283 = scalar_select %p280, %s281, %s282
      %p286 = pneg %p280
      %p287 = scmp.eq.s32.totalorder %s30, 1
      %p288 = por %p286, %p287
      %p289 = scmp.ne.s32.totalorder %s281, %s284
      %p290 = scmp.eq.s32.totalorder %s30, 0
      %p291 = por %p289, %p290
      %p292 = scmp.ne.s32.totalorder %s281, %s284
      %p293 = scmp.eq.s32.totalorder %s35, 1
      %p294 = por %p292, %p293
      %p295 = scmp.ne.s32.totalorder %s284, %s285
      %p296 = scmp.eq.s32.totalorder %s35, 0
      %p297 = por %p295, %p296
      %p298 = scmp.ne.s32.totalorder %s284, %s285
      %p299 = scmp.eq.s32.totalorder %s36, 1
      %p300 = por %p298, %p299
      %p302 = scmp.ne.s32.totalorder %s285, %s301
      %p303 = scmp.eq.s32.totalorder %s36, 0
      %p304 = por %p302, %p303
      %s305 = ssub.s32 %s38, %s45
      %p306 = scmp.eq.s32.totalorder %s305, 0
      %s308 = sadd.s32 %s307, 1
      %s309 = scalar_select %p306, %s307, %s308
      %p312 = pneg %p306
      %p313 = scmp.eq.s32.totalorder %s30, 1
      %p314 = por %p312, %p313
      %p315 = scmp.ne.s32.totalorder %s307, %s310
      %p316 = scmp.eq.s32.totalorder %s30, 0
      %p317 = por %p315, %p316
      %p318 = scmp.ne.s32.totalorder %s307, %s310
      %p319 = scmp.eq.s32.totalorder %s35, 1
      %p320 = por %p318, %p319
      %p321 = scmp.ne.s32.totalorder %s310, %s311
      %p322 = scmp.eq.s32.totalorder %s35, 0
      %p323 = por %p321, %p322
      %p324 = scmp.ne.s32.totalorder %s310, %s311
      %p325 = scmp.eq.s32.totalorder %s36, 1
      %p326 = por %p324, %p325
      %p328 = scmp.ne.s32.totalorder %s311, %s327
      %p329 = scmp.eq.s32.totalorder %s36, 0
      %p330 = por %p328, %p329
      %s331 = ssub.s32 %s38, %s45
      %p332 = scmp.eq.s32.totalorder %s331, 0
      %s334 = sadd.s32 %s333, 1
      %s335 = scalar_select %p332, %s333, %s334
      %p338 = pneg %p332
      %p339 = scmp.eq.s32.totalorder %s30, 1
      %p340 = por %p338, %p339
      %p341 = scmp.ne.s32.totalorder %s333, %s336
      %p342 = scmp.eq.s32.totalorder %s30, 0
      %p343 = por %p341, %p342
      %p344 = scmp.ne.s32.totalorder %s333, %s336
      %p345 = scmp.eq.s32.totalorder %s35, 1
      %p346 = por %p344, %p345
      %p347 = scmp.ne.s32.totalorder %s336, %s337
      %p348 = scmp.eq.s32.totalorder %s35, 0
      %p349 = por %p347, %p348
      %p350 = scmp.ne.s32.totalorder %s336, %s337
      %p351 = scmp.eq.s32.totalorder %s36, 1
      %p352 = por %p350, %p351
      %p354 = scmp.ne.s32.totalorder %s337, %s353
      %p355 = scmp.eq.s32.totalorder %s36, 0
      %p356 = por %p354, %p355
      %s357 = ssub.s32 %s38, %s45
      %p358 = scmp.eq.s32.totalorder %s357, 0
      %s360 = sadd.s32 %s359, 1
      %s361 = scalar_select %p358, %s359, %s360
      %p364 = pneg %p358
      %p365 = scmp.eq.s32.totalorder %s30, 1
      %p366 = por %p364, %p365
      %p367 = scmp.ne.s32.totalorder %s359, %s362
      %p368 = scmp.eq.s32.totalorder %s30, 0
      %p369 = por %p367, %p368
      %p370 = scmp.ne.s32.totalorder %s359, %s362
      %p371 = scmp.eq.s32.totalorder %s35, 1
      %p372 = por %p370, %p371
      %p373 = scmp.ne.s32.totalorder %s362, %s363
      %p374 = scmp.eq.s32.totalorder %s35, 0
      %p375 = por %p373, %p374
      %p376 = scmp.ne.s32.totalorder %s362, %s363
      %p377 = scmp.eq.s32.totalorder %s36, 1
      %p378 = por %p376, %p377
      %p380 = scmp.ne.s32.totalorder %s363, %s379
      %p381 = scmp.eq.s32.totalorder %s36, 0
      %p382 = por %p380, %p381
      %s383 = ssub.s32 %s38, %s45
      %p384 = scmp.eq.s32.totalorder %s383, 0
      %s386 = sadd.s32 %s385, 1
      %s387 = scalar_select %p384, %s385, %s386
      %p390 = pneg %p384
      %p391 = scmp.eq.s32.totalorder %s30, 1
      %p392 = por %p390, %p391
      %p393 = scmp.ne.s32.totalorder %s385, %s388
      %p394 = scmp.eq.s32.totalorder %s30, 0
      %p395 = por %p393, %p394
      %p396 = scmp.ne.s32.totalorder %s385, %s388
      %p397 = scmp.eq.s32.totalorder %s35, 1
      %p398 = por %p396, %p397
      %p399 = scmp.ne.s32.totalorder %s388, %s389
      %p400 = scmp.eq.s32.totalorder %s35, 0
      %p401 = por %p399, %p400
      %p402 = scmp.ne.s32.totalorder %s388, %s389
      %p403 = scmp.eq.s32.totalorder %s36, 1
      %p404 = por %p402, %p403
      %p406 = scmp.ne.s32.totalorder %s389, %s405
      %p407 = scmp.eq.s32.totalorder %s36, 0
      %p408 = por %p406, %p407
      %s409 = ssub.s32 %s38, %s45
      %p410 = scmp.eq.s32.totalorder %s409, 0
      %s412 = sadd.s32 %s411, 1
      %s413 = scalar_select %p410, %s411, %s412
      %p416 = pneg %p410
      %p417 = scmp.eq.s32.totalorder %s30, 1
      %p418 = por %p416, %p417
      %p419 = scmp.ne.s32.totalorder %s411, %s414
      %p420 = scmp.eq.s32.totalorder %s30, 0
      %p421 = por %p419, %p420
      %p422 = scmp.ne.s32.totalorder %s411, %s414
      %p423 = scmp.eq.s32.totalorder %s35, 1
      %p424 = por %p422, %p423
      %p425 = scmp.ne.s32.totalorder %s414, %s415
      %p426 = scmp.eq.s32.totalorder %s35, 0
      %p427 = por %p425, %p426
      %p428 = scmp.ne.s32.totalorder %s414, %s415
      %p429 = scmp.eq.s32.totalorder %s36, 1
      %p430 = por %p428, %p429
      %p432 = scmp.ne.s32.totalorder %s415, %s431
      %p433 = scmp.eq.s32.totalorder %s36, 0
      %p434 = por %p432, %p433
      %s435 = ssub.s32 %s38, %s45
      %p436 = scmp.eq.s32.totalorder %s435, 0
      %s438 = sadd.s32 %s437, 1
      %s439 = scalar_select %p436, %s437, %s438
      %p442 = pneg %p436
      %p443 = scmp.eq.s32.totalorder %s30, 1
      %p444 = por %p442, %p443
      %p445 = scmp.ne.s32.totalorder %s437, %s440
      %p446 = scmp.eq.s32.totalorder %s30, 0
      %p447 = por %p445, %p446
      %p448 = scmp.ne.s32.totalorder %s437, %s440
      %p449 = scmp.eq.s32.totalorder %s35, 1
      %p450 = por %p448, %p449
      %p451 = scmp.ne.s32.totalorder %s440, %s441
      %p452 = scmp.eq.s32.totalorder %s35, 0
      %p453 = por %p451, %p452
      %p454 = scmp.ne.s32.totalorder %s440, %s441
      %p455 = scmp.eq.s32.totalorder %s36, 1
      %p456 = por %p454, %p455
      %p458 = scmp.ne.s32.totalorder %s441, %s457
      %p459 = scmp.eq.s32.totalorder %s36, 0
      %p460 = por %p458, %p459
      %s461 = ssub.s32 %s38, %s45
      %p462 = scmp.eq.s32.totalorder %s461, 0
      %s464 = sadd.s32 %s463, 1
      %s465 = scalar_select %p462, %s463, %s464
      %p468 = pneg %p462
      %p469 = scmp.eq.s32.totalorder %s30, 1
      %p470 = por %p468, %p469
      %p471 = scmp.ne.s32.totalorder %s463, %s466
      %p472 = scmp.eq.s32.totalorder %s30, 0
      %p473 = por %p471, %p472
      %p474 = scmp.ne.s32.totalorder %s463, %s466
      %p475 = scmp.eq.s32.totalorder %s35, 1
      %p476 = por %p474, %p475
      %p477 = scmp.ne.s32.totalorder %s466, %s467
      %p478 = scmp.eq.s32.totalorder %s35, 0
      %p479 = por %p477, %p478
      %p480 = scmp.ne.s32.totalorder %s466, %s467
      %p481 = scmp.eq.s32.totalorder %s36, 1
      %p482 = por %p480, %p481
      %p484 = scmp.ne.s32.totalorder %s467, %s483
      %p485 = scmp.eq.s32.totalorder %s36, 0
      %p486 = por %p484, %p485
      %s487 = ssub.s32 %s38, %s45
      %p488 = scmp.eq.s32.totalorder %s487, 0
      %s490 = sadd.s32 %s489, 1
      %s491 = scalar_select %p488, %s489, %s490
      %p494 = pneg %p488
      %p495 = scmp.eq.s32.totalorder %s30, 1
      %p496 = por %p494, %p495
      %p497 = scmp.ne.s32.totalorder %s489, %s492
      %p498 = scmp.eq.s32.totalorder %s30, 0
      %p499 = por %p497, %p498
      %p500 = scmp.ne.s32.totalorder %s489, %s492
      %p501 = scmp.eq.s32.totalorder %s35, 1
      %p502 = por %p500, %p501
      %p503 = scmp.ne.s32.totalorder %s492, %s493
      %p504 = scmp.eq.s32.totalorder %s35, 0
      %p505 = por %p503, %p504
      %p506 = scmp.ne.s32.totalorder %s492, %s493
      %p507 = scmp.eq.s32.totalorder %s36, 1
      %p508 = por %p506, %p507
      %p510 = scmp.ne.s32.totalorder %s493, %s509
      %p511 = scmp.eq.s32.totalorder %s36, 0
      %p512 = por %p510, %p511
      %s513 = ssub.s32 %s38, %s45
      %p514 = scmp.eq.s32.totalorder %s513, 0
      %s516 = sadd.s32 %s515, 1
      %s517 = scalar_select %p514, %s515, %s516
      %p520 = pneg %p514
      %p521 = scmp.eq.s32.totalorder %s30, 1
      %p522 = por %p520, %p521
      %p523 = scmp.ne.s32.totalorder %s515, %s518
      %p524 = scmp.eq.s32.totalorder %s30, 0
      %p525 = por %p523, %p524
      %p526 = scmp.ne.s32.totalorder %s515, %s518
      %p527 = scmp.eq.s32.totalorder %s35, 1
      %p528 = por %p526, %p527
      %p529 = scmp.ne.s32.totalorder %s518, %s519
      %p530 = scmp.eq.s32.totalorder %s35, 0
      %p531 = por %p529, %p530
      %p532 = scmp.ne.s32.totalorder %s518, %s519
      %p533 = scmp.eq.s32.totalorder %s36, 1
      %p534 = por %p532, %p533
      %p536 = scmp.ne.s32.totalorder %s519, %s535
      %p537 = scmp.eq.s32.totalorder %s36, 0
      %p538 = por %p536, %p537
      %s540 = sadd.s32 %s539, 1
      %p543 = scmp.eq.s32.totalorder %s30, 1
      %p544 = scmp.ne.s32.totalorder %s539, %s541
      %p545 = scmp.eq.s32.totalorder %s30, 0
      %p546 = por %p544, %p545
      %p547 = scmp.ne.s32.totalorder %s539, %s541
      %p548 = scmp.eq.s32.totalorder %s35, 1
      %p549 = por %p547, %p548
      %p550 = scmp.ne.s32.totalorder %s541, %s542
      %p551 = scmp.eq.s32.totalorder %s35, 0
      %p552 = por %p550, %p551
      %p553 = scmp.ne.s32.totalorder %s541, %s542
      %p554 = scmp.eq.s32.totalorder %s36, 1
      %p555 = por %p553, %p554
      %p557 = scmp.ne.s32.totalorder %s542, %s556
      %p558 = scmp.eq.s32.totalorder %s36, 0
      %p559 = por %p557, %p558
      %s561 = sadd.s32 %s560, 1
      %p564 = scmp.eq.s32.totalorder %s30, 1
      %p565 = scmp.ne.s32.totalorder %s560, %s562
      %p566 = scmp.eq.s32.totalorder %s30, 0
      %p567 = por %p565, %p566
      %p568 = scmp.ne.s32.totalorder %s560, %s562
      %p569 = scmp.eq.s32.totalorder %s35, 1
      %p570 = por %p568, %p569
      %p571 = scmp.ne.s32.totalorder %s562, %s563
      %p572 = scmp.eq.s32.totalorder %s35, 0
      %p573 = por %p571, %p572
      %p574 = scmp.ne.s32.totalorder %s562, %s563
      %p575 = scmp.eq.s32.totalorder %s36, 1
      %p576 = por %p574, %p575
      %p578 = scmp.ne.s32.totalorder %s563, %s577
      %p579 = scmp.eq.s32.totalorder %s36, 0
      %p580 = por %p578, %p579
      %s581 = ssub.s32 %s37, %s49
      %p582 = scmp.eq.s32.totalorder %s581, 0
      %s584 = sadd.s32 %s583, 1
      %s585 = scalar_select %p582, %s583, %s584
      %p588 = pneg %p582
      %p589 = scmp.eq.s32.totalorder %s30, 1
      %p590 = por %p588, %p589
      %p591 = scmp.ne.s32.totalorder %s583, %s586
      %p592 = scmp.eq.s32.totalorder %s30, 0
      %p593 = por %p591, %p592
      %p594 = scmp.ne.s32.totalorder %s583, %s586
      %p595 = scmp.eq.s32.totalorder %s35, 1
      %p596 = por %p594, %p595
      %p597 = scmp.ne.s32.totalorder %s586, %s587
      %p598 = scmp.eq.s32.totalorder %s35, 0
      %p599 = por %p597, %p598
      %p600 = scmp.ne.s32.totalorder %s586, %s587
      %p601 = scmp.eq.s32.totalorder %s36, 1
      %p602 = por %p600, %p601
      %p604 = scmp.ne.s32.totalorder %s587, %s603
      %p605 = scmp.eq.s32.totalorder %s36, 0
      %p606 = por %p604, %p605
      %p607 = scmp.le.s32.totalorder 1, %s30
      %p608 = scmp.lt.s32.totalorder %s30, 3
      %p609 = pnand %p607, %p608
      %p610 = pneg %p609
      // Predicated region
      $region9: #{generator_forward.3} parent=5 // pred_check
        _
      $region10: #{generator_forward.3} parent=5 // pred_check_branch
        %612 = sbr.rel (%p609) target = $region12
      $region11: #{generator_forward.3} parent=5 // pred_region
        %s613 = ssub.s32 %s30, 1
        // Predicated region
        $region13: #{generator_forward.3} parent=11 // pred_check
          %p614 = pneg %p141
        $region14: #{generator_forward.3} parent=11 // pred_check_branch
          %616 = sbr.rel (%p614) target = $region16
        $region15: #{generator_forward.3} parent=11 // pred_region
          _
        $region16: #{generator_forward.3} parent=11 // pred_fallthru
          _
        // Predicated region
        $region17: #{generator_forward.3} parent=11 // pred_check
          %p617 = pneg %p167
        $region18: #{generator_forward.3} parent=11 // pred_check_branch
          %619 = sbr.rel (%p617) target = $region20
        $region19: #{generator_forward.3} parent=11 // pred_region
          %p620 = scmp.lt.s32.totalorder %s40, 0
          %s621 = scalar_select %p620, %s40, 0
          %s622 = scalar_lea.vmem %s4, %s621
        $region20: #{generator_forward.3} parent=11 // pred_fallthru
          _
        // Predicated region
        $region21: #{generator_forward.3} parent=11 // pred_check
          %p623 = pneg %p193
        $region22: #{generator_forward.3} parent=11 // pred_check_branch
          %625 = sbr.rel (%p623) target = $region24
        $region23: #{generator_forward.3} parent=11 // pred_region
          %p626 = scmp.lt.s32.totalorder %s40, 0
          %s627 = scalar_select %p626, %s40, 0
          %s628 = scalar_lea.vmem %s5, %s627
        $region24: #{generator_forward.3} parent=11 // pred_fallthru
          _
        // Predicated region
        $region25: #{generator_forward.3} parent=11 // pred_check
          %p629 = pneg %p219
        $region26: #{generator_forward.3} parent=11 // pred_check_branch
          %631 = sbr.rel (%p629) target = $region28
        $region27: #{generator_forward.3} parent=11 // pred_region
          %p632 = scmp.lt.s32.totalorder %s40, 0
          %s633 = scalar_select %p632, %s40, 0
          %s634 = smul.addr %s633, 4
          %s635 = smul.addr %s634, 4
          %s636 = scalar_lea.vmem %s6, %s635
        $region28: #{generator_forward.3} parent=11 // pred_fallthru
          _
        // Predicated region
        $region29: #{generator_forward.3} parent=11 // pred_check
          %p637 = pneg %p245
        $region30: #{generator_forward.3} parent=11 // pred_check_branch
          %639 = sbr.rel (%p637) target = $region32
        $region31: #{generator_forward.3} parent=11 // pred_region
          %p640 = scmp.lt.s32.totalorder %s40, 0
          %s641 = scalar_select %p640, %s40, 0
          %s642 = smul.addr %s641, 4
          %s643 = smul.addr %s642, 4
          %s644 = scalar_lea.vmem %s7, %s643
        $region32: #{generator_forward.3} parent=11 // pred_fallthru
          _
        // Predicated region
        $region33: #{generator_forward.3} parent=11 // pred_check
          %p645 = pneg %p271
        $region34: #{generator_forward.3} parent=11 // pred_check_branch
          %647 = sbr.rel (%p645) target = $region36
        $region35: #{generator_forward.3} parent=11 // pred_region
          %p648 = scmp.lt.s32.totalorder %s40, 0
          %s649 = scalar_select %p648, %s40, 0
          %s650 = scalar_lea.vmem %s8, %s649
        $region36: #{generator_forward.3} parent=11 // pred_fallthru
          _
        // Predicated region
        $region37: #{generator_forward.3} parent=11 // pred_check
          %p651 = pneg %p297
        $region38: #{generator_forward.3} parent=11 // pred_check_branch
          %653 = sbr.rel (%p651) target = $region40
        $region39: #{generator_forward.3} parent=11 // pred_region
          %p654 = scmp.lt.s32.totalorder %s40, 0
          %s655 = scalar_select %p654, %s40, 0
          %s656 = scalar_lea.vmem %s9, %s655
        $region40: #{generator_forward.3} parent=11 // pred_fallthru
          _
        // Predicated region
        $region41: #{generator_forward.3} parent=11 // pred_check
          %p657 = pneg %p323
        $region42: #{generator_forward.3} parent=11 // pred_check_branch
          %659 = sbr.rel (%p657) target = $region44
        $region43: #{generator_forward.3} parent=11 // pred_region
          %p660 = scmp.lt.s32.totalorder %s40, 0
          %s661 = scalar_select %p660, %s40, 0
          %s662 = smul.addr %s661, 4
          %s663 = smul.addr %s662, 4
          %s664 = scalar_lea.vmem %s10, %s663
        $region44: #{generator_forward.3} parent=11 // pred_fallthru
          _
        // Predicated region
        $region45: #{generator_forward.3} parent=11 // pred_check
          %p665 = pneg %p349
        $region46: #{generator_forward.3} parent=11 // pred_check_branch
          %667 = sbr.rel (%p665) target = $region48
        $region47: #{generator_forward.3} parent=11 // pred_region
          %p668 = scmp.lt.s32.totalorder %s40, 0
          %s669 = scalar_select %p668, %s40, 0
          %s670 = smul.addr %s669, 4
          %s671 = smul.addr %s670, 4
          %s672 = scalar_lea.vmem %s11, %s671
        $region48: #{generator_forward.3} parent=11 // pred_fallthru
          _
        // Predicated region
        $region49: #{generator_forward.3} parent=11 // pred_check
          %p673 = pneg %p375
        $region50: #{generator_forward.3} parent=11 // pred_check_branch
          %675 = sbr.rel (%p673) target = $region52
        $region51: #{generator_forward.3} parent=11 // pred_region
          %p676 = scmp.lt.s32.totalorder %s40, 0
          %s677 = scalar_select %p676, %s40, 0
          %s678 = smul.addr %s677, 4
          %s679 = smul.addr %s678, 4
          %s680 = scalar_lea.vmem %s12, %s679
        $region52: #{generator_forward.3} parent=11 // pred_fallthru
          _
        // Predicated region
        $region53: #{generator_forward.3} parent=11 // pred_check
          %p681 = pneg %p401
        $region54: #{generator_forward.3} parent=11 // pred_check_branch
          %683 = sbr.rel (%p681) target = $region56
        $region55: #{generator_forward.3} parent=11 // pred_region
          %p684 = scmp.lt.s32.totalorder %s40, 0
          %s685 = scalar_select %p684, %s40, 0
          %s686 = scalar_lea.vmem %s13, %s685
        $region56: #{generator_forward.3} parent=11 // pred_fallthru
          _
        // Predicated region
        $region57: #{generator_forward.3} parent=11 // pred_check
          %p687 = pneg %p427
        $region58: #{generator_forward.3} parent=11 // pred_check_branch
          %689 = sbr.rel (%p687) target = $region60
        $region59: #{generator_forward.3} parent=11 // pred_region
          %p690 = scmp.lt.s32.totalorder %s40, 0
          %s691 = scalar_select %p690, %s40, 0
          %s692 = scalar_lea.vmem %s14, %s691
        $region60: #{generator_forward.3} parent=11 // pred_fallthru
          _
        // Predicated region
        $region61: #{generator_forward.3} parent=11 // pred_check
          %p693 = pneg %p453
        $region62: #{generator_forward.3} parent=11 // pred_check_branch
          %695 = sbr.rel (%p693) target = $region64
        $region63: #{generator_forward.3} parent=11 // pred_region
          %p696 = scmp.lt.s32.totalorder %s40, 0
          %s697 = scalar_select %p696, %s40, 0
          %s698 = smul.addr %s697, 4
          %s699 = smul.addr %s698, 4
          %s700 = scalar_lea.vmem %s15, %s699
        $region64: #{generator_forward.3} parent=11 // pred_fallthru
          _
        // Predicated region
        $region65: #{generator_forward.3} parent=11 // pred_check
          %p701 = pneg %p479
        $region66: #{generator_forward.3} parent=11 // pred_check_branch
          %703 = sbr.rel (%p701) target = $region68
        $region67: #{generator_forward.3} parent=11 // pred_region
          %p704 = scmp.lt.s32.totalorder %s40, 0
          %s705 = scalar_select %p704, %s40, 0
          %s706 = scalar_lea.vmem %s16, %s705
        $region68: #{generator_forward.3} parent=11 // pred_fallthru
          _
        // Predicated region
        $region69: #{generator_forward.3} parent=11 // pred_check
          %p707 = pneg %p505
        $region70: #{generator_forward.3} parent=11 // pred_check_branch
          %709 = sbr.rel (%p707) target = $region72
        $region71: #{generator_forward.3} parent=11 // pred_region
          %p710 = scmp.lt.s32.totalorder %s40, 0
          %s711 = scalar_select %p710, %s40, 0
          %s712 = smul.addr %s711, 8
          %s713 = smul.addr %s712, 4
          %s714 = scalar_lea.vmem %s17, %s713
        $region72: #{generator_forward.3} parent=11 // pred_fallthru
          _
        // Predicated region
        $region73: #{generator_forward.3} parent=11 // pred_check
          %p715 = pneg %p531
        $region74: #{generator_forward.3} parent=11 // pred_check_branch
          %717 = sbr.rel (%p715) target = $region76
        $region75: #{generator_forward.3} parent=11 // pred_region
          %p718 = scmp.lt.s32.totalorder %s40, 0
          %s719 = scalar_select %p718, %s40, 0
          %s720 = scalar_lea.vmem %s18, %s719
        $region76: #{generator_forward.3} parent=11 // pred_fallthru
          _
        // Predicated region
        $region77: #{generator_forward.3} parent=11 // pred_check
          %p721 = pneg %p552
        $region78: #{generator_forward.3} parent=11 // pred_check_branch
          %723 = sbr.rel (%p721) target = $region80
        $region79: #{generator_forward.3} parent=11 // pred_region
          _
        $region80: #{generator_forward.3} parent=11 // pred_fallthru
          _
        // Predicated region
        $region81: #{generator_forward.3} parent=11 // pred_check
          %p724 = pneg %p573
        $region82: #{generator_forward.3} parent=11 // pred_check_branch
          %726 = sbr.rel (%p724) target = $region84
        $region83: #{generator_forward.3} parent=11 // pred_region
          _
        $region84: #{generator_forward.3} parent=11 // pred_fallthru
          _
      $region12: #{generator_forward.3} parent=5 // pred_fallthru
        _
      %p727 = scmp.lt.s32.totalorder %s30, 2
      // Predicated region
      $region85: #{generator_forward.3} parent=5 // pred_check
        %p728 = pneg %p727
      $region86: #{generator_forward.3} parent=5 // pred_check_branch
        %730 = sbr.rel (%p728) target = $region88
      $region87: #{generator_forward.3} parent=5 // pred_region
        // Predicated region
        $region89: #{generator_forward.3} parent=87 // pred_check
          %p731 = pneg %p62
        $region90: #{generator_forward.3} parent=87 // pred_check_branch
          %733 = sbr.rel (%p731) target = $region92
        $region91: #{generator_forward.3} parent=87 // pred_region
          %p734 = scmp.lt.s32.totalorder %s37, 1
          %s735 = scalar_select %p734, %s37, 1
          %s736 = smul.addr %s735, 8
          %s737 = scalar_lea.vmem %s0, %s736
        $region92: #{generator_forward.3} parent=87 // pred_fallthru
          _
        // Predicated region
        $region93: #{generator_forward.3} parent=87 // pred_check
          %p738 = pneg %p88
        $region94: #{generator_forward.3} parent=87 // pred_check_branch
          %740 = sbr.rel (%p738) target = $region96
        $region95: #{generator_forward.3} parent=87 // pred_region
          %p741 = scmp.lt.s32.totalorder %s37, 1
          %s742 = scalar_select %p741, %s37, 1
          %s743 = smul.addr %s742, 2
          %s744 = smul.addr %s743, 8
          %s745 = scalar_lea.vmem %s1, %s744
        $region96: #{generator_forward.3} parent=87 // pred_fallthru
          _
        // Predicated region
        $region97: #{generator_forward.3} parent=87 // pred_check
          %p746 = pneg %p114
        $region98: #{generator_forward.3} parent=87 // pred_check_branch
          %748 = sbr.rel (%p746) target = $region100
        $region99: #{generator_forward.3} parent=87 // pred_region
          %p749 = scmp.lt.s32.totalorder %s37, 1
          %s750 = scalar_select %p749, %s37, 1
          %s751 = scalar_lea.vmem %s2, %s750
        $region100: #{generator_forward.3} parent=87 // pred_fallthru
          _
      $region88: #{generator_forward.3} parent=5 // pred_fallthru
        _
      %p752 = scmp.le.s32.totalorder 1, %s30
      %p753 = scmp.lt.s32.totalorder %s30, 3
      %p754 = pnand %p752, %p753
      %p755 = pneg %p754
      // Predicated region
      $region101: #{generator_forward.3} parent=5 // pred_check
        _
      $region102: #{generator_forward.3} parent=5 // pred_check_branch
        %757 = sbr.rel (%p754) target = $region104
      $region103: #{generator_forward.3} parent=5 // pred_region
        %s758 = ssub.s32 %s30, 1
        %p759 = scmp.lt.s32.totalorder %s39, 1
        %s760 = scalar_select %p759, %s39, 1
        %s761 = smul.addr %s760, 8
        %s762 = scalar_lea.vmem %s0, %s761
        %p763 = pneg %p68
        %p764 = pneg %p65
        %p765 = scmp.lt.s32.totalorder %s39, 1
        %s766 = scalar_select %p765, %s39, 1
        %s767 = smul.addr %s766, 2
        %s768 = smul.addr %s767, 8
        %s769 = scalar_lea.vmem %s1, %s768
        %p770 = pneg %p94
        %p771 = pneg %p91
        %p772 = scmp.lt.s32.totalorder %s39, 1
        %s773 = scalar_select %p772, %s39, 1
        %s774 = scalar_lea.vmem %s2, %s773
        %p775 = pneg %p120
        %p776 = pneg %p117
        %p777 = pneg %p141
        %p778 = pneg %p138
        %p779 = scmp.lt.s32.totalorder %s40, 0
        %s780 = scalar_select %p779, %s40, 0
        %s781 = scalar_lea.vmem %s4, %s780
        %p782 = pneg %p167
        %p783 = pneg %p164
        %p784 = scmp.lt.s32.totalorder %s40, 0
        %s785 = scalar_select %p784, %s40, 0
        %s786 = scalar_lea.vmem %s5, %s785
        %p787 = pneg %p193
        %p788 = pneg %p190
        %p789 = scmp.lt.s32.totalorder %s40, 0
        %s790 = scalar_select %p789, %s40, 0
        %s791 = smul.addr %s790, 4
        %s792 = smul.addr %s791, 4
        %s793 = scalar_lea.vmem %s6, %s792
        %p794 = pneg %p219
        %p795 = pneg %p216
        %p796 = scmp.lt.s32.totalorder %s40, 0
        %s797 = scalar_select %p796, %s40, 0
        %s798 = smul.addr %s797, 4
        %s799 = smul.addr %s798, 4
        %s800 = scalar_lea.vmem %s7, %s799
        %p801 = pneg %p245
        %p802 = pneg %p242
        %p803 = scmp.lt.s32.totalorder %s40, 0
        %s804 = scalar_select %p803, %s40, 0
        %s805 = scalar_lea.vmem %s8, %s804
        %p806 = pneg %p271
        %p807 = pneg %p268
        %p808 = scmp.lt.s32.totalorder %s40, 0
        %s809 = scalar_select %p808, %s40, 0
        %s810 = scalar_lea.vmem %s9, %s809
        %p811 = pneg %p297
        %p812 = pneg %p294
        %p813 = scmp.lt.s32.totalorder %s40, 0
        %s814 = scalar_select %p813, %s40, 0
        %s815 = smul.addr %s814, 4
        %s816 = smul.addr %s815, 4
        %s817 = scalar_lea.vmem %s10, %s816
        %p818 = pneg %p323
        %p819 = pneg %p320
        %p820 = scmp.lt.s32.totalorder %s40, 0
        %s821 = scalar_select %p820, %s40, 0
        %s822 = smul.addr %s821, 4
        %s823 = smul.addr %s822, 4
        %s824 = scalar_lea.vmem %s11, %s823
        %p825 = pneg %p349
        %p826 = pneg %p346
        %p827 = scmp.lt.s32.totalorder %s40, 0
        %s828 = scalar_select %p827, %s40, 0
        %s829 = smul.addr %s828, 4
        %s830 = smul.addr %s829, 4
        %s831 = scalar_lea.vmem %s12, %s830
        %p832 = pneg %p375
        %p833 = pneg %p372
        %p834 = scmp.lt.s32.totalorder %s40, 0
        %s835 = scalar_select %p834, %s40, 0
        %s836 = scalar_lea.vmem %s13, %s835
        %p837 = pneg %p401
        %p838 = pneg %p398
        %p839 = scmp.lt.s32.totalorder %s40, 0
        %s840 = scalar_select %p839, %s40, 0
        %s841 = scalar_lea.vmem %s14, %s840
        %p842 = pneg %p427
        %p843 = pneg %p424
        %p844 = scmp.lt.s32.totalorder %s40, 0
        %s845 = scalar_select %p844, %s40, 0
        %s846 = smul.addr %s845, 4
        %s847 = smul.addr %s846, 4
        %s848 = scalar_lea.vmem %s15, %s847
        %p849 = pneg %p453
        %p850 = pneg %p450
        %p851 = scmp.lt.s32.totalorder %s40, 0
        %s852 = scalar_select %p851, %s40, 0
        %s853 = scalar_lea.vmem %s16, %s852
        %p854 = pneg %p479
        %p855 = pneg %p476
        %p856 = scmp.lt.s32.totalorder %s40, 0
        %s857 = scalar_select %p856, %s40, 0
        %s858 = smul.addr %s857, 8
        %s859 = smul.addr %s858, 4
        %s860 = scalar_lea.vmem %s17, %s859
        %p861 = pneg %p505
        %p862 = pneg %p502
        %p863 = scmp.lt.s32.totalorder %s40, 0
        %s864 = scalar_select %p863, %s40, 0
        %s865 = scalar_lea.vmem %s18, %s864
        %p866 = pneg %p531
        %p867 = pneg %p528
        %p868 = pneg %p552
        %p869 = pneg %p549
        %p870 = pneg %p573
        %p871 = pneg %p570
        %p872 = pneg %p599
        %p873 = pneg %p596
        %s874 = sand.u32 %s586, 1
        %s875 = scalar_lea.sflag [#allocation3], %s874
        %s876 = sand.u32 %s586, 1
        %s877 = smul.addr %s876, 8
        %s878 = scalar_lea.vmem [#allocation2], %s877
        %p879 = scmp.lt.s32.totalorder %s39, 1
        %s880 = scalar_select %p879, %s39, 1
        %s881 = smul.addr %s880, 8
        %s882 = scalar_lea.vmem %s0, %s881
        %p883 = scmp.lt.s32.totalorder %s39, 1
        %s884 = scalar_select %p883, %s39, 1
        %s885 = smul.addr %s884, 2
        %s886 = smul.addr %s885, 8
        %s887 = scalar_lea.vmem %s1, %s886
        %p888 = scmp.lt.s32.totalorder %s39, 1
        %s889 = scalar_select %p888, %s39, 1
        %s890 = scalar_lea.vmem %s2, %s889
        %p891 = scmp.lt.s32.totalorder %s40, 0
        %s892 = scalar_select %p891, %s40, 0
        %s893 = scalar_lea.vmem %s4, %s892
        %p894 = scmp.lt.s32.totalorder %s40, 0
        %s895 = scalar_select %p894, %s40, 0
        %s896 = scalar_lea.vmem %s5, %s895
        %p897 = scmp.lt.s32.totalorder %s40, 0
        %s898 = scalar_select %p897, %s40, 0
        %s899 = smul.addr %s898, 4
        %s900 = smul.addr %s899, 4
        %s901 = scalar_lea.vmem %s6, %s900
        %p902 = scmp.lt.s32.totalorder %s40, 0
        %s903 = scalar_select %p902, %s40, 0
        %s904 = smul.addr %s903, 4
        %s905 = smul.addr %s904, 4
        %s906 = scalar_lea.vmem %s7, %s905
        %p907 = scmp.lt.s32.totalorder %s40, 0
        %s908 = scalar_select %p907, %s40, 0
        %s909 = scalar_lea.vmem %s8, %s908
        %p910 = scmp.lt.s32.totalorder %s40, 0
        %s911 = scalar_select %p910, %s40, 0
        %s912 = scalar_lea.vmem %s9, %s911
        %p913 = scmp.lt.s32.totalorder %s40, 0
        %s914 = scalar_select %p913, %s40, 0
        %s915 = smul.addr %s914, 4
        %s916 = smul.addr %s915, 4
        %s917 = scalar_lea.vmem %s10, %s916
        %p918 = scmp.lt.s32.totalorder %s40, 0
        %s919 = scalar_select %p918, %s40, 0
        %s920 = smul.addr %s919, 4
        %s921 = smul.addr %s920, 4
        %s922 = scalar_lea.vmem %s11, %s921
        %p923 = scmp.lt.s32.totalorder %s40, 0
        %s924 = scalar_select %p923, %s40, 0
        %s925 = smul.addr %s924, 4
        %s926 = smul.addr %s925, 4
        %s927 = scalar_lea.vmem %s12, %s926
        %p928 = scmp.lt.s32.totalorder %s40, 0
        %s929 = scalar_select %p928, %s40, 0
        %s930 = scalar_lea.vmem %s13, %s929
        %p931 = scmp.lt.s32.totalorder %s40, 0
        %s932 = scalar_select %p931, %s40, 0
        %s933 = scalar_lea.vmem %s14, %s932
        %p934 = scmp.lt.s32.totalorder %s40, 0
        %s935 = scalar_select %p934, %s40, 0
        %s936 = smul.addr %s935, 4
        %s937 = smul.addr %s936, 4
        %s938 = scalar_lea.vmem %s15, %s937
        %p939 = scmp.lt.s32.totalorder %s40, 0
        %s940 = scalar_select %p939, %s40, 0
        %s941 = scalar_lea.vmem %s16, %s940
        %p942 = scmp.lt.s32.totalorder %s40, 0
        %s943 = scalar_select %p942, %s40, 0
        %s944 = smul.addr %s943, 8
        %s945 = smul.addr %s944, 4
        %s946 = scalar_lea.vmem %s17, %s945
        %p947 = scmp.lt.s32.totalorder %s40, 0
        %s948 = scalar_select %p947, %s40, 0
        %s949 = scalar_lea.vmem %s18, %s948
        %p951 = scmp.eq.s32.totalorder %s40, 0
        // Predicated region
        $region105: #{generator_forward.3} parent=103 // pred_check
          %p952 = pneg %p951
        $region106: #{generator_forward.3} parent=103 // pred_check_branch
          %954 = sbr.rel (%p952) target = $region108
        $region107: #{generator_forward.3} parent=103 // pred_region
          %v955 = vld [vmem:[%s882] sm:$0xff]
          %vm956 = vcmask 261120
          %957 = vst.msk [vmem:[%s878] sm:$0xff] %vm956, %v955
        $region108: #{generator_forward.3} parent=103 // pred_fallthru
          _
        %v958 = vld [vmem:[%s878] sm:$0xff]
        %v959 = vld [vmem:[%s3] sm:$0xff]
        %v960 = vld [vmem:[%s890] sm:$0x1]
        %v962 = vlaneseq
        %v963 = vshrl.u32 %v962, 7
        %v964 = vsub.s32 0, %v963
        %v965 = vrot.slane %v960, %v964
        %v967 = vld [vmem:[%s893] sm:$0x1]
        %v968 = vld [vmem:[%s896] sm:$0x1]
        %vm969 = vcmask 261120
        %v970 = vsel %vm969, %v958, 0.0
        %971 = vadd.xlane.f32.xlu0 %v970
        %v972 = vpop.xlane.xlu0 %971
        %v973 = vrcp.pop 32.0
        %v974 = vmul.f32 %v972, %v973
        %v975 = vsub.f32 %v958, %v974
        %v976 = vmul.f32 %v975, %v975
        %v977 = vsel %vm969, %v976, 0.0
        %978 = vadd.xlane.f32.xlu0 %v977
        %v979 = vpop.xlane.xlu0 %978
        %v980 = vmul.f32 %v979, %v973
        %v981 = vadd.f32 %v980, 1e-06
        %v982 = vrsqrt.pop %v981
        %v983 = vmul.f32 %v975, %v982
        %v985 = vlaneseq
        %v986 = vshrl.u32 %v985, 7
        %v987 = vsub.s32 0, %v986
        %v988 = vrot.slane %v967, %v987
        %v990 = vmul.f32 %v983, %v988
        %v992 = vlaneseq
        %v993 = vshrl.u32 %v992, 7
        %v994 = vsub.s32 0, %v993
        %v995 = vrot.slane %v968, %v994
        %v997 = vadd.f32 %v990, %v995
        %v998 = vld [vmem:[%s901] sm:$0xf]
        %v999 = vld [vmem:[%s901 + $0x4] sm:$0xf]
        %v1000 = vld [vmem:[%s901 + $0x8] sm:$0xf]
        %v1001 = vld [vmem:[%s901 + $0xc] sm:$0xf]
        %v1002 = vpack.c.bf16 %v997, %v997
        %v1007 = vunpack.c.l.b16 %v998
        %v1008 = vunpack.c.l.b16 %v999
        %v1009 = vunpack.c.l.b16 %v1000
        %v1010 = vunpack.c.l.b16 %v1001
        %v1011 = vpack.c.b16 %v1008, %v1007
        %v1012 = vpack.c.b16 %v1010, %v1009
        %v1016 = vsel %vm969, %v1002, 0
        %1018 = vmatprep.subr.bf16.mxu0 0
        %1019 = vmatpush1.bf16.msra.mxu0 0
        %1020 = vmatprep.subr.bf16.mxu0 0
        %1021 = vmatpush1.bf16.msra.mxu0 0
        %1022 = vmatprep.subr.bf16.mxu0 0
        %1023 = vmatpush1.bf16.msra.mxu0 0
        %1024 = vmatprep.subr.bf16.mxu0 0
        %1025 = vmatpush1.bf16.msra.mxu0 0
        %1026 = vmatprep.subr.bf16.mxu0 0
        %1027 = vmatpush1.bf16.msra.mxu0 0
        %1028 = vmatprep.subr.bf16.mxu0 0
        %1029 = vmatpush1.bf16.msra.mxu0 0
        %1030 = vmatprep.subr.bf16.mxu0 0
        %1031 = vmatpush1.bf16.msra.mxu0 %v1012
        %1032 = vmatprep.subr.bf16.mxu0 0
        %1033 = vmatpush1.bf16.msra.mxu0 %v1011
        %1034 = vmatprep.subr.bf16.mxu0 0
        %1035 = vmatpush2.bf16.msra.mxu0 0
        %1036 = vmatprep.subr.bf16.mxu0 0
        %1037 = vmatpush2.bf16.msra.mxu0 0
        %1038 = vmatprep.subr.bf16.mxu0 0
        %1039 = vmatpush2.bf16.msra.mxu0 0
        %1040 = vmatprep.subr.bf16.mxu0 0
        %1041 = vmatpush2.bf16.msra.mxu0 0
        %1042 = vmatprep.subr.bf16.mxu0 0
        %1043 = vmatpush2.bf16.msra.mxu0 0
        %1044 = vmatprep.subr.bf16.mxu0 0
        %1045 = vmatpush2.bf16.msra.mxu0 0
        %1046 = vmatprep.subr.bf16.mxu0 0
        %1047 = vmatpush2.bf16.msra.mxu0 0
        %1048 = vmatprep.subr.bf16.mxu0 0
        %1049 = vmatpush2.bf16.msra.mxu0 0
        %1050 = vmatprep.mubr.bf16.mxu0 0
        %1051 = vmatmul.mubr.bf16.gmra.mxu0 %v1016
        %v1052 = vpop.f32.mrf.mxu0
        %v1053 = vadd.f32 0.0, %v1052
        %v1054 = vpop.f32.mrf.mxu0
        %v1055 = vpop.f32.mrf.mxu0
        %v1056 = vpop.f32.mrf.mxu0
        %1057 = vdwg.mxu0
        %v1058 = vpack.c.bf16 %v1053, %v1053
        %1060 = vrot.lane.b32.xlu0 %v1058, 96
        %v1061 = vpop.permute.xlu0 %1060
        %vm1062 = vcmask 64512
        %v1064 = vsel %vm1062, %v1058, 0
        %v1067 = vsel %vm1062, %v1061, 0
        %1069 = vmatprep.subr.bf16.mxu0 0
        %1070 = vmatpush1.bf16.xpose.msra.mxu0 0
        %1071 = vmatprep.subr.bf16.mxu0 0
        %1072 = vmatpush1.bf16.xpose.msra.mxu0 0
        %1073 = vmatprep.subr.bf16.mxu0 0
        %1074 = vmatpush1.bf16.xpose.msra.mxu0 0
        %1075 = vmatprep.subr.bf16.mxu0 0
        %1076 = vmatpush1.bf16.xpose.msra.mxu0 0
        %1077 = vmatprep.subr.bf16.mxu0 0
        %1078 = vmatpush1.bf16.xpose.msra.mxu0 0
        %1079 = vmatprep.subr.bf16.mxu0 0
        %1080 = vmatpush1.bf16.xpose.msra.mxu0 0
        %1081 = vmatprep.subr.bf16.mxu0 0
        %1082 = vmatpush1.bf16.xpose.msra.mxu0 0
        %1083 = vmatprep.subr.bf16.mxu0 0
        %1084 = vmatpush1.bf16.xpose.msra.mxu0 %v1067
        %1085 = vmatprep.subr.bf16.mxu0 0
        %1086 = vmatpush2.bf16.xpose.msra.mxu0 0
        %1087 = vmatprep.subr.bf16.mxu0 0
        %1088 = vmatpush2.bf16.xpose.msra.mxu0 0
        %1089 = vmatprep.subr.bf16.mxu0 0
        %1090 = vmatpush2.bf16.xpose.msra.mxu0 0
        %1091 = vmatprep.subr.bf16.mxu0 0
        %1092 = vmatpush2.bf16.xpose.msra.mxu0 0
        %1093 = vmatprep.subr.bf16.mxu0 0
        %1094 = vmatpush2.bf16.xpose.msra.mxu0 0
        %1095 = vmatprep.subr.bf16.mxu0 0
        %1096 = vmatpush2.bf16.xpose.msra.mxu0 0
        %1097 = vmatprep.subr.bf16.mxu0 0
        %1098 = vmatpush2.bf16.xpose.msra.mxu0 0
        %1099 = vmatprep.subr.bf16.mxu0 0
        %1100 = vmatpush2.bf16.xpose.msra.mxu0 0
        %1101 = vmatprep.mubr.bf16.mxu0 0
        %1102 = vmatmul.mubr.bf16.gmra.mxu0 %v1064
        %v1103 = vpop.f32.mrf.mxu0
        %v1104 = vadd.f32 %v959, %v1103
        %v1105 = vpop.f32.mrf.mxu0
        %v1106 = vpop.f32.mrf.mxu0
        %v1107 = vpop.f32.mrf.mxu0
        %1108 = vdwg.mxu0
        %v1109 = vsel %vm1062, %v1104, -inf
        %1110 = vmax.xlane.f32.xlu0 %v1109
        %v1111 = vpop.xlane.xlu0 %1110
        %v1112 = vsub.f32 %v1104, %v1111
        %v1113 = vmul.f32 %v1112, 1.442695
        %v1114 = vpow.pop %v1113
        %v1115 = vsel %vm1062, %v1114, 0.0
        %1116 = vadd.xlane.f32.xlu0 %v1115
        %v1117 = vpop.xlane.xlu0 %1116
        %v1118 = vrcp.pop %v1117
        %v1119 = vmul.f32 %v1114, %v1118
        %v1120 = vpack.c.bf16 %v1119, %v1119
        %1121 = vrot.lane.b32.xlu0 %v1058, 64
        %v1122 = vpop.permute.xlu0 %1121
        %v1124 = vsel %vm1062, %v1120, 0
        %vm1126 = vcmask 1043456
        %v1128 = vsel %vm1126, %v1122, 0
        %1130 = vmatprep.subr.bf16.mxu0 0
        %1131 = vmatpush1.bf16.msra.mxu0 0
        %1132 = vmatprep.subr.bf16.mxu0 0
        %1133 = vmatpush1.bf16.msra.mxu0 0
        %1134 = vmatprep.subr.bf16.mxu0 0
        %1135 = vmatpush1.bf16.msra.mxu0 0
        %1136 = vmatprep.subr.bf16.mxu0 0
        %1137 = vmatpush1.bf16.msra.mxu0 0
        %1138 = vmatprep.subr.bf16.mxu0 0
        %1139 = vmatpush1.bf16.msra.mxu0 0
        %1140 = vmatprep.subr.bf16.mxu0 0
        %1141 = vmatpush1.bf16.msra.mxu0 0
        %1142 = vmatprep.subr.bf16.mxu0 0
        %1143 = vmatpush1.bf16.msra.mxu0 0
        %1144 = vmatprep.subr.bf16.mxu0 0
        %1145 = vmatpush1.bf16.msra.mxu0 %v1128
        %1146 = vmatprep.subr.bf16.mxu0 0
        %1147 = vmatpush2.bf16.msra.mxu0 0
        %1148 = vmatprep.subr.bf16.mxu0 0
        %1149 = vmatpush2.bf16.msra.mxu0 0
        %1150 = vmatprep.subr.bf16.mxu0 0
        %1151 = vmatpush2.bf16.msra.mxu0 0
        %1152 = vmatprep.subr.bf16.mxu0 0
        %1153 = vmatpush2.bf16.msra.mxu0 0
        %1154 = vmatprep.subr.bf16.mxu0 0
        %1155 = vmatpush2.bf16.msra.mxu0 0
        %1156 = vmatprep.subr.bf16.mxu0 0
        %1157 = vmatpush2.bf16.msra.mxu0 0
        %1158 = vmatprep.subr.bf16.mxu0 0
        %1159 = vmatpush2.bf16.msra.mxu0 0
        %1160 = vmatprep.subr.bf16.mxu0 0
        %1161 = vmatpush2.bf16.msra.mxu0 0
        %1162 = vmatprep.mubr.bf16.mxu0 0
        %1163 = vmatmul.mubr.bf16.gmra.mxu0 %v1124
        %v1164 = vpop.f32.mrf.mxu0
        %v1165 = vadd.f32 0.0, %v1164
        %v1166 = vpop.f32.mrf.mxu0
        %v1167 = vpop.f32.mrf.mxu0
        %v1168 = vpop.f32.mrf.mxu0
        %1169 = vdwg.mxu0
        %1170 = vrot.lane.b32.xlu0 %v1058, 120
        %v1171 = vpop.permute.xlu0 %1170
        %1172 = vrot.lane.b32.xlu0 %v1058, 88
        %v1173 = vpop.permute.xlu0 %1172
        %v1175 = vsel %vm1062, %v1171, 0
        %v1178 = vsel %vm1062, %v1173, 0
        %1180 = vmatprep.subr.bf16.mxu0 0
        %1181 = vmatpush1.bf16.xpose.msra.mxu0 0
        %1182 = vmatprep.subr.bf16.mxu0 0
        %1183 = vmatpush1.bf16.xpose.msra.mxu0 0
        %1184 = vmatprep.subr.bf16.mxu0 0
        %1185 = vmatpush1.bf16.xpose.msra.mxu0 0
        %1186 = vmatprep.subr.bf16.mxu0 0
        %1187 = vmatpush1.bf16.xpose.msra.mxu0 0
        %1188 = vmatprep.subr.bf16.mxu0 0
        %1189 = vmatpush1.bf16.xpose.msra.mxu0 0
        %1190 = vmatprep.subr.bf16.mxu0 0
        %1191 = vmatpush1.bf16.xpose.msra.mxu0 0
        %1192 = vmatprep.subr.bf16.mxu0 0
        %1193 = vmatpush1.bf16.xpose.msra.mxu0 0
        %1194 = vmatprep.subr.bf16.mxu0 0
        %1195 = vmatpush1.bf16.xpose.msra.mxu0 %v1178
        %1196 = vmatprep.subr.bf16.mxu0 0
        %1197 = vmatpush2.bf16.xpose.msra.mxu0 0
        %1198 = vmatprep.subr.bf16.mxu0 0
        %1199 = vmatpush2.bf16.xpose.msra.mxu0 0
        %1200 = vmatprep.subr.bf16.mxu0 0
        %1201 = vmatpush2.bf16.xpose.msra.mxu0 0
        %1202 = vmatprep.subr.bf16.mxu0 0
        %1203 = vmatpush2.bf16.xpose.msra.mxu0 0
        %1204 = vmatprep.subr.bf16.mxu0 0
        %1205 = vmatpush2.bf16.xpose.msra.mxu0 0
        %1206 = vmatprep.subr.bf16.mxu0 0
        %1207 = vmatpush2.bf16.xpose.msra.mxu0 0
        %1208 = vmatprep.subr.bf16.mxu0 0
        %1209 = vmatpush2.bf16.xpose.msra.mxu0 0
        %1210 = vmatprep.subr.bf16.mxu0 0
        %1211 = vmatpush2.bf16.xpose.msra.mxu0 0
        %1212 = vmatprep.mubr.bf16.mxu0 0
        %1213 = vmatmul.mubr.bf16.gmra.mxu0 %v1175
        %v1214 = vpop.f32.mrf.mxu0
        %v1215 = vadd.f32 %v959, %v1214
        %v1216 = vpop.f32.mrf.mxu0
        %v1217 = vpop.f32.mrf.mxu0
        %v1218 = vpop.f32.mrf.mxu0
        %1219 = vdwg.mxu0
        %v1220 = vsel %vm1062, %v1215, -inf
        %1221 = vmax.xlane.f32.xlu0 %v1220
        %v1222 = vpop.xlane.xlu0 %1221
        %v1223 = vsub.f32 %v1215, %v1222
        %v1224 = vmul.f32 %v1223, 1.442695
        %v1225 = vpow.pop %v1224
        %v1226 = vsel %vm1062, %v1225, 0.0
        %1227 = vadd.xlane.f32.xlu0 %v1226
        %v1228 = vpop.xlane.xlu0 %1227
        %v1229 = vrcp.pop %v1228
        %v1230 = vmul.f32 %v1225, %v1229
        %v1231 = vpack.c.bf16 %v1230, %v1230
        %1232 = vrot.lane.b32.xlu0 %v1058, 56
        %v1233 = vpop.permute.xlu0 %1232
        %v1235 = vsel %vm1062, %v1231, 0
        %v1238 = vsel %vm1126, %v1233, 0
        %1240 = vmatprep.subr.bf16.mxu0 0
        %1241 = vmatpush1.bf16.msra.mxu0 0
        %1242 = vmatprep.subr.bf16.mxu0 0
        %1243 = vmatpush1.bf16.msra.mxu0 0
        %1244 = vmatprep.subr.bf16.mxu0 0
        %1245 = vmatpush1.bf16.msra.mxu0 0
        %1246 = vmatprep.subr.bf16.mxu0 0
        %1247 = vmatpush1.bf16.msra.mxu0 0
        %1248 = vmatprep.subr.bf16.mxu0 0
        %1249 = vmatpush1.bf16.msra.mxu0 0
        %1250 = vmatprep.subr.bf16.mxu0 0
        %1251 = vmatpush1.bf16.msra.mxu0 0
        %1252 = vmatprep.subr.bf16.mxu0 0
        %1253 = vmatpush1.bf16.msra.mxu0 0
        %1254 = vmatprep.subr.bf16.mxu0 0
        %1255 = vmatpush1.bf16.msra.mxu0 %v1238
        %1256 = vmatprep.subr.bf16.mxu0 0
        %1257 = vmatpush2.bf16.msra.mxu0 0
        %1258 = vmatprep.subr.bf16.mxu0 0
        %1259 = vmatpush2.bf16.msra.mxu0 0
        %1260 = vmatprep.subr.bf16.mxu0 0
        %1261 = vmatpush2.bf16.msra.mxu0 0
        %1262 = vmatprep.subr.bf16.mxu0 0
        %1263 = vmatpush2.bf16.msra.mxu0 0
        %1264 = vmatprep.subr.bf16.mxu0 0
        %1265 = vmatpush2.bf16.msra.mxu0 0
        %1266 = vmatprep.subr.bf16.mxu0 0
        %1267 = vmatpush2.bf16.msra.mxu0 0
        %1268 = vmatprep.subr.bf16.mxu0 0
        %1269 = vmatpush2.bf16.msra.mxu0 0
        %1270 = vmatprep.subr.bf16.mxu0 0
        %1271 = vmatpush2.bf16.msra.mxu0 0
        %1272 = vmatprep.mubr.bf16.mxu0 0
        %1273 = vmatmul.mubr.bf16.gmra.mxu0 %v1235
        %v1274 = vpop.f32.mrf.mxu0
        %v1275 = vadd.f32 0.0, %v1274
        %v1276 = vpop.f32.mrf.mxu0
        %v1277 = vpop.f32.mrf.mxu0
        %v1278 = vpop.f32.mrf.mxu0
        %1279 = vdwg.mxu0
        %1280 = vrot.lane.b32.xlu0 %v1058, 112
        %v1281 = vpop.permute.xlu0 %1280
        %1282 = vrot.lane.b32.xlu0 %v1058, 80
        %v1283 = vpop.permute.xlu0 %1282
        %v1285 = vsel %vm1062, %v1281, 0
        %v1288 = vsel %vm1062, %v1283, 0
        %1290 = vmatprep.subr.bf16.mxu0 0
        %1291 = vmatpush1.bf16.xpose.msra.mxu0 0
        %1292 = vmatprep.subr.bf16.mxu0 0
        %1293 = vmatpush1.bf16.xpose.msra.mxu0 0
        %1294 = vmatprep.subr.bf16.mxu0 0
        %1295 = vmatpush1.bf16.xpose.msra.mxu0 0
        %1296 = vmatprep.subr.bf16.mxu0 0
        %1297 = vmatpush1.bf16.xpose.msra.mxu0 0
        %1298 = vmatprep.subr.bf16.mxu0 0
        %1299 = vmatpush1.bf16.xpose.msra.mxu0 0
        %1300 = vmatprep.subr.bf16.mxu0 0
        %1301 = vmatpush1.bf16.xpose.msra.mxu0 0
        %1302 = vmatprep.subr.bf16.mxu0 0
        %1303 = vmatpush1.bf16.xpose.msra.mxu0 0
        %1304 = vmatprep.subr.bf16.mxu0 0
        %1305 = vmatpush1.bf16.xpose.msra.mxu0 %v1288
        %1306 = vmatprep.subr.bf16.mxu0 0
        %1307 = vmatpush2.bf16.xpose.msra.mxu0 0
        %1308 = vmatprep.subr.bf16.mxu0 0
        %1309 = vmatpush2.bf16.xpose.msra.mxu0 0
        %1310 = vmatprep.subr.bf16.mxu0 0
        %1311 = vmatpush2.bf16.xpose.msra.mxu0 0
        %1312 = vmatprep.subr.bf16.mxu0 0
        %1313 = vmatpush2.bf16.xpose.msra.mxu0 0
        %1314 = vmatprep.subr.bf16.mxu0 0
        %1315 = vmatpush2.bf16.xpose.msra.mxu0 0
        %1316 = vmatprep.subr.bf16.mxu0 0
        %1317 = vmatpush2.bf16.xpose.msra.mxu0 0
        %1318 = vmatprep.subr.bf16.mxu0 0
        %1319 = vmatpush2.bf16.xpose.msra.mxu0 0
        %1320 = vmatprep.subr.bf16.mxu0 0
        %1321 = vmatpush2.bf16.xpose.msra.mxu0 0
        %1322 = vmatprep.mubr.bf16.mxu0 0
        %1323 = vmatmul.mubr.bf16.gmra.mxu0 %v1285
        %v1324 = vpop.f32.mrf.mxu0
        %v1325 = vadd.f32 %v959, %v1324
        %v1326 = vpop.f32.mrf.mxu0
        %v1327 = vpop.f32.mrf.mxu0
        %v1328 = vpop.f32.mrf.mxu0
        %1329 = vdwg.mxu0
        %v1330 = vsel %vm1062, %v1325, -inf
        %1331 = vmax.xlane.f32.xlu0 %v1330
        %v1332 = vpop.xlane.xlu0 %1331
        %v1333 = vsub.f32 %v1325, %v1332
        %v1334 = vmul.f32 %v1333, 1.442695
        %v1335 = vpow.pop %v1334
        %v1336 = vsel %vm1062, %v1335, 0.0
        %1337 = vadd.xlane.f32.xlu0 %v1336
        %v1338 = vpop.xlane.xlu0 %1337
        %v1339 = vrcp.pop %v1338
        %v1340 = vmul.f32 %v1335, %v1339
        %v1341 = vpack.c.bf16 %v1340, %v1340
        %1342 = vrot.lane.b32.xlu0 %v1058, 48
        %v1343 = vpop.permute.xlu0 %1342
        %v1345 = vsel %vm1062, %v1341, 0
        %v1348 = vsel %vm1126, %v1343, 0
        %1350 = vmatprep.subr.bf16.mxu0 0
        %1351 = vmatpush1.bf16.msra.mxu0 0
        %1352 = vmatprep.subr.bf16.mxu0 0
        %1353 = vmatpush1.bf16.msra.mxu0 0
        %1354 = vmatprep.subr.bf16.mxu0 0
        %1355 = vmatpush1.bf16.msra.mxu0 0
        %1356 = vmatprep.subr.bf16.mxu0 0
        %1357 = vmatpush1.bf16.msra.mxu0 0
        %1358 = vmatprep.subr.bf16.mxu0 0
        %1359 = vmatpush1.bf16.msra.mxu0 0
        %1360 = vmatprep.subr.bf16.mxu0 0
        %1361 = vmatpush1.bf16.msra.mxu0 0
        %1362 = vmatprep.subr.bf16.mxu0 0
        %1363 = vmatpush1.bf16.msra.mxu0 0
        %1364 = vmatprep.subr.bf16.mxu0 0
        %1365 = vmatpush1.bf16.msra.mxu0 %v1348
        %1366 = vmatprep.subr.bf16.mxu0 0
        %1367 = vmatpush2.bf16.msra.mxu0 0
        %1368 = vmatprep.subr.bf16.mxu0 0
        %1369 = vmatpush2.bf16.msra.mxu0 0
        %1370 = vmatprep.subr.bf16.mxu0 0
        %1371 = vmatpush2.bf16.msra.mxu0 0
        %1372 = vmatprep.subr.bf16.mxu0 0
        %1373 = vmatpush2.bf16.msra.mxu0 0
        %1374 = vmatprep.subr.bf16.mxu0 0
        %1375 = vmatpush2.bf16.msra.mxu0 0
        %1376 = vmatprep.subr.bf16.mxu0 0
        %1377 = vmatpush2.bf16.msra.mxu0 0
        %1378 = vmatprep.subr.bf16.mxu0 0
        %1379 = vmatpush2.bf16.msra.mxu0 0
        %1380 = vmatprep.subr.bf16.mxu0 0
        %1381 = vmatpush2.bf16.msra.mxu0 0
        %1382 = vmatprep.mubr.bf16.mxu0 0
        %1383 = vmatmul.mubr.bf16.gmra.mxu0 %v1345
        %v1384 = vpop.f32.mrf.mxu0
        %v1385 = vadd.f32 0.0, %v1384
        %v1386 = vpop.f32.mrf.mxu0
        %v1387 = vpop.f32.mrf.mxu0
        %v1388 = vpop.f32.mrf.mxu0
        %1389 = vdwg.mxu0
        %1390 = vrot.lane.b32.xlu0 %v1058, 104
        %v1391 = vpop.permute.xlu0 %1390
        %1392 = vrot.lane.b32.xlu0 %v1058, 72
        %v1393 = vpop.permute.xlu0 %1392
        %v1395 = vsel %vm1062, %v1391, 0
        %v1398 = vsel %vm1062, %v1393, 0
        %1400 = vmatprep.subr.bf16.mxu0 0
        %1401 = vmatpush1.bf16.xpose.msra.mxu0 0
        %1402 = vmatprep.subr.bf16.mxu0 0
        %1403 = vmatpush1.bf16.xpose.msra.mxu0 0
        %1404 = vmatprep.subr.bf16.mxu0 0
        %1405 = vmatpush1.bf16.xpose.msra.mxu0 0
        %1406 = vmatprep.subr.bf16.mxu0 0
        %1407 = vmatpush1.bf16.xpose.msra.mxu0 0
        %1408 = vmatprep.subr.bf16.mxu0 0
        %1409 = vmatpush1.bf16.xpose.msra.mxu0 0
        %1410 = vmatprep.subr.bf16.mxu0 0
        %1411 = vmatpush1.bf16.xpose.msra.mxu0 0
        %1412 = vmatprep.subr.bf16.mxu0 0
        %1413 = vmatpush1.bf16.xpose.msra.mxu0 0
        %1414 = vmatprep.subr.bf16.mxu0 0
        %1415 = vmatpush1.bf16.xpose.msra.mxu0 %v1398
        %1416 = vmatprep.subr.bf16.mxu0 0
        %1417 = vmatpush2.bf16.xpose.msra.mxu0 0
        %1418 = vmatprep.subr.bf16.mxu0 0
        %1419 = vmatpush2.bf16.xpose.msra.mxu0 0
        %1420 = vmatprep.subr.bf16.mxu0 0
        %1421 = vmatpush2.bf16.xpose.msra.mxu0 0
        %1422 = vmatprep.subr.bf16.mxu0 0
        %1423 = vmatpush2.bf16.xpose.msra.mxu0 0
        %1424 = vmatprep.subr.bf16.mxu0 0
        %1425 = vmatpush2.bf16.xpose.msra.mxu0 0
        %1426 = vmatprep.subr.bf16.mxu0 0
        %1427 = vmatpush2.bf16.xpose.msra.mxu0 0
        %1428 = vmatprep.subr.bf16.mxu0 0
        %1429 = vmatpush2.bf16.xpose.msra.mxu0 0
        %1430 = vmatprep.subr.bf16.mxu0 0
        %1431 = vmatpush2.bf16.xpose.msra.mxu0 0
        %1432 = vmatprep.mubr.bf16.mxu0 0
        %1433 = vmatmul.mubr.bf16.gmra.mxu0 %v1395
        %v1434 = vpop.f32.mrf.mxu0
        %v1435 = vadd.f32 %v959, %v1434
        %v1436 = vpop.f32.mrf.mxu0
        %v1437 = vpop.f32.mrf.mxu0
        %v1438 = vpop.f32.mrf.mxu0
        %1439 = vdwg.mxu0
        %v1440 = vsel %vm1062, %v1435, -inf
        %1441 = vmax.xlane.f32.xlu0 %v1440
        %v1442 = vpop.xlane.xlu0 %1441
        %v1443 = vsub.f32 %v1435, %v1442
        %v1444 = vmul.f32 %v1443, 1.442695
        %v1445 = vpow.pop %v1444
        %v1446 = vsel %vm1062, %v1445, 0.0
        %1447 = vadd.xlane.f32.xlu0 %v1446
        %v1448 = vpop.xlane.xlu0 %1447
        %v1449 = vrcp.pop %v1448
        %v1450 = vmul.f32 %v1445, %v1449
        %v1451 = vpack.c.bf16 %v1450, %v1450
        %1452 = vrot.lane.b32.xlu0 %v1058, 40
        %v1453 = vpop.permute.xlu0 %1452
        %v1455 = vsel %vm1062, %v1451, 0
        %v1458 = vsel %vm1126, %v1453, 0
        %1460 = vmatprep.subr.bf16.mxu0 0
        %1461 = vmatpush1.bf16.msra.mxu0 0
        %1462 = vmatprep.subr.bf16.mxu0 0
        %1463 = vmatpush1.bf16.msra.mxu0 0
        %1464 = vmatprep.subr.bf16.mxu0 0
        %1465 = vmatpush1.bf16.msra.mxu0 0
        %1466 = vmatprep.subr.bf16.mxu0 0
        %1467 = vmatpush1.bf16.msra.mxu0 0
        %1468 = vmatprep.subr.bf16.mxu0 0
        %1469 = vmatpush1.bf16.msra.mxu0 0
        %1470 = vmatprep.subr.bf16.mxu0 0
        %1471 = vmatpush1.bf16.msra.mxu0 0
        %1472 = vmatprep.subr.bf16.mxu0 0
        %1473 = vmatpush1.bf16.msra.mxu0 0
        %1474 = vmatprep.subr.bf16.mxu0 0
        %1475 = vmatpush1.bf16.msra.mxu0 %v1458
        %1476 = vmatprep.subr.bf16.mxu0 0
        %1477 = vmatpush2.bf16.msra.mxu0 0
        %1478 = vmatprep.subr.bf16.mxu0 0
        %1479 = vmatpush2.bf16.msra.mxu0 0
        %1480 = vmatprep.subr.bf16.mxu0 0
        %1481 = vmatpush2.bf16.msra.mxu0 0
        %1482 = vmatprep.subr.bf16.mxu0 0
        %1483 = vmatpush2.bf16.msra.mxu0 0
        %1484 = vmatprep.subr.bf16.mxu0 0
        %1485 = vmatpush2.bf16.msra.mxu0 0
        %1486 = vmatprep.subr.bf16.mxu0 0
        %1487 = vmatpush2.bf16.msra.mxu0 0
        %1488 = vmatprep.subr.bf16.mxu0 0
        %1489 = vmatpush2.bf16.msra.mxu0 0
        %1490 = vmatprep.subr.bf16.mxu0 0
        %1491 = vmatpush2.bf16.msra.mxu0 0
        %1492 = vmatprep.mubr.bf16.mxu0 0
        %1493 = vmatmul.mubr.bf16.gmra.mxu0 %v1455
        %v1494 = vpop.f32.mrf.mxu0
        %v1495 = vadd.f32 0.0, %v1494
        %v1496 = vpop.f32.mrf.mxu0
        %v1497 = vpop.f32.mrf.mxu0
        %v1498 = vpop.f32.mrf.mxu0
        %1499 = vdwg.mxu0
        %1501 = vrot.lane.b32.xlu0 %v1275, 8
        %v1502 = vpop.permute.xlu0 %1501
        %1505 = vrot.lane.b32.xlu0 %v1385, 16
        %v1506 = vpop.permute.xlu0 %1505
        %1509 = vrot.lane.b32.xlu0 %v1495, 24
        %v1510 = vpop.permute.xlu0 %1509
        %v1512 = vsel %vm1062, %v1165, %v1502
        %vm1513 = vcmask 130048
        %v1514 = vsel %vm1513, %v1512, %v1506
        %vm1515 = vcmask 195584
        %v1516 = vsel %vm1515, %v1514, %v1510
        %v1517 = vld [vmem:[%s906] sm:$0xf]
        %v1518 = vld [vmem:[%s906 + $0x4] sm:$0xf]
        %v1519 = vld [vmem:[%s906 + $0x8] sm:$0xf]
        %v1520 = vld [vmem:[%s906 + $0xc] sm:$0xf]
        %v1521 = vpack.c.bf16 %v1516, %v1516
        %v1526 = vunpack.c.l.b16 %v1517
        %v1527 = vunpack.c.l.b16 %v1518
        %v1528 = vunpack.c.l.b16 %v1519
        %v1529 = vunpack.c.l.b16 %v1520
        %v1530 = vpack.c.b16 %v1527, %v1526
        %v1531 = vpack.c.b16 %v1529, %v1528
        %v1535 = vsel %vm969, %v1521, 0
        %1537 = vmatprep.subr.bf16.mxu0 0
        %1538 = vmatpush1.bf16.msra.mxu0 0
        %1539 = vmatprep.subr.bf16.mxu0 0
        %1540 = vmatpush1.bf16.msra.mxu0 0
        %1541 = vmatprep.subr.bf16.mxu0 0
        %1542 = vmatpush1.bf16.msra.mxu0 0
        %1543 = vmatprep.subr.bf16.mxu0 0
        %1544 = vmatpush1.bf16.msra.mxu0 0
        %1545 = vmatprep.subr.bf16.mxu0 0
        %1546 = vmatpush1.bf16.msra.mxu0 0
        %1547 = vmatprep.subr.bf16.mxu0 0
        %1548 = vmatpush1.bf16.msra.mxu0 0
        %1549 = vmatprep.subr.bf16.mxu0 0
        %1550 = vmatpush1.bf16.msra.mxu0 %v1531
        %1551 = vmatprep.subr.bf16.mxu0 0
        %1552 = vmatpush1.bf16.msra.mxu0 %v1530
        %1553 = vmatprep.subr.bf16.mxu0 0
        %1554 = vmatpush2.bf16.msra.mxu0 0
        %1555 = vmatprep.subr.bf16.mxu0 0
        %1556 = vmatpush2.bf16.msra.mxu0 0
        %1557 = vmatprep.subr.bf16.mxu0 0
        %1558 = vmatpush2.bf16.msra.mxu0 0
        %1559 = vmatprep.subr.bf16.mxu0 0
        %1560 = vmatpush2.bf16.msra.mxu0 0
        %1561 = vmatprep.subr.bf16.mxu0 0
        %1562 = vmatpush2.bf16.msra.mxu0 0
        %1563 = vmatprep.subr.bf16.mxu0 0
        %1564 = vmatpush2.bf16.msra.mxu0 0
        %1565 = vmatprep.subr.bf16.mxu0 0
        %1566 = vmatpush2.bf16.msra.mxu0 0
        %1567 = vmatprep.subr.bf16.mxu0 0
        %1568 = vmatpush2.bf16.msra.mxu0 0
        %1569 = vmatprep.mubr.bf16.mxu0 0
        %1570 = vmatmul.mubr.bf16.gmra.mxu0 %v1535
        %v1571 = vpop.f32.mrf.mxu0
        %v1572 = vadd.f32 0.0, %v1571
        %v1573 = vpop.f32.mrf.mxu0
        %v1574 = vpop.f32.mrf.mxu0
        %v1575 = vpop.f32.mrf.mxu0
        %1576 = vdwg.mxu0
        %v1577 = vadd.f32 %v958, %v1572
        %v1578 = vld [vmem:[%s909] sm:$0x1]
        %v1579 = vld [vmem:[%s912] sm:$0x1]
        %v1580 = vsel %vm969, %v1577, 0.0
        %1581 = vadd.xlane.f32.xlu0 %v1580
        %v1582 = vpop.xlane.xlu0 %1581
        %v1583 = vmul.f32 %v1582, %v973
        %v1584 = vsub.f32 %v1577, %v1583
        %v1585 = vmul.f32 %v1584, %v1584
        %v1586 = vsel %vm969, %v1585, 0.0
        %1587 = vadd.xlane.f32.xlu0 %v1586
        %v1588 = vpop.xlane.xlu0 %1587
        %v1589 = vmul.f32 %v1588, %v973
        %v1590 = vadd.f32 %v1589, 1e-06
        %v1591 = vrsqrt.pop %v1590
        %v1592 = vmul.f32 %v1584, %v1591
        %v1594 = vlaneseq
        %v1595 = vshrl.u32 %v1594, 7
        %v1596 = vsub.s32 0, %v1595
        %v1597 = vrot.slane %v1578, %v1596
        %v1599 = vmul.f32 %v1592, %v1597
        %v1601 = vlaneseq
        %v1602 = vshrl.u32 %v1601, 7
        %v1603 = vsub.s32 0, %v1602
        %v1604 = vrot.slane %v1579, %v1603
        %v1606 = vadd.f32 %v1599, %v1604
        %v1607 = vld [vmem:[%s917] sm:$0xf]
        %v1608 = vld [vmem:[%s917 + $0x4] sm:$0xf]
        %v1609 = vld [vmem:[%s917 + $0x8] sm:$0xf]
        %v1610 = vld [vmem:[%s917 + $0xc] sm:$0xf]
        %v1611 = vpack.c.bf16 %v1606, %v1606
        %v1616 = vunpack.c.l.b16 %v1607
        %v1617 = vunpack.c.l.b16 %v1608
        %v1618 = vunpack.c.l.b16 %v1609
        %v1619 = vunpack.c.l.b16 %v1610
        %v1620 = vpack.c.b16 %v1617, %v1616
        %v1621 = vpack.c.b16 %v1619, %v1618
        %v1625 = vsel %vm969, %v1611, 0
        %1627 = vmatprep.subr.bf16.mxu0 0
        %1628 = vmatpush1.bf16.msra.mxu0 0
        %1629 = vmatprep.subr.bf16.mxu0 0
        %1630 = vmatpush1.bf16.msra.mxu0 0
        %1631 = vmatprep.subr.bf16.mxu0 0
        %1632 = vmatpush1.bf16.msra.mxu0 0
        %1633 = vmatprep.subr.bf16.mxu0 0
        %1634 = vmatpush1.bf16.msra.mxu0 0
        %1635 = vmatprep.subr.bf16.mxu0 0
        %1636 = vmatpush1.bf16.msra.mxu0 0
        %1637 = vmatprep.subr.bf16.mxu0 0
        %1638 = vmatpush1.bf16.msra.mxu0 0
        %1639 = vmatprep.subr.bf16.mxu0 0
        %1640 = vmatpush1.bf16.msra.mxu0 %v1621
        %1641 = vmatprep.subr.bf16.mxu0 0
        %1642 = vmatpush1.bf16.msra.mxu0 %v1620
        %1643 = vmatprep.subr.bf16.mxu0 0
        %1644 = vmatpush2.bf16.msra.mxu0 0
        %1645 = vmatprep.subr.bf16.mxu0 0
        %1646 = vmatpush2.bf16.msra.mxu0 0
        %1647 = vmatprep.subr.bf16.mxu0 0
        %1648 = vmatpush2.bf16.msra.mxu0 0
        %1649 = vmatprep.subr.bf16.mxu0 0
        %1650 = vmatpush2.bf16.msra.mxu0 0
        %1651 = vmatprep.subr.bf16.mxu0 0
        %1652 = vmatpush2.bf16.msra.mxu0 0
        %1653 = vmatprep.subr.bf16.mxu0 0
        %1654 = vmatpush2.bf16.msra.mxu0 0
        %1655 = vmatprep.subr.bf16.mxu0 0
        %1656 = vmatpush2.bf16.msra.mxu0 0
        %1657 = vmatprep.subr.bf16.mxu0 0
        %1658 = vmatpush2.bf16.msra.mxu0 0
        %1659 = vmatprep.mubr.bf16.mxu0 0
        %1660 = vmatmul.mubr.bf16.gmra.mxu0 %v1625
        %v1661 = vpop.f32.mrf.mxu0
        %v1662 = vadd.f32 0.0, %v1661
        %v1663 = vpop.f32.mrf.mxu0
        %v1664 = vpop.f32.mrf.mxu0
        %v1665 = vpop.f32.mrf.mxu0
        %1666 = vdwg.mxu0
        %v1667 = vld [vmem:[%s887] sm:$0xff]
        %v1668 = vld [vmem:[%s887 + $0x8] sm:$0xff]
        %v1669 = vld [vmem:[%s922] sm:$0xf]
        %v1670 = vld [vmem:[%s922 + $0x4] sm:$0xf]
        %v1671 = vld [vmem:[%s922 + $0x8] sm:$0xf]
        %v1672 = vld [vmem:[%s922 + $0xc] sm:$0xf]
        %v1673 = vpack.c.bf16 %v1668, %v1667
        %v1678 = vunpack.c.l.b16 %v1669
        %v1679 = vunpack.c.l.b16 %v1670
        %v1680 = vunpack.c.l.b16 %v1671
        %v1681 = vunpack.c.l.b16 %v1672
        %v1682 = vpack.c.b16 %v1679, %v1678
        %v1683 = vpack.c.b16 %v1681, %v1680
        %v1687 = vsel %vm969, %v1673, 0
        %1689 = vmatprep.subr.bf16.mxu0 0
        %1690 = vmatpush1.bf16.msra.mxu0 0
        %1691 = vmatprep.subr.bf16.mxu0 0
        %1692 = vmatpush1.bf16.msra.mxu0 0
        %1693 = vmatprep.subr.bf16.mxu0 0
        %1694 = vmatpush1.bf16.msra.mxu0 0
        %1695 = vmatprep.subr.bf16.mxu0 0
        %1696 = vmatpush1.bf16.msra.mxu0 0
        %1697 = vmatprep.subr.bf16.mxu0 0
        %1698 = vmatpush1.bf16.msra.mxu0 0
        %1699 = vmatprep.subr.bf16.mxu0 0
        %1700 = vmatpush1.bf16.msra.mxu0 0
        %1701 = vmatprep.subr.bf16.mxu0 0
        %1702 = vmatpush1.bf16.msra.mxu0 %v1683
        %1703 = vmatprep.subr.bf16.mxu0 0
        %1704 = vmatpush1.bf16.msra.mxu0 %v1682
        %1705 = vmatprep.subr.bf16.mxu0 0
        %1706 = vmatpush2.bf16.msra.mxu0 0
        %1707 = vmatprep.subr.bf16.mxu0 0
        %1708 = vmatpush2.bf16.msra.mxu0 0
        %1709 = vmatprep.subr.bf16.mxu0 0
        %1710 = vmatpush2.bf16.msra.mxu0 0
        %1711 = vmatprep.subr.bf16.mxu0 0
        %1712 = vmatpush2.bf16.msra.mxu0 0
        %1713 = vmatprep.subr.bf16.mxu0 0
        %1714 = vmatpush2.bf16.msra.mxu0 0
        %1715 = vmatprep.subr.bf16.mxu0 0
        %1716 = vmatpush2.bf16.msra.mxu0 0
        %1717 = vmatprep.subr.bf16.mxu0 0
        %1718 = vmatpush2.bf16.msra.mxu0 0
        %1719 = vmatprep.subr.bf16.mxu0 0
        %1720 = vmatpush2.bf16.msra.mxu0 0
        %1721 = vmatprep.mubr.bf16.mxu0 0
        %1722 = vmatmul.mubr.bf16.gmra.mxu0 %v1687
        %v1723 = vpop.f32.mrf.mxu0
        %v1724 = vadd.f32 0.0, %v1723
        %v1725 = vpop.f32.mrf.mxu0
        %v1726 = vpop.f32.mrf.mxu0
        %v1727 = vadd.f32 0.0, %v1726
        %v1728 = vpop.f32.mrf.mxu0
        %1729 = vdwg.mxu0
        %v1730 = vpack.c.bf16 %v1662, %v1662
        %v1731 = vpack.c.bf16 %v1727, %v1724
        %v1733 = vsel %vm1062, %v1730, 0
        %v1736 = vsel %vm1062, %v1731, 0
        %1738 = vmatprep.subr.bf16.mxu0 0
        %1739 = vmatpush1.bf16.xpose.msra.mxu0 0
        %1740 = vmatprep.subr.bf16.mxu0 0
        %1741 = vmatpush1.bf16.xpose.msra.mxu0 0
        %1742 = vmatprep.subr.bf16.mxu0 0
        %1743 = vmatpush1.bf16.xpose.msra.mxu0 0
        %1744 = vmatprep.subr.bf16.mxu0 0
        %1745 = vmatpush1.bf16.xpose.msra.mxu0 0
        %1746 = vmatprep.subr.bf16.mxu0 0
        %1747 = vmatpush1.bf16.xpose.msra.mxu0 0
        %1748 = vmatprep.subr.bf16.mxu0 0
        %1749 = vmatpush1.bf16.xpose.msra.mxu0 0
        %1750 = vmatprep.subr.bf16.mxu0 0
        %1751 = vmatpush1.bf16.xpose.msra.mxu0 0
        %1752 = vmatprep.subr.bf16.mxu0 0
        %1753 = vmatpush1.bf16.xpose.msra.mxu0 %v1736
        %1754 = vmatprep.subr.bf16.mxu0 0
        %1755 = vmatpush2.bf16.xpose.msra.mxu0 0
        %1756 = vmatprep.subr.bf16.mxu0 0
        %1757 = vmatpush2.bf16.xpose.msra.mxu0 0
        %1758 = vmatprep.subr.bf16.mxu0 0
        %1759 = vmatpush2.bf16.xpose.msra.mxu0 0
        %1760 = vmatprep.subr.bf16.mxu0 0
        %1761 = vmatpush2.bf16.xpose.msra.mxu0 0
        %1762 = vmatprep.subr.bf16.mxu0 0
        %1763 = vmatpush2.bf16.xpose.msra.mxu0 0
        %1764 = vmatprep.subr.bf16.mxu0 0
        %1765 = vmatpush2.bf16.xpose.msra.mxu0 0
        %1766 = vmatprep.subr.bf16.mxu0 0
        %1767 = vmatpush2.bf16.xpose.msra.mxu0 0
        %1768 = vmatprep.subr.bf16.mxu0 0
        %1769 = vmatpush2.bf16.xpose.msra.mxu0 0
        %1770 = vmatprep.mubr.bf16.mxu0 0
        %1771 = vmatmul.mubr.bf16.gmra.mxu0 %v1733
        %v1772 = vpop.f32.mrf.mxu0
        %v1773 = vadd.f32 %v965, %v1772
        %v1774 = vpop.f32.mrf.mxu0
        %v1775 = vpop.f32.mrf.mxu0
        %v1776 = vpop.f32.mrf.mxu0
        %1777 = vdwg.mxu0
        %v1778 = vsel %vm1513, %v1773, -inf
        %1779 = vmax.xlane.f32.xlu0 %v1778
        %v1780 = vpop.xlane.xlu0 %1779
        %v1781 = vsub.f32 %v1773, %v1780
        %v1782 = vmul.f32 %v1781, 1.442695
        %v1783 = vpow.pop %v1782
        %v1784 = vsel %vm1513, %v1783, 0.0
        %1785 = vadd.xlane.f32.xlu0 %v1784
        %v1786 = vpop.xlane.xlu0 %1785
        %v1787 = vrcp.pop %v1786
        %v1788 = vmul.f32 %v1783, %v1787
        %v1789 = vpack.c.bf16 %v1788, %v1788
        %1791 = vrot.lane.b32.xlu0 %v1731, 96
        %v1792 = vpop.permute.xlu0 %1791
        %v1795 = vsel %vm1513, %v1789, 0
        %1797 = vmatprep.subr.bf16.mxu0 0
        %1798 = vmatpush1.bf16.msra.mxu0 0
        %1799 = vmatprep.subr.bf16.mxu0 0
        %1800 = vmatpush1.bf16.msra.mxu0 0
        %1801 = vmatprep.subr.bf16.mxu0 0
        %1802 = vmatpush1.bf16.msra.mxu0 0
        %1803 = vmatprep.subr.bf16.mxu0 0
        %1804 = vmatpush1.bf16.msra.mxu0 0
        %1805 = vmatprep.subr.bf16.mxu0 0
        %1806 = vmatpush1.bf16.msra.mxu0 0
        %1807 = vmatprep.subr.bf16.mxu0 0
        %1808 = vmatpush1.bf16.msra.mxu0 0
        %1809 = vmatprep.subr.bf16.mxu0 0
        %1810 = vmatpush1.bf16.msra.mxu0 0
        %1811 = vmatprep.subr.bf16.mxu0 0
        %1812 = vmatpush1.bf16.msra.mxu0 %v1792
        %1813 = vmatprep.subr.bf16.mxu0 0
        %1814 = vmatpush2.bf16.msra.mxu0 0
        %1815 = vmatprep.subr.bf16.mxu0 0
        %1816 = vmatpush2.bf16.msra.mxu0 0
        %1817 = vmatprep.subr.bf16.mxu0 0
        %1818 = vmatpush2.bf16.msra.mxu0 0
        %1819 = vmatprep.subr.bf16.mxu0 0
        %1820 = vmatpush2.bf16.msra.mxu0 0
        %1821 = vmatprep.subr.bf16.mxu0 0
        %1822 = vmatpush2.bf16.msra.mxu0 0
        %1823 = vmatprep.subr.bf16.mxu0 0
        %1824 = vmatpush2.bf16.msra.mxu0 0
        %1825 = vmatprep.subr.bf16.mxu0 0
        %1826 = vmatpush2.bf16.msra.mxu0 0
        %1827 = vmatprep.subr.bf16.mxu0 0
        %1828 = vmatpush2.bf16.msra.mxu0 0
        %1829 = vmatprep.mubr.bf16.mxu0 0
        %1830 = vmatmul.mubr.bf16.gmra.mxu0 %v1795
        %v1831 = vpop.f32.mrf.mxu0
        %v1832 = vadd.f32 0.0, %v1831
        %v1833 = vpop.f32.mrf.mxu0
        %v1834 = vpop.f32.mrf.mxu0
        %v1835 = vpop.f32.mrf.mxu0
        %1836 = vdwg.mxu0
        %1838 = vrot.lane.b32.xlu0 %v1730, 120
        %v1839 = vpop.permute.xlu0 %1838
        %1840 = vrot.lane.b32.xlu0 %v1731, 120
        %v1841 = vpop.permute.xlu0 %1840
        %v1843 = vsel %vm1062, %v1839, 0
        %v1846 = vsel %vm1062, %v1841, 0
        %1848 = vmatprep.subr.bf16.mxu0 0
        %1849 = vmatpush1.bf16.xpose.msra.mxu0 0
        %1850 = vmatprep.subr.bf16.mxu0 0
        %1851 = vmatpush1.bf16.xpose.msra.mxu0 0
        %1852 = vmatprep.subr.bf16.mxu0 0
        %1853 = vmatpush1.bf16.xpose.msra.mxu0 0
        %1854 = vmatprep.subr.bf16.mxu0 0
        %1855 = vmatpush1.bf16.xpose.msra.mxu0 0
        %1856 = vmatprep.subr.bf16.mxu0 0
        %1857 = vmatpush1.bf16.xpose.msra.mxu0 0
        %1858 = vmatprep.subr.bf16.mxu0 0
        %1859 = vmatpush1.bf16.xpose.msra.mxu0 0
        %1860 = vmatprep.subr.bf16.mxu0 0
        %1861 = vmatpush1.bf16.xpose.msra.mxu0 0
        %1862 = vmatprep.subr.bf16.mxu0 0
        %1863 = vmatpush1.bf16.xpose.msra.mxu0 %v1846
        %1864 = vmatprep.subr.bf16.mxu0 0
        %1865 = vmatpush2.bf16.xpose.msra.mxu0 0
        %1866 = vmatprep.subr.bf16.mxu0 0
        %1867 = vmatpush2.bf16.xpose.msra.mxu0 0
        %1868 = vmatprep.subr.bf16.mxu0 0
        %1869 = vmatpush2.bf16.xpose.msra.mxu0 0
        %1870 = vmatprep.subr.bf16.mxu0 0
        %1871 = vmatpush2.bf16.xpose.msra.mxu0 0
        %1872 = vmatprep.subr.bf16.mxu0 0
        %1873 = vmatpush2.bf16.xpose.msra.mxu0 0
        %1874 = vmatprep.subr.bf16.mxu0 0
        %1875 = vmatpush2.bf16.xpose.msra.mxu0 0
        %1876 = vmatprep.subr.bf16.mxu0 0
        %1877 = vmatpush2.bf16.xpose.msra.mxu0 0
        %1878 = vmatprep.subr.bf16.mxu0 0
        %1879 = vmatpush2.bf16.xpose.msra.mxu0 0
        %1880 = vmatprep.mubr.bf16.mxu0 0
        %1881 = vmatmul.mubr.bf16.gmra.mxu0 %v1843
        %v1882 = vpop.f32.mrf.mxu0
        %v1883 = vadd.f32 %v965, %v1882
        %v1884 = vpop.f32.mrf.mxu0
        %v1885 = vpop.f32.mrf.mxu0
        %v1886 = vpop.f32.mrf.mxu0
        %1887 = vdwg.mxu0
        %v1888 = vsel %vm1513, %v1883, -inf
        %1889 = vmax.xlane.f32.xlu0 %v1888
        %v1890 = vpop.xlane.xlu0 %1889
        %v1891 = vsub.f32 %v1883, %v1890
        %v1892 = vmul.f32 %v1891, 1.442695
        %v1893 = vpow.pop %v1892
        %v1894 = vsel %vm1513, %v1893, 0.0
        %1895 = vadd.xlane.f32.xlu0 %v1894
        %v1896 = vpop.xlane.xlu0 %1895
        %v1897 = vrcp.pop %v1896
        %v1898 = vmul.f32 %v1893, %v1897
        %v1899 = vpack.c.bf16 %v1898, %v1898
        %1900 = vrot.lane.b32.xlu0 %v1731, 88
        %v1901 = vpop.permute.xlu0 %1900
        %v1904 = vsel %vm1513, %v1899, 0
        %1906 = vmatprep.subr.bf16.mxu0 0
        %1907 = vmatpush1.bf16.msra.mxu0 0
        %1908 = vmatprep.subr.bf16.mxu0 0
        %1909 = vmatpush1.bf16.msra.mxu0 0
        %1910 = vmatprep.subr.bf16.mxu0 0
        %1911 = vmatpush1.bf16.msra.mxu0 0
        %1912 = vmatprep.subr.bf16.mxu0 0
        %1913 = vmatpush1.bf16.msra.mxu0 0
        %1914 = vmatprep.subr.bf16.mxu0 0
        %1915 = vmatpush1.bf16.msra.mxu0 0
        %1916 = vmatprep.subr.bf16.mxu0 0
        %1917 = vmatpush1.bf16.msra.mxu0 0
        %1918 = vmatprep.subr.bf16.mxu0 0
        %1919 = vmatpush1.bf16.msra.mxu0 0
        %1920 = vmatprep.subr.bf16.mxu0 0
        %1921 = vmatpush1.bf16.msra.mxu0 %v1901
        %1922 = vmatprep.subr.bf16.mxu0 0
        %1923 = vmatpush2.bf16.msra.mxu0 0
        %1924 = vmatprep.subr.bf16.mxu0 0
        %1925 = vmatpush2.bf16.msra.mxu0 0
        %1926 = vmatprep.subr.bf16.mxu0 0
        %1927 = vmatpush2.bf16.msra.mxu0 0
        %1928 = vmatprep.subr.bf16.mxu0 0
        %1929 = vmatpush2.bf16.msra.mxu0 0
        %1930 = vmatprep.subr.bf16.mxu0 0
        %1931 = vmatpush2.bf16.msra.mxu0 0
        %1932 = vmatprep.subr.bf16.mxu0 0
        %1933 = vmatpush2.bf16.msra.mxu0 0
        %1934 = vmatprep.subr.bf16.mxu0 0
        %1935 = vmatpush2.bf16.msra.mxu0 0
        %1936 = vmatprep.subr.bf16.mxu0 0
        %1937 = vmatpush2.bf16.msra.mxu0 0
        %1938 = vmatprep.mubr.bf16.mxu0 0
        %1939 = vmatmul.mubr.bf16.gmra.mxu0 %v1904
        %v1940 = vpop.f32.mrf.mxu0
        %v1941 = vadd.f32 0.0, %v1940
        %v1942 = vpop.f32.mrf.mxu0
        %v1943 = vpop.f32.mrf.mxu0
        %v1944 = vpop.f32.mrf.mxu0
        %1945 = vdwg.mxu0
        %1946 = vrot.lane.b32.xlu0 %v1730, 112
        %v1947 = vpop.permute.xlu0 %1946
        %1948 = vrot.lane.b32.xlu0 %v1731, 112
        %v1949 = vpop.permute.xlu0 %1948
        %v1951 = vsel %vm1062, %v1947, 0
        %v1954 = vsel %vm1062, %v1949, 0
        %1956 = vmatprep.subr.bf16.mxu0 0
        %1957 = vmatpush1.bf16.xpose.msra.mxu0 0
        %1958 = vmatprep.subr.bf16.mxu0 0
        %1959 = vmatpush1.bf16.xpose.msra.mxu0 0
        %1960 = vmatprep.subr.bf16.mxu0 0
        %1961 = vmatpush1.bf16.xpose.msra.mxu0 0
        %1962 = vmatprep.subr.bf16.mxu0 0
        %1963 = vmatpush1.bf16.xpose.msra.mxu0 0
        %1964 = vmatprep.subr.bf16.mxu0 0
        %1965 = vmatpush1.bf16.xpose.msra.mxu0 0
        %1966 = vmatprep.subr.bf16.mxu0 0
        %1967 = vmatpush1.bf16.xpose.msra.mxu0 0
        %1968 = vmatprep.subr.bf16.mxu0 0
        %1969 = vmatpush1.bf16.xpose.msra.mxu0 0
        %1970 = vmatprep.subr.bf16.mxu0 0
        %1971 = vmatpush1.bf16.xpose.msra.mxu0 %v1954
        %1972 = vmatprep.subr.bf16.mxu0 0
        %1973 = vmatpush2.bf16.xpose.msra.mxu0 0
        %1974 = vmatprep.subr.bf16.mxu0 0
        %1975 = vmatpush2.bf16.xpose.msra.mxu0 0
        %1976 = vmatprep.subr.bf16.mxu0 0
        %1977 = vmatpush2.bf16.xpose.msra.mxu0 0
        %1978 = vmatprep.subr.bf16.mxu0 0
        %1979 = vmatpush2.bf16.xpose.msra.mxu0 0
        %1980 = vmatprep.subr.bf16.mxu0 0
        %1981 = vmatpush2.bf16.xpose.msra.mxu0 0
        %1982 = vmatprep.subr.bf16.mxu0 0
        %1983 = vmatpush2.bf16.xpose.msra.mxu0 0
        %1984 = vmatprep.subr.bf16.mxu0 0
        %1985 = vmatpush2.bf16.xpose.msra.mxu0 0
        %1986 = vmatprep.subr.bf16.mxu0 0
        %1987 = vmatpush2.bf16.xpose.msra.mxu0 0
        %1988 = vmatprep.mubr.bf16.mxu0 0
        %1989 = vmatmul.mubr.bf16.gmra.mxu0 %v1951
        %v1990 = vpop.f32.mrf.mxu0
        %v1991 = vadd.f32 %v965, %v1990
        %v1992 = vpop.f32.mrf.mxu0
        %v1993 = vpop.f32.mrf.mxu0
        %v1994 = vpop.f32.mrf.mxu0
        %1995 = vdwg.mxu0
        %v1996 = vsel %vm1513, %v1991, -inf
        %1997 = vmax.xlane.f32.xlu0 %v1996
        %v1998 = vpop.xlane.xlu0 %1997
        %v1999 = vsub.f32 %v1991, %v1998
        %v2000 = vmul.f32 %v1999, 1.442695
        %v2001 = vpow.pop %v2000
        %v2002 = vsel %vm1513, %v2001, 0.0
        %2003 = vadd.xlane.f32.xlu0 %v2002
        %v2004 = vpop.xlane.xlu0 %2003
        %v2005 = vrcp.pop %v2004
        %v2006 = vmul.f32 %v2001, %v2005
        %v2007 = vpack.c.bf16 %v2006, %v2006
        %2008 = vrot.lane.b32.xlu0 %v1731, 80
        %v2009 = vpop.permute.xlu0 %2008
        %v2012 = vsel %vm1513, %v2007, 0
        %2014 = vmatprep.subr.bf16.mxu0 0
        %2015 = vmatpush1.bf16.msra.mxu0 0
        %2016 = vmatprep.subr.bf16.mxu0 0
        %2017 = vmatpush1.bf16.msra.mxu0 0
        %2018 = vmatprep.subr.bf16.mxu0 0
        %2019 = vmatpush1.bf16.msra.mxu0 0
        %2020 = vmatprep.subr.bf16.mxu0 0
        %2021 = vmatpush1.bf16.msra.mxu0 0
        %2022 = vmatprep.subr.bf16.mxu0 0
        %2023 = vmatpush1.bf16.msra.mxu0 0
        %2024 = vmatprep.subr.bf16.mxu0 0
        %2025 = vmatpush1.bf16.msra.mxu0 0
        %2026 = vmatprep.subr.bf16.mxu0 0
        %2027 = vmatpush1.bf16.msra.mxu0 0
        %2028 = vmatprep.subr.bf16.mxu0 0
        %2029 = vmatpush1.bf16.msra.mxu0 %v2009
        %2030 = vmatprep.subr.bf16.mxu0 0
        %2031 = vmatpush2.bf16.msra.mxu0 0
        %2032 = vmatprep.subr.bf16.mxu0 0
        %2033 = vmatpush2.bf16.msra.mxu0 0
        %2034 = vmatprep.subr.bf16.mxu0 0
        %2035 = vmatpush2.bf16.msra.mxu0 0
        %2036 = vmatprep.subr.bf16.mxu0 0
        %2037 = vmatpush2.bf16.msra.mxu0 0
        %2038 = vmatprep.subr.bf16.mxu0 0
        %2039 = vmatpush2.bf16.msra.mxu0 0
        %2040 = vmatprep.subr.bf16.mxu0 0
        %2041 = vmatpush2.bf16.msra.mxu0 0
        %2042 = vmatprep.subr.bf16.mxu0 0
        %2043 = vmatpush2.bf16.msra.mxu0 0
        %2044 = vmatprep.subr.bf16.mxu0 0
        %2045 = vmatpush2.bf16.msra.mxu0 0
        %2046 = vmatprep.mubr.bf16.mxu0 0
        %2047 = vmatmul.mubr.bf16.gmra.mxu0 %v2012
        %v2048 = vpop.f32.mrf.mxu0
        %v2049 = vadd.f32 0.0, %v2048
        %v2050 = vpop.f32.mrf.mxu0
        %v2051 = vpop.f32.mrf.mxu0
        %v2052 = vpop.f32.mrf.mxu0
        %2053 = vdwg.mxu0
        %2054 = vrot.lane.b32.xlu0 %v1730, 104
        %v2055 = vpop.permute.xlu0 %2054
        %2056 = vrot.lane.b32.xlu0 %v1731, 104
        %v2057 = vpop.permute.xlu0 %2056
        %v2059 = vsel %vm1062, %v2055, 0
        %v2062 = vsel %vm1062, %v2057, 0
        %2064 = vmatprep.subr.bf16.mxu0 0
        %2065 = vmatpush1.bf16.xpose.msra.mxu0 0
        %2066 = vmatprep.subr.bf16.mxu0 0
        %2067 = vmatpush1.bf16.xpose.msra.mxu0 0
        %2068 = vmatprep.subr.bf16.mxu0 0
        %2069 = vmatpush1.bf16.xpose.msra.mxu0 0
        %2070 = vmatprep.subr.bf16.mxu0 0
        %2071 = vmatpush1.bf16.xpose.msra.mxu0 0
        %2072 = vmatprep.subr.bf16.mxu0 0
        %2073 = vmatpush1.bf16.xpose.msra.mxu0 0
        %2074 = vmatprep.subr.bf16.mxu0 0
        %2075 = vmatpush1.bf16.xpose.msra.mxu0 0
        %2076 = vmatprep.subr.bf16.mxu0 0
        %2077 = vmatpush1.bf16.xpose.msra.mxu0 0
        %2078 = vmatprep.subr.bf16.mxu0 0
        %2079 = vmatpush1.bf16.xpose.msra.mxu0 %v2062
        %2080 = vmatprep.subr.bf16.mxu0 0
        %2081 = vmatpush2.bf16.xpose.msra.mxu0 0
        %2082 = vmatprep.subr.bf16.mxu0 0
        %2083 = vmatpush2.bf16.xpose.msra.mxu0 0
        %2084 = vmatprep.subr.bf16.mxu0 0
        %2085 = vmatpush2.bf16.xpose.msra.mxu0 0
        %2086 = vmatprep.subr.bf16.mxu0 0
        %2087 = vmatpush2.bf16.xpose.msra.mxu0 0
        %2088 = vmatprep.subr.bf16.mxu0 0
        %2089 = vmatpush2.bf16.xpose.msra.mxu0 0
        %2090 = vmatprep.subr.bf16.mxu0 0
        %2091 = vmatpush2.bf16.xpose.msra.mxu0 0
        %2092 = vmatprep.subr.bf16.mxu0 0
        %2093 = vmatpush2.bf16.xpose.msra.mxu0 0
        %2094 = vmatprep.subr.bf16.mxu0 0
        %2095 = vmatpush2.bf16.xpose.msra.mxu0 0
        %2096 = vmatprep.mubr.bf16.mxu0 0
        %2097 = vmatmul.mubr.bf16.gmra.mxu0 %v2059
        %v2098 = vpop.f32.mrf.mxu0
        %v2099 = vadd.f32 %v965, %v2098
        %v2100 = vpop.f32.mrf.mxu0
        %v2101 = vpop.f32.mrf.mxu0
        %v2102 = vpop.f32.mrf.mxu0
        %2103 = vdwg.mxu0
        %v2104 = vsel %vm1513, %v2099, -inf
        %2105 = vmax.xlane.f32.xlu0 %v2104
        %v2106 = vpop.xlane.xlu0 %2105
        %v2107 = vsub.f32 %v2099, %v2106
        %v2108 = vmul.f32 %v2107, 1.442695
        %v2109 = vpow.pop %v2108
        %v2110 = vsel %vm1513, %v2109, 0.0
        %2111 = vadd.xlane.f32.xlu0 %v2110
        %v2112 = vpop.xlane.xlu0 %2111
        %v2113 = vrcp.pop %v2112
        %v2114 = vmul.f32 %v2109, %v2113
        %v2115 = vpack.c.bf16 %v2114, %v2114
        %2116 = vrot.lane.b32.xlu0 %v1731, 72
        %v2117 = vpop.permute.xlu0 %2116
        %v2120 = vsel %vm1513, %v2115, 0
        %2122 = vmatprep.subr.bf16.mxu0 0
        %2123 = vmatpush1.bf16.msra.mxu0 0
        %2124 = vmatprep.subr.bf16.mxu0 0
        %2125 = vmatpush1.bf16.msra.mxu0 0
        %2126 = vmatprep.subr.bf16.mxu0 0
        %2127 = vmatpush1.bf16.msra.mxu0 0
        %2128 = vmatprep.subr.bf16.mxu0 0
        %2129 = vmatpush1.bf16.msra.mxu0 0
        %2130 = vmatprep.subr.bf16.mxu0 0
        %2131 = vmatpush1.bf16.msra.mxu0 0
        %2132 = vmatprep.subr.bf16.mxu0 0
        %2133 = vmatpush1.bf16.msra.mxu0 0
        %2134 = vmatprep.subr.bf16.mxu0 0
        %2135 = vmatpush1.bf16.msra.mxu0 0
        %2136 = vmatprep.subr.bf16.mxu0 0
        %2137 = vmatpush1.bf16.msra.mxu0 %v2117
        %2138 = vmatprep.subr.bf16.mxu0 0
        %2139 = vmatpush2.bf16.msra.mxu0 0
        %2140 = vmatprep.subr.bf16.mxu0 0
        %2141 = vmatpush2.bf16.msra.mxu0 0
        %2142 = vmatprep.subr.bf16.mxu0 0
        %2143 = vmatpush2.bf16.msra.mxu0 0
        %2144 = vmatprep.subr.bf16.mxu0 0
        %2145 = vmatpush2.bf16.msra.mxu0 0
        %2146 = vmatprep.subr.bf16.mxu0 0
        %2147 = vmatpush2.bf16.msra.mxu0 0
        %2148 = vmatprep.subr.bf16.mxu0 0
        %2149 = vmatpush2.bf16.msra.mxu0 0
        %2150 = vmatprep.subr.bf16.mxu0 0
        %2151 = vmatpush2.bf16.msra.mxu0 0
        %2152 = vmatprep.subr.bf16.mxu0 0
        %2153 = vmatpush2.bf16.msra.mxu0 0
        %2154 = vmatprep.mubr.bf16.mxu0 0
        %2155 = vmatmul.mubr.bf16.gmra.mxu0 %v2120
        %v2156 = vpop.f32.mrf.mxu0
        %v2157 = vadd.f32 0.0, %v2156
        %v2158 = vpop.f32.mrf.mxu0
        %v2159 = vpop.f32.mrf.mxu0
        %v2160 = vpop.f32.mrf.mxu0
        %2161 = vdwg.mxu0
        %2163 = vrot.lane.b32.xlu0 %v1941, 8
        %v2164 = vpop.permute.xlu0 %2163
        %2167 = vrot.lane.b32.xlu0 %v2049, 16
        %v2168 = vpop.permute.xlu0 %2167
        %2171 = vrot.lane.b32.xlu0 %v2157, 24
        %v2172 = vpop.permute.xlu0 %2171
        %v2174 = vsel %vm1062, %v1832, %v2164
        %v2175 = vsel %vm1513, %v2174, %v2168
        %v2176 = vsel %vm1515, %v2175, %v2172
        %v2177 = vld [vmem:[%s927] sm:$0xf]
        %v2178 = vld [vmem:[%s927 + $0x4] sm:$0xf]
        %v2179 = vld [vmem:[%s927 + $0x8] sm:$0xf]
        %v2180 = vld [vmem:[%s927 + $0xc] sm:$0xf]
        %v2181 = vpack.c.bf16 %v2176, %v2176
        %v2186 = vunpack.c.l.b16 %v2177
        %v2187 = vunpack.c.l.b16 %v2178
        %v2188 = vunpack.c.l.b16 %v2179
        %v2189 = vunpack.c.l.b16 %v2180
        %v2190 = vpack.c.b16 %v2187, %v2186
        %v2191 = vpack.c.b16 %v2189, %v2188
        %v2195 = vsel %vm969, %v2181, 0
        %2197 = vmatprep.subr.bf16.mxu0 0
        %2198 = vmatpush1.bf16.msra.mxu0 0
        %2199 = vmatprep.subr.bf16.mxu0 0
        %2200 = vmatpush1.bf16.msra.mxu0 0
        %2201 = vmatprep.subr.bf16.mxu0 0
        %2202 = vmatpush1.bf16.msra.mxu0 0
        %2203 = vmatprep.subr.bf16.mxu0 0
        %2204 = vmatpush1.bf16.msra.mxu0 0
        %2205 = vmatprep.subr.bf16.mxu0 0
        %2206 = vmatpush1.bf16.msra.mxu0 0
        %2207 = vmatprep.subr.bf16.mxu0 0
        %2208 = vmatpush1.bf16.msra.mxu0 0
        %2209 = vmatprep.subr.bf16.mxu0 0
        %2210 = vmatpush1.bf16.msra.mxu0 %v2191
        %2211 = vmatprep.subr.bf16.mxu0 0
        %2212 = vmatpush1.bf16.msra.mxu0 %v2190
        %2213 = vmatprep.subr.bf16.mxu0 0
        %2214 = vmatpush2.bf16.msra.mxu0 0
        %2215 = vmatprep.subr.bf16.mxu0 0
        %2216 = vmatpush2.bf16.msra.mxu0 0
        %2217 = vmatprep.subr.bf16.mxu0 0
        %2218 = vmatpush2.bf16.msra.mxu0 0
        %2219 = vmatprep.subr.bf16.mxu0 0
        %2220 = vmatpush2.bf16.msra.mxu0 0
        %2221 = vmatprep.subr.bf16.mxu0 0
        %2222 = vmatpush2.bf16.msra.mxu0 0
        %2223 = vmatprep.subr.bf16.mxu0 0
        %2224 = vmatpush2.bf16.msra.mxu0 0
        %2225 = vmatprep.subr.bf16.mxu0 0
        %2226 = vmatpush2.bf16.msra.mxu0 0
        %2227 = vmatprep.subr.bf16.mxu0 0
        %2228 = vmatpush2.bf16.msra.mxu0 0
        %2229 = vmatprep.mubr.bf16.mxu0 0
        %2230 = vmatmul.mubr.bf16.gmra.mxu0 %v2195
        %v2231 = vpop.f32.mrf.mxu0
        %v2232 = vadd.f32 0.0, %v2231
        %v2233 = vpop.f32.mrf.mxu0
        %v2234 = vpop.f32.mrf.mxu0
        %v2235 = vpop.f32.mrf.mxu0
        %2236 = vdwg.mxu0
        %v2237 = vadd.f32 %v1577, %v2232
        %v2238 = vld [vmem:[%s930] sm:$0x1]
        %v2239 = vld [vmem:[%s933] sm:$0x1]
        %v2240 = vsel %vm969, %v2237, 0.0
        %2241 = vadd.xlane.f32.xlu0 %v2240
        %v2242 = vpop.xlane.xlu0 %2241
        %v2243 = vmul.f32 %v2242, %v973
        %v2244 = vsub.f32 %v2237, %v2243
        %v2245 = vmul.f32 %v2244, %v2244
        %v2246 = vsel %vm969, %v2245, 0.0
        %2247 = vadd.xlane.f32.xlu0 %v2246
        %v2248 = vpop.xlane.xlu0 %2247
        %v2249 = vmul.f32 %v2248, %v973
        %v2250 = vadd.f32 %v2249, 1e-06
        %v2251 = vrsqrt.pop %v2250
        %v2252 = vmul.f32 %v2244, %v2251
        %v2254 = vlaneseq
        %v2255 = vshrl.u32 %v2254, 7
        %v2256 = vsub.s32 0, %v2255
        %v2257 = vrot.slane %v2238, %v2256
        %v2259 = vmul.f32 %v2252, %v2257
        %v2261 = vlaneseq
        %v2262 = vshrl.u32 %v2261, 7
        %v2263 = vsub.s32 0, %v2262
        %v2264 = vrot.slane %v2239, %v2263
        %v2266 = vadd.f32 %v2259, %v2264
        %v2267 = vld [vmem:[%s938] sm:$0xf]
        %v2268 = vld [vmem:[%s938 + $0x4] sm:$0xf]
        %v2269 = vld [vmem:[%s938 + $0x8] sm:$0xf]
        %v2270 = vld [vmem:[%s938 + $0xc] sm:$0xf]
        %v2271 = vpack.c.bf16 %v2266, %v2266
        %v2272 = vld [vmem:[%s941] sm:$0x1]
        %v2274 = vlaneseq
        %v2275 = vshrl.u32 %v2274, 7
        %v2276 = vsub.s32 0, %v2275
        %v2277 = vrot.slane %v2272, %v2276
        %v2283 = vunpack.c.l.b16 %v2267
        %v2284 = vunpack.c.l.b16 %v2268
        %v2285 = vunpack.c.l.b16 %v2269
        %v2286 = vunpack.c.l.b16 %v2270
        %v2287 = vpack.c.b16 %v2284, %v2283
        %v2288 = vpack.c.b16 %v2286, %v2285
        %v2292 = vsel %vm969, %v2271, 0
        %2294 = vmatprep.subr.bf16.mxu0 0
        %2295 = vmatpush1.bf16.msra.mxu0 0
        %2296 = vmatprep.subr.bf16.mxu0 0
        %2297 = vmatpush1.bf16.msra.mxu0 0
        %2298 = vmatprep.subr.bf16.mxu0 0
        %2299 = vmatpush1.bf16.msra.mxu0 0
        %2300 = vmatprep.subr.bf16.mxu0 0
        %2301 = vmatpush1.bf16.msra.mxu0 0
        %2302 = vmatprep.subr.bf16.mxu0 0
        %2303 = vmatpush1.bf16.msra.mxu0 0
        %2304 = vmatprep.subr.bf16.mxu0 0
        %2305 = vmatpush1.bf16.msra.mxu0 0
        %2306 = vmatprep.subr.bf16.mxu0 0
        %2307 = vmatpush1.bf16.msra.mxu0 %v2288
        %2308 = vmatprep.subr.bf16.mxu0 0
        %2309 = vmatpush1.bf16.msra.mxu0 %v2287
        %2310 = vmatprep.subr.bf16.mxu0 0
        %2311 = vmatpush2.bf16.msra.mxu0 0
        %2312 = vmatprep.subr.bf16.mxu0 0
        %2313 = vmatpush2.bf16.msra.mxu0 0
        %2314 = vmatprep.subr.bf16.mxu0 0
        %2315 = vmatpush2.bf16.msra.mxu0 0
        %2316 = vmatprep.subr.bf16.mxu0 0
        %2317 = vmatpush2.bf16.msra.mxu0 0
        %2318 = vmatprep.subr.bf16.mxu0 0
        %2319 = vmatpush2.bf16.msra.mxu0 0
        %2320 = vmatprep.subr.bf16.mxu0 0
        %2321 = vmatpush2.bf16.msra.mxu0 0
        %2322 = vmatprep.subr.bf16.mxu0 0
        %2323 = vmatpush2.bf16.msra.mxu0 0
        %2324 = vmatprep.subr.bf16.mxu0 0
        %2325 = vmatpush2.bf16.msra.mxu0 0
        %2326 = vmatprep.mubr.bf16.mxu0 0
        %2327 = vmatmul.mubr.bf16.gmra.mxu0 %v2292
        %v2328 = vpop.f32.mrf.mxu0
        %v2329 = vadd.f32 %v2277, %v2328
        %v2330 = vpop.f32.mrf.mxu0
        %v2331 = vpop.f32.mrf.mxu0
        %v2332 = vpop.f32.mrf.mxu0
        %2333 = vdwg.mxu0
        %v2334 = vmax.f32 %v2329, 0.0
        %v2335 = vpack.c.bf16 %v2334, %v2334
        %v2336 = vld [vmem:[%s946] sm:$0xf]
        %v2337 = vld [vmem:[%s946 + $0x4] sm:$0xf]
        %v2338 = vld [vmem:[%s946 + $0x8] sm:$0xf]
        %v2339 = vld [vmem:[%s946 + $0xc] sm:$0xf]
        %v2340 = vld [vmem:[%s946 + $0x10] sm:$0xf]
        %v2341 = vld [vmem:[%s946 + $0x14] sm:$0xf]
        %v2342 = vld [vmem:[%s946 + $0x18] sm:$0xf]
        %v2343 = vld [vmem:[%s946 + $0x1c] sm:$0xf]
        %v2344 = vld [vmem:[%s949] sm:$0x1]
        %v2346 = vlaneseq
        %v2347 = vshrl.u32 %v2346, 7
        %v2348 = vsub.s32 0, %v2347
        %v2349 = vrot.slane %v2344, %v2348
        %v2359 = vunpack.c.l.b16 %v2336
        %v2360 = vunpack.c.l.b16 %v2337
        %v2361 = vunpack.c.l.b16 %v2338
        %v2362 = vunpack.c.l.b16 %v2339
        %v2363 = vunpack.c.l.b16 %v2340
        %v2364 = vunpack.c.l.b16 %v2341
        %v2365 = vunpack.c.l.b16 %v2342
        %v2366 = vunpack.c.l.b16 %v2343
        %v2367 = vpack.c.b16 %v2360, %v2359
        %v2368 = vpack.c.b16 %v2362, %v2361
        %v2369 = vpack.c.b16 %v2364, %v2363
        %v2370 = vpack.c.b16 %v2366, %v2365
        %vm2375 = vcmask 523264
        %v2377 = vsel %vm2375, %v2335, 0
        %2379 = vmatprep.subr.bf16.mxu0 0
        %2380 = vmatpush1.bf16.msra.mxu0 0
        %2381 = vmatprep.subr.bf16.mxu0 0
        %2382 = vmatpush1.bf16.msra.mxu0 0
        %2383 = vmatprep.subr.bf16.mxu0 0
        %2384 = vmatpush1.bf16.msra.mxu0 0
        %2385 = vmatprep.subr.bf16.mxu0 0
        %2386 = vmatpush1.bf16.msra.mxu0 0
        %2387 = vmatprep.subr.bf16.mxu0 0
        %2388 = vmatpush1.bf16.msra.mxu0 %v2370
        %2389 = vmatprep.subr.bf16.mxu0 0
        %2390 = vmatpush1.bf16.msra.mxu0 %v2369
        %2391 = vmatprep.subr.bf16.mxu0 0
        %2392 = vmatpush1.bf16.msra.mxu0 %v2368
        %2393 = vmatprep.subr.bf16.mxu0 0
        %2394 = vmatpush1.bf16.msra.mxu0 %v2367
        %2395 = vmatprep.subr.bf16.mxu0 0
        %2396 = vmatpush2.bf16.msra.mxu0 0
        %2397 = vmatprep.subr.bf16.mxu0 0
        %2398 = vmatpush2.bf16.msra.mxu0 0
        %2399 = vmatprep.subr.bf16.mxu0 0
        %2400 = vmatpush2.bf16.msra.mxu0 0
        %2401 = vmatprep.subr.bf16.mxu0 0
        %2402 = vmatpush2.bf16.msra.mxu0 0
        %2403 = vmatprep.subr.bf16.mxu0 0
        %2404 = vmatpush2.bf16.msra.mxu0 0
        %2405 = vmatprep.subr.bf16.mxu0 0
        %2406 = vmatpush2.bf16.msra.mxu0 0
        %2407 = vmatprep.subr.bf16.mxu0 0
        %2408 = vmatpush2.bf16.msra.mxu0 0
        %2409 = vmatprep.subr.bf16.mxu0 0
        %2410 = vmatpush2.bf16.msra.mxu0 0
        %2411 = vmatprep.mubr.bf16.mxu0 0
        %2412 = vmatmul.mubr.bf16.gmra.mxu0 %v2377
        %v2413 = vpop.f32.mrf.mxu0
        %v2414 = vadd.f32 %v2349, %v2413
        %v2415 = vpop.f32.mrf.mxu0
        %v2416 = vpop.f32.mrf.mxu0
        %v2417 = vpop.f32.mrf.mxu0
        %2418 = vdwg.mxu0
        %v2419 = vadd.f32 %v2237, %v2414
        // Predicated region
        $region109: #{generator_forward.3} parent=103 // pred_check
          %p2420 = pneg %p951
        $region110: #{generator_forward.3} parent=103 // pred_check_branch
          %2422 = sbr.rel (%p2420) target = $region112
        $region111: #{generator_forward.3} parent=103 // pred_region
          %v2423 = vld [vmem:[%s19] sm:$0x1]
          %v2424 = vld [vmem:[%s20] sm:$0x1]
          %v2425 = vsel %vm969, %v2419, 0.0
          %2426 = vadd.xlane.f32.xlu0 %v2425
          %v2427 = vpop.xlane.xlu0 %2426
          %v2428 = vmul.f32 %v2427, %v973
          %v2429 = vsub.f32 %v2419, %v2428
          %v2430 = vmul.f32 %v2429, %v2429
          %v2431 = vsel %vm969, %v2430, 0.0
          %2432 = vadd.xlane.f32.xlu0 %v2431
          %v2433 = vpop.xlane.xlu0 %2432
          %v2434 = vmul.f32 %v2433, %v973
          %v2435 = vadd.f32 %v2434, 1e-06
          %v2436 = vrsqrt.pop %v2435
          %v2437 = vmul.f32 %v2429, %v2436
          %v2439 = vlaneseq
          %v2440 = vshrl.u32 %v2439, 7
          %v2441 = vsub.s32 0, %v2440
          %v2442 = vrot.slane %v2423, %v2441
          %v2444 = vmul.f32 %v2437, %v2442
          %v2446 = vlaneseq
          %v2447 = vshrl.u32 %v2446, 7
          %v2448 = vsub.s32 0, %v2447
          %v2449 = vrot.slane %v2424, %v2448
          %v2451 = vadd.f32 %v2444, %v2449
          %2452 = vst.msk [vmem:[%s878] sm:$0xff] %vm969, %v2451
        $region112: #{generator_forward.3} parent=103 // pred_fallthru
          _
        %p2453 = scmp.ne.s32.totalorder %s40, 0
        // Predicated region
        $region113: #{generator_forward.3} parent=103 // pred_check
          %p2454 = pneg %p2453
        $region114: #{generator_forward.3} parent=103 // pred_check_branch
          %2456 = sbr.rel (%p2454) target = $region116
        $region115: #{generator_forward.3} parent=103 // pred_region
          %2457 = vst.msk [vmem:[%s878] sm:$0xff] %vm969, %v2419
        $region116: #{generator_forward.3} parent=103 // pred_fallthru
          _
        %s2458 = sand.u32 %s586, 1
        %s2459 = scalar_lea.sflag [#allocation3], %s2458
        %s2460 = sand.u32 %s586, 1
        %s2461 = smul.addr %s2460, 8
        %s2462 = scalar_lea.vmem [#allocation2], %s2461
        // Predicated region
        $region117: #{generator_forward.3} parent=103 // pred_check
          %p2463 = pneg %p596
        $region118: #{generator_forward.3} parent=103 // pred_check_branch
          %2465 = sbr.rel (%p2463) target = $region120
        $region119: #{generator_forward.3} parent=103 // pred_region
          %s2467 = ssub.s32 128, 128
          %2468 = vsyncadd %s2459, %s2467
          %s2469 = smul.addr %s39, 128
          %s2470 = scalar_lea.hbm %s21, %s2469
          %s2472 = sshll.u32 %s2462, 4
          %s2473 = int_to_ptr.vmem [resolvable:$true] %s2472
          %2475 = dma.vmem_to_hbm [thread:$0]  %s2473, 128, %s2470, %s2459
        $region120: #{generator_forward.3} parent=103 // pred_fallthru
          _
      $region104: #{generator_forward.3} parent=5 // pred_fallthru
        _
      %p2476 = scmp.le.s32.totalorder 2, %s30
      // Predicated region
      $region121: #{generator_forward.3} parent=5 // pred_check
        %p2477 = pneg %p2476
      $region122: #{generator_forward.3} parent=5 // pred_check_branch
        %2479 = sbr.rel (%p2477) target = $region124
      $region123: #{generator_forward.3} parent=5 // pred_region
        %s2480 = ssub.s32 %s30, 2
        // Predicated region
        $region125: #{generator_forward.3} parent=123 // pred_check
          %p2481 = pneg %p602
        $region126: #{generator_forward.3} parent=123 // pred_check_branch
          %2483 = sbr.rel (%p2481) target = $region128
        $region127: #{generator_forward.3} parent=123 // pred_region
          %s2484 = sand.u32 %s587, 1
          %s2485 = scalar_lea.sflag [#allocation3], %s2484
          %s2486 = sand.u32 %s587, 1
          %s2487 = smul.addr %s2486, 8
          %s2488 = scalar_lea.vmem [#allocation2], %s2487
          %2489 = dma.done %s2485, 128
        $region128: #{generator_forward.3} parent=123 // pred_fallthru
          _
      $region124: #{generator_forward.3} parent=5 // pred_fallthru
        _
    $region6: #{generator_forward.3} parent=1 // loop_footer
      %s34 = sadd.s32 1, %s30
    $region7: #{generator_forward.3} parent=1 // loop_footer_branch
      %29 = sbr.rel target = $region3
    $region8: #{generator_forward.3} parent=1 // loop_exit
      _
    %2490 = vsyncpa [#allocation3], 1
    %s2491 = scalar_lea.sflag [#allocation3], 1
    %2492 = vsyncpa %s2491, 1

</llo_original>
